<compile_context>
chip_gen: v7x
topology: tpu7x:2x2x1
jax: 0.10.0
libtpu: 0.0.40
codegen_flags: <defaults>
</compile_context>

<pallas_src>
import jax
import jax.numpy as jnp
from jax.experimental import pallas as pl
from jax.experimental.pallas import tpu as pltpu


# ---------------------------------------------------------------------------
# Tile-size / VMEM budgeting (re-derived per call; safe for v7x 64 MiB VMEM)
# ---------------------------------------------------------------------------
_VMEM_BUDGET = 40 * 1024 * 1024


def _attn_vmem_bytes(tq, N, C, Cq):
    # double-buffered streams: x-tile, K^T, V, attn-out, y-out
    stream = 2 * (tq * C + Cq * N + N * C + tq * N + tq * C)
    # live f32 temporaries: energy/e/attn (~4x tq*N with slack) + q/o
    temps = 4 * tq * N + 2 * tq * C
    return 4 * (stream + temps)


def _pick_tq(N, B, C, Cq):
    cands = [t for t in (512, 256, 128) if N % t == 0]
    if not cands:
        # TODO(synk): for very large ragged N, tile the KV axis (two-pass
        # online softmax) instead of taking the whole sample in one block.
        cands = [N]
    for tq in cands:
        if _attn_vmem_bytes(tq, N, C, Cq) > _VMEM_BUDGET:
            continue
        # v7x has 2 TensorCores per chip: keep >= 2 grid steps even at B == 1.
        if B == 1 and (N // tq) < 2 and tq != cands[-1]:
            continue
        return tq
    return cands[-1]


def _compiler_params(vmem_bytes=None):
    kw = dict(dimension_semantics=("parallel", "parallel"))
    # Only raise the scoped-VMEM limit when the footprint needs it (v5e default
    # is 16 MiB); never request more than 56 MiB (v7x physical is 64 MiB).
    if vmem_bytes is not None and vmem_bytes > 14 * 1024 * 1024:
        kw["vmem_limit_bytes"] = int(min(vmem_bytes + (8 << 20), 56 << 20))
    return pltpu.CompilerParams(**kw)


# ---------------------------------------------------------------------------
# Kernel 1: one-shot K^T / V projection (hoisted out of the query-tile loop)
# ---------------------------------------------------------------------------
def _kv_proj_kernel(x_ref, wk_ref, bk_ref, wv_ref, bv_ref, kT_ref, v_ref):
    x_t = x_ref[...]                                              # (tn, C)
    # K^T tile (Cq, tn): contract the channel axis of Wk (Cq, C) with x (tn, C).
    # Output is lane-dense (positions on lanes) — no (N, Cq) lane-sparse tensor.
    kT = jax.lax.dot_general(
        wk_ref[...], x_t, (((1,), (1,)), ((), ())),
        preferred_element_type=jnp.float32) + bk_ref[...]
    kT_ref[...] = kT
    v_ref[...] = (jnp.dot(x_t, wv_ref[...], preferred_element_type=jnp.float32)
                  + bv_ref[...])


def _kv_proj_pallas(x_nc, wk, bk_col, wv_t, bv_row, tn):
    B, N, C = x_nc.shape
    Cq = wk.shape[0]
    return pl.pallas_call(
        _kv_proj_kernel,
        out_shape=(jax.ShapeDtypeStruct((B, Cq, N), jnp.float32),
                   jax.ShapeDtypeStruct((B, N, C), jnp.float32)),
        grid=(B, N // tn),
        in_specs=[
            pl.BlockSpec((None, tn, C), lambda b, j: (b, j, 0)),    # x tile
            pl.BlockSpec((Cq, C), lambda b, j: (0, 0)),             # Wk
            pl.BlockSpec((Cq, 1), lambda b, j: (0, 0)),             # bk (column)
            pl.BlockSpec((C, C), lambda b, j: (0, 0)),              # Wv^T
            pl.BlockSpec((1, C), lambda b, j: (0, 0)),              # bv (row)
        ],
        out_specs=(
            pl.BlockSpec((None, Cq, tn), lambda b, j: (b, 0, j)),   # K^T lane-dense
            pl.BlockSpec((None, tn, C), lambda b, j: (b, j, 0)),    # V
        ),
        compiler_params=_compiler_params(),
    )(x_nc, wk, bk_col, wv_t, bv_row)


# ---------------------------------------------------------------------------
# Kernel 2: fused Q projection + energy + softmax + AV + gamma-residual
# ---------------------------------------------------------------------------
def _attn_kernel(x_ref, wq_ref, bq_ref, kT_ref, v_ref, gamma_ref,
                 out_ref, attn_ref):
    x_q = x_ref[...]                                              # (tq, C)
    q = (jnp.dot(x_q, wq_ref[...], preferred_element_type=jnp.float32)
         + bq_ref[...])                                           # (tq, Cq)

    # energy: standard (tq, Cq) @ (Cq, N) MXU matmul on the lane-dense K^T.
    energy = jnp.dot(q, kT_ref[...], preferred_element_type=jnp.float32)

    # Exact row softmax (each invocation owns complete rows).
    m = jnp.max(energy, axis=-1, keepdims=True)
    e = jnp.exp(energy - m)
    s = jnp.sum(e, axis=-1, keepdims=True)
    inv = pl.reciprocal(s, approx=True)          # EUP slot; (tq,1) only
    inv = inv * (2.0 - s * inv)                  # 1 Newton step -> f32-accurate
    attn = e * inv                               # wide multiply instead of divide
    attn_ref[...] = attn

    # out[i, c] = sum_j attn[i, j] * v[j, c]
    o = jnp.dot(attn, v_ref[...], preferred_element_type=jnp.float32)
    out_ref[...] = gamma_ref[0, 0] * o + x_q


def _attn_pallas(x_nc, wq_t, bq_row, kT, v, gamma, tq):
    B, N, C = x_nc.shape
    Cq = wq_t.shape[1]
    vmem_bytes = _attn_vmem_bytes(tq, N, C, Cq)
    return pl.pallas_call(
        _attn_kernel,
        out_shape=(jax.ShapeDtypeStruct((B, N, C), jnp.float32),
                   jax.ShapeDtypeStruct((B, N, N), jnp.float32)),
        grid=(B, N // tq),
        in_specs=[
            pl.BlockSpec((None, tq, C), lambda b, i: (b, i, 0)),    # x query tile
            pl.BlockSpec((C, Cq), lambda b, i: (0, 0)),             # Wq^T
            pl.BlockSpec((1, Cq), lambda b, i: (0, 0)),             # bq
            pl.BlockSpec((None, Cq, N), lambda b, i: (b, 0, 0)),    # K^T (resident over i)
            pl.BlockSpec((None, N, C), lambda b, i: (b, 0, 0)),     # V   (resident over i)
            pl.BlockSpec(memory_space=pltpu.MemorySpace.SMEM),      # gamma scalar
        ],
        out_specs=(
            pl.BlockSpec((None, tq, C), lambda b, i: (b, i, 0)),    # y
            pl.BlockSpec((None, tq, N), lambda b, i: (b, i, 0)),    # attention (lane-dense)
        ),
        compiler_params=_compiler_params(vmem_bytes),
    )(x_nc, wq_t, bq_row, kT, v, gamma)


# ---------------------------------------------------------------------------
# Module wrapper (plain-JAX glue: reshapes / tiny transposes only)
# ---------------------------------------------------------------------------
def self_attn_forward(x, params):
    """x: (B, C, T, H, W) f32 -> (out (B, C, T, H, W), attention (B, N, N))."""
    B, C, T, H, W = x.shape
    N = T * H * W
    Cq = C // 8

    # Spatial-major activations so every in-kernel matmul is a standard MXU
    # contraction (small glue transpose).
    x_nc = x.reshape(B, C, N).transpose(0, 2, 1).astype(jnp.float32)   # (B, N, C)

    wq_t = params["wq"].reshape(Cq, C).T                 # (C, Cq)
    wk = params["wk"].reshape(Cq, C)                     # (Cq, C), used un-transposed
    wv_t = params["wv"].reshape(C, C).T                  # (C, C)
    bq = params["bq"].reshape(1, Cq)
    bk = params["bk"].reshape(Cq, 1)
    bv = params["bv"].reshape(1, C)
    gamma = params["gamma"].reshape(1, 1).astype(jnp.float32)

    tq = _pick_tq(N, B, C, Cq)

    kT, v = _kv_proj_pallas(x_nc, wk, bk, wv_t, bv, tq)          # one-shot K^T, V
    y_nc, attn = _attn_pallas(x_nc, wq_t, bq, kT, v, gamma, tq)  # fused attention

    out = y_nc.transpose(0, 2, 1).reshape(B, C, T, H, W)
    return out, attn


# ---------------------------------------------------------------------------
# Parameters (deterministic, PyTorch Conv3d default init; gamma param)
# ---------------------------------------------------------------------------
def init_params(key, in_dim):
    Cq = in_dim // 8
    ks = jax.random.split(key, 6)

    def conv1x1(kw, kb, cout, cin):
        bound = 1.0 / jnp.sqrt(float(cin))               # fan_in = cin * 1 * 1 * 1
        w = jax.random.uniform(kw, (cout, cin, 1, 1, 1), jnp.float32, -bound, bound)
        b = jax.random.uniform(kb, (cout,), jnp.float32, -bound, bound)
        return w, b

    wq, bq = conv1x1(ks[0], ks[1], Cq, in_dim)
    wk, bk = conv1x1(ks[2], ks[3], Cq, in_dim)
    wv, bv = conv1x1(ks[4], ks[5], in_dim, in_dim)
    return {"wq": wq, "bq": bq, "wk": wk, "bk": bk, "wv": wv, "bv": bv,
            # PyTorch initializes gamma to zero (out == x at init).
            "gamma": jnp.zeros((1,), jnp.float32)}


# ---------------------------------------------------------------------------
# Pure-JAX reference (for correctness check)
# ---------------------------------------------------------------------------
def self_attn_reference(x, params):
    B, C, T, H, W = x.shape
    N = T * H * W
    Cq = C // 8
    hp = jax.lax.Precision.HIGHEST
    xf = x.reshape(B, C, N)
    q = jnp.einsum("oc,bcn->bon", params["wq"].reshape(Cq, C), xf,
                   precision=hp) + params["bq"][None, :, None]
    k = jnp.einsum("oc,bcn->bon", params["wk"].reshape(Cq, C), xf,
                   precision=hp) + params["bk"][None, :, None]
    v = jnp.einsum("oc,bcn->bon", params["wv"].reshape(C, C), xf,
                   precision=hp) + params["bv"][None, :, None]
    energy = jnp.einsum("bci,bcj->bij", q, k, precision=hp)
    attn = jax.nn.softmax(energy, axis=-1)
    out = jnp.einsum("bcj,bij->bci", v, attn, precision=hp)
    out = params["gamma"][0] * out + xf
    return out.reshape(B, C, T, H, W), attn


if __name__ == "__main__":
    key = jax.random.PRNGKey(0)

    configs = [
        # (B, C, T, H, W)
        (2, 64, 4, 8, 8),    # N = 256: single query tile per batch sample
        (1, 64, 8, 8, 8),    # N = 512, B = 1: 2 query tiles (multi-tile path)
    ]
    fwd = jax.jit(self_attn_forward)

    for (B, C, T, H, W) in configs:
        kx, kp, key = jax.random.split(key, 3)
        params = init_params(kp, in_dim=C)
        # PyTorch inits gamma = 0 (so out == x); use a nonzero value here so
        # the full attention + residual path is exercised numerically.
        params["gamma"] = jnp.array([0.5], jnp.float32)

        x = jax.random.normal(kx, (B, C, T, H, W), dtype=jnp.float32)

        out, attn = fwd(x, params)
        jax.block_until_ready((out, attn))

        N = T * H * W
        assert out.shape == (B, C, T, H, W)
        assert attn.shape == (B, N, N)

        ref_out, ref_attn = self_attn_reference(x, params)
        assert bool(jnp.allclose(attn, ref_attn, atol=1e-3, rtol=1e-3)), "attention mismatch"
        assert bool(jnp.allclose(out, ref_out, atol=1e-3, rtol=1e-3)), "output mismatch"

    print("KERNEL_OK")
</pallas_src>

<mosaic_0001>
module attributes {stable_mosaic.version = 11 : i64} {
  func.func @_kv_proj_kernel(%arg0: i32, %arg1: i32, %arg2: memref<1x256x64xf32, #tpu.memory_space<vmem>>, %arg3: memref<8x64xf32, #tpu.memory_space<vmem>>, %arg4: memref<8x1xf32, #tpu.memory_space<vmem>>, %arg5: memref<64x64xf32, #tpu.memory_space<vmem>>, %arg6: memref<1x64xf32, #tpu.memory_space<vmem>>, %arg7: memref<1x8x256xf32, #tpu.memory_space<vmem>>, %arg8: memref<1x256x64xf32, #tpu.memory_space<vmem>>) attributes {dimension_semantics = [#tpu.dimension_semantics<parallel>, #tpu.dimension_semantics<parallel>], iteration_bounds = array<i64: 2, 1>, scalar_prefetch = 0 : i64, scratch_operands = 0 : i64, tpu.core_type = #tpu.core_type<tc>, window_params = [{transform_indices = @transform_0, window_bounds = array<i64: 1, 256, 64>}, {pipeline_mode = #tpu.pipeline_mode<synchronous>, transform_indices = @transform_1, window_bounds = array<i64: 8, 64>}, {pipeline_mode = #tpu.pipeline_mode<synchronous>, transform_indices = @transform_2, window_bounds = array<i64: 8, 1>}, {pipeline_mode = #tpu.pipeline_mode<synchronous>, transform_indices = @transform_3, window_bounds = array<i64: 64, 64>}, {pipeline_mode = #tpu.pipeline_mode<synchronous>, transform_indices = @transform_4, window_bounds = array<i64: 1, 64>}, {transform_indices = @transform_5, window_bounds = array<i64: 1, 8, 256>}, {transform_indices = @transform_6, window_bounds = array<i64: 1, 256, 64>}]} {
    %c0 = arith.constant 0 : index
    %c0_0 = arith.constant 0 : index
    %c0_1 = arith.constant 0 : index
    %0 = vector.load %arg2[%c0, %c0_0, %c0_1] : memref<1x256x64xf32, #tpu.memory_space<vmem>>, vector<1x256x64xf32>
    %1 = vector.shape_cast %0 : vector<1x256x64xf32> to vector<256x64xf32>
    %c0_2 = arith.constant 0 : index
    %c0_3 = arith.constant 0 : index
    %2 = vector.load %arg3[%c0_2, %c0_3] : memref<8x64xf32, #tpu.memory_space<vmem>>, vector<8x64xf32>
    %cst = arith.constant dense<0.000000e+00> : vector<8x256xf32>
    %3 = tpu.matmul %2, %1, %cst {dimension_numbers = #tpu.dot_dimension_numbers<[1], [1], [0], [0], [0, 0, 1, 0], [], []>} : vector<8x64xf32>, vector<256x64xf32>, vector<8x256xf32> -> vector<8x256xf32>
    %c0_4 = arith.constant 0 : index
    %c0_5 = arith.constant 0 : index
    %4 = vector.load %arg4[%c0_4, %c0_5] : memref<8x1xf32, #tpu.memory_space<vmem>>, vector<8x1xf32>
    %5 = vector.broadcast %4 : vector<8x1xf32> to vector<8x256xf32>
    %6 = arith.addf %3, %5 : vector<8x256xf32>
    %c0_6 = arith.constant 0 : index
    %c0_7 = arith.constant 0 : index
    %c0_8 = arith.constant 0 : index
    %7 = vector.load %arg7[%c0_6, %c0_7, %c0_8] : memref<1x8x256xf32, #tpu.memory_space<vmem>>, vector<1x8x256xf32>
    %8 = vector.shape_cast %7 : vector<1x8x256xf32> to vector<8x256xf32>
    %9 = vector.shape_cast %6 : vector<8x256xf32> to vector<1x8x256xf32>
    tpu.vector_store %arg7[%c0_6, %c0_7, %c0_8], %9 {strides = array<i32>} : memref<1x8x256xf32, #tpu.memory_space<vmem>>, vector<1x8x256xf32>,
    %c0_9 = arith.constant 0 : index
    %c0_10 = arith.constant 0 : index
    %10 = vector.load %arg5[%c0_9, %c0_10] : memref<64x64xf32, #tpu.memory_space<vmem>>, vector<64x64xf32>
    %cst_11 = arith.constant dense<0.000000e+00> : vector<256x64xf32>
    %11 = tpu.matmul %1, %10, %cst_11 {dimension_numbers = #tpu.dot_dimension_numbers<[1], [0], [0], [1], [0, 0, 1, 1], [], []>} : vector<256x64xf32>, vector<64x64xf32>, vector<256x64xf32> -> vector<256x64xf32>
    %c0_12 = arith.constant 0 : index
    %c0_13 = arith.constant 0 : index
    %12 = vector.load %arg6[%c0_12, %c0_13] : memref<1x64xf32, #tpu.memory_space<vmem>>, vector<1x64xf32>
    %13 = vector.broadcast %12 : vector<1x64xf32> to vector<256x64xf32>
    %14 = arith.addf %11, %13 : vector<256x64xf32>
    %c0_14 = arith.constant 0 : index
    %c0_15 = arith.constant 0 : index
    %c0_16 = arith.constant 0 : index
    %15 = vector.load %arg8[%c0_14, %c0_15, %c0_16] : memref<1x256x64xf32, #tpu.memory_space<vmem>>, vector<1x256x64xf32>
    %16 = vector.shape_cast %15 : vector<1x256x64xf32> to vector<256x64xf32>
    %17 = vector.shape_cast %14 : vector<256x64xf32> to vector<1x256x64xf32>
    tpu.vector_store %arg8[%c0_14, %c0_15, %c0_16], %17 {strides = array<i32>} : memref<1x256x64xf32, #tpu.memory_space<vmem>>, vector<1x256x64xf32>,
    return
  }
  func.func @transform_0(%arg0: i32, %arg1: i32) -> (i32, i32, i32) {
    %c0_i32 = arith.constant 0 : i32
    %c0_i32_0 = arith.constant 0 : i32
    return %arg0, %arg1, %c0_i32 : i32, i32, i32
  }
  func.func @transform_1(%arg0: i32, %arg1: i32) -> (i32, i32) {
    %c0_i32 = arith.constant 0 : i32
    %c0_i32_0 = arith.constant 0 : i32
    %c0_i32_1 = arith.constant 0 : i32
    return %c0_i32, %c0_i32_0 : i32, i32
  }
  func.func @transform_2(%arg0: i32, %arg1: i32) -> (i32, i32) {
    %c0_i32 = arith.constant 0 : i32
    %c0_i32_0 = arith.constant 0 : i32
    %c0_i32_1 = arith.constant 0 : i32
    return %c0_i32, %c0_i32_0 : i32, i32
  }
  func.func @transform_3(%arg0: i32, %arg1: i32) -> (i32, i32) {
    %c0_i32 = arith.constant 0 : i32
    %c0_i32_0 = arith.constant 0 : i32
    %c0_i32_1 = arith.constant 0 : i32
    return %c0_i32, %c0_i32_0 : i32, i32
  }
  func.func @transform_4(%arg0: i32, %arg1: i32) -> (i32, i32) {
    %c0_i32 = arith.constant 0 : i32
    %c0_i32_0 = arith.constant 0 : i32
    %c0_i32_1 = arith.constant 0 : i32
    return %c0_i32, %c0_i32_0 : i32, i32
  }
  func.func @transform_5(%arg0: i32, %arg1: i32) -> (i32, i32, i32) {
    %c0_i32 = arith.constant 0 : i32
    %c0_i32_0 = arith.constant 0 : i32
    return %arg0, %c0_i32, %arg1 : i32, i32, i32
  }
  func.func @transform_6(%arg0: i32, %arg1: i32) -> (i32, i32, i32) {
    %c0_i32 = arith.constant 0 : i32
    %c0_i32_0 = arith.constant 0 : i32
    return %arg0, %arg1, %c0_i32 : i32, i32, i32
  }
}

module attributes {stable_mosaic.version = 11 : i64} {
  func.func @_attn_kernel(%arg0: i32, %arg1: i32, %arg2: memref<1x256x64xf32, #tpu.memory_space<vmem>>, %arg3: memref<64x8xf32, #tpu.memory_space<vmem>>, %arg4: memref<1x8xf32, #tpu.memory_space<vmem>>, %arg5: memref<1x8x256xf32, #tpu.memory_space<vmem>>, %arg6: memref<1x256x64xf32, #tpu.memory_space<vmem>>, %arg7: memref<1x1xf32, #tpu.memory_space<smem>>, %arg8: memref<1x256x64xf32, #tpu.memory_space<vmem>>, %arg9: memref<1x256x256xf32, #tpu.memory_space<vmem>>) attributes {dimension_semantics = [#tpu.dimension_semantics<parallel>, #tpu.dimension_semantics<parallel>], iteration_bounds = array<i64: 2, 1>, scalar_prefetch = 0 : i64, scratch_operands = 0 : i64, tpu.core_type = #tpu.core_type<tc>, window_params = [{transform_indices = @transform_0, window_bounds = array<i64: 1, 256, 64>}, {pipeline_mode = #tpu.pipeline_mode<synchronous>, transform_indices = @transform_1, window_bounds = array<i64: 64, 8>}, {pipeline_mode = #tpu.pipeline_mode<synchronous>, transform_indices = @transform_2, window_bounds = array<i64: 1, 8>}, {transform_indices = @transform_3, window_bounds = array<i64: 1, 8, 256>}, {transform_indices = @transform_4, window_bounds = array<i64: 1, 256, 64>}, {transform_indices = @transform_5, window_bounds = array<i64: 1, 1>}, {transform_indices = @transform_6, window_bounds = array<i64: 1, 256, 64>}, {transform_indices = @transform_7, window_bounds = array<i64: 1, 256, 256>}]} {
    %c0 = arith.constant 0 : index
    %c0_0 = arith.constant 0 : index
    %c0_1 = arith.constant 0 : index
    %0 = vector.load %arg2[%c0, %c0_0, %c0_1] : memref<1x256x64xf32, #tpu.memory_space<vmem>>, vector<1x256x64xf32>
    %1 = vector.shape_cast %0 : vector<1x256x64xf32> to vector<256x64xf32>
    %c0_2 = arith.constant 0 : index
    %c0_3 = arith.constant 0 : index
    %2 = vector.load %arg3[%c0_2, %c0_3] : memref<64x8xf32, #tpu.memory_space<vmem>>, vector<64x8xf32>
    %cst = arith.constant dense<0.000000e+00> : vector<256x8xf32>
    %3 = tpu.matmul %1, %2, %cst {dimension_numbers = #tpu.dot_dimension_numbers<[1], [0], [0], [1], [0, 0, 1, 1], [], []>} : vector<256x64xf32>, vector<64x8xf32>, vector<256x8xf32> -> vector<256x8xf32>
    %c0_4 = arith.constant 0 : index
    %c0_5 = arith.constant 0 : index
    %4 = vector.load %arg4[%c0_4, %c0_5] : memref<1x8xf32, #tpu.memory_space<vmem>>, vector<1x8xf32>
    %5 = vector.broadcast %4 : vector<1x8xf32> to vector<256x8xf32>
    %6 = arith.addf %3, %5 : vector<256x8xf32>
    %c0_6 = arith.constant 0 : index
    %c0_7 = arith.constant 0 : index
    %c0_8 = arith.constant 0 : index
    %7 = vector.load %arg5[%c0_6, %c0_7, %c0_8] : memref<1x8x256xf32, #tpu.memory_space<vmem>>, vector<1x8x256xf32>
    %8 = vector.shape_cast %7 : vector<1x8x256xf32> to vector<8x256xf32>
    %cst_9 = arith.constant dense<0.000000e+00> : vector<256x256xf32>
    %9 = tpu.matmul %6, %8, %cst_9 {dimension_numbers = #tpu.dot_dimension_numbers<[1], [0], [0], [1], [0, 0, 1, 1], [], []>} : vector<256x8xf32>, vector<8x256xf32>, vector<256x256xf32> -> vector<256x256xf32>
    %cst_10 = arith.constant dense<0xFF800000> : vector<256xf32>
    %10 = vector.multi_reduction <maximumf>, %9, %cst_10 [1] : vector<256x256xf32> to vector<256xf32>
    %11 = vector.shape_cast %10 : vector<256xf32> to vector<256x1xf32>
    %12 = vector.broadcast %11 : vector<256x1xf32> to vector<256x256xf32>
    %13 = arith.subf %9, %12 : vector<256x256xf32>
    %14 = math.exp %13 : vector<256x256xf32>
    %cst_11 = arith.constant dense<0.000000e+00> : vector<256xf32>
    %15 = vector.multi_reduction <add>, %14, %cst_11 [1] : vector<256x256xf32> to vector<256xf32>
    %16 = vector.shape_cast %15 : vector<256xf32> to vector<256x1xf32>
    %17 = tpu.reciprocal %16 {approx = true} : vector<256x1xf32> -> vector<256x1xf32>
    %18 = arith.mulf %16, %17 : vector<256x1xf32>
    %cst_12 = arith.constant 2.000000e+00 : f32
    %19 = vector.broadcast %cst_12 : f32 to vector<256x1xf32>
    %20 = arith.subf %19, %18 : vector<256x1xf32>
    %21 = arith.mulf %17, %20 : vector<256x1xf32>
    %22 = vector.broadcast %21 : vector<256x1xf32> to vector<256x256xf32>
    %23 = arith.mulf %14, %22 : vector<256x256xf32>
    %c0_13 = arith.constant 0 : index
    %c0_14 = arith.constant 0 : index
    %c0_15 = arith.constant 0 : index
    %24 = vector.load %arg9[%c0_13, %c0_14, %c0_15] : memref<1x256x256xf32, #tpu.memory_space<vmem>>, vector<1x256x256xf32>
    %25 = vector.shape_cast %24 : vector<1x256x256xf32> to vector<256x256xf32>
    %26 = vector.shape_cast %23 : vector<256x256xf32> to vector<1x256x256xf32>
    tpu.vector_store %arg9[%c0_13, %c0_14, %c0_15], %26 {strides = array<i32>} : memref<1x256x256xf32, #tpu.memory_space<vmem>>, vector<1x256x256xf32>,
    %c0_16 = arith.constant 0 : index
    %c0_17 = arith.constant 0 : index
    %c0_18 = arith.constant 0 : index
    %27 = vector.load %arg6[%c0_16, %c0_17, %c0_18] : memref<1x256x64xf32, #tpu.memory_space<vmem>>, vector<1x256x64xf32>
    %28 = vector.shape_cast %27 : vector<1x256x64xf32> to vector<256x64xf32>
    %cst_19 = arith.constant dense<0.000000e+00> : vector<256x64xf32>
    %29 = tpu.matmul %23, %28, %cst_19 {dimension_numbers = #tpu.dot_dimension_numbers<[1], [0], [0], [1], [0, 0, 1, 1], [], []>} : vector<256x256xf32>, vector<256x64xf32>, vector<256x64xf32> -> vector<256x64xf32>
    %c0_20 = arith.constant 0 : index
    %c0_21 = arith.constant 0 : index
    %30 = memref.load %arg7[%c0_20, %c0_21] : memref<1x1xf32, #tpu.memory_space<smem>>
    %31 = vector.broadcast %30 : f32 to vector<256x64xf32>
    %32 = arith.mulf %31, %29 : vector<256x64xf32>
    %33 = arith.addf %32, %1 : vector<256x64xf32>
    %c0_22 = arith.constant 0 : index
    %c0_23 = arith.constant 0 : index
    %c0_24 = arith.constant 0 : index
    %34 = vector.load %arg8[%c0_22, %c0_23, %c0_24] : memref<1x256x64xf32, #tpu.memory_space<vmem>>, vector<1x256x64xf32>
    %35 = vector.shape_cast %34 : vector<1x256x64xf32> to vector<256x64xf32>
    %36 = vector.shape_cast %33 : vector<256x64xf32> to vector<1x256x64xf32>
    tpu.vector_store %arg8[%c0_22, %c0_23, %c0_24], %36 {strides = array<i32>} : memref<1x256x64xf32, #tpu.memory_space<vmem>>, vector<1x256x64xf32>,
    return
  }
  func.func @transform_0(%arg0: i32, %arg1: i32) -> (i32, i32, i32) {
    %c0_i32 = arith.constant 0 : i32
    %c0_i32_0 = arith.constant 0 : i32
    return %arg0, %arg1, %c0_i32 : i32, i32, i32
  }
  func.func @transform_1(%arg0: i32, %arg1: i32) -> (i32, i32) {
    %c0_i32 = arith.constant 0 : i32
    %c0_i32_0 = arith.constant 0 : i32
    %c0_i32_1 = arith.constant 0 : i32
    return %c0_i32, %c0_i32_0 : i32, i32
  }
  func.func @transform_2(%arg0: i32, %arg1: i32) -> (i32, i32) {
    %c0_i32 = arith.constant 0 : i32
    %c0_i32_0 = arith.constant 0 : i32
    %c0_i32_1 = arith.constant 0 : i32
    return %c0_i32, %c0_i32_0 : i32, i32
  }
  func.func @transform_3(%arg0: i32, %arg1: i32) -> (i32, i32, i32) {
    %c0_i32 = arith.constant 0 : i32
    %c0_i32_0 = arith.constant 0 : i32
    %c0_i32_1 = arith.constant 0 : i32
    return %arg0, %c0_i32, %c0_i32_0 : i32, i32, i32
  }
  func.func @transform_4(%arg0: i32, %arg1: i32) -> (i32, i32, i32) {
    %c0_i32 = arith.constant 0 : i32
    %c0_i32_0 = arith.constant 0 : i32
    %c0_i32_1 = arith.constant 0 : i32
    return %arg0, %c0_i32, %c0_i32_0 : i32, i32, i32
  }
  func.func @transform_5(%arg0: i32, %arg1: i32) -> (i32, i32) {
    %c0_i32 = arith.constant 0 : i32
    %c0_i32_0 = arith.constant 0 : i32
    %c0_i32_1 = arith.constant 0 : i32
    return %c0_i32, %c0_i32_0 : i32, i32
  }
  func.func @transform_6(%arg0: i32, %arg1: i32) -> (i32, i32, i32) {
    %c0_i32 = arith.constant 0 : i32
    %c0_i32_0 = arith.constant 0 : i32
    return %arg0, %arg1, %c0_i32 : i32, i32, i32
  }
  func.func @transform_7(%arg0: i32, %arg1: i32) -> (i32, i32, i32) {
    %c0_i32 = arith.constant 0 : i32
    %c0_i32_0 = arith.constant 0 : i32
    return %arg0, %arg1, %c0_i32 : i32, i32, i32
  }
}

</mosaic_0001>

<llo_original>
// kernel: self_attn_forward.2
$region0: #{self_attn_forward.2}
  #allocation0 [shape = 'u32[]', space=smem, size = 0x4, offset = 0x4, fixed_abs, tag = 'smem constant byte address 0x4 - core index']
  #allocation1 [shape = 'u32[144,128]{1,0:T(1,128)}', space=vmem, size = 0x12000, scoped, tag = 'internal scratch']
  %s0 = inlined_call_operand.hbm [shape: f32[2,256,64], index: 0, kind: input, shape index: {}]
  %s1 = inlined_call_operand.vmem [shape: f32[8,64], index: 1, kind: input, shape index: {}]
  %s2 = inlined_call_operand.vmem [shape: f32[8,1], index: 2, kind: input, shape index: {}]
  %s3 = inlined_call_operand.vmem [shape: f32[64,64], index: 3, kind: input, shape index: {}]
  %s4 = inlined_call_operand.vmem [shape: f32[1,64], index: 4, kind: input, shape index: {}]
  %s5 = inlined_call_operand.vmem [shape: f32[2,8,256], index: 5, kind: output, shape index: {0}]
  %s6 = inlined_call_operand.vmem [shape: f32[2,256,64], index: 6, kind: output, shape index: {1}]
  %7 = xla_tuple %s5, %s6
  %s8 = sld [smem:[#allocation0]]
  $region65: #{self_attn_forward.2} parent=0
    _
  %s10 = ssub.s32 1, %s8
  %s11 = scalar_select 0, %s10, %s8
  $region1: #{self_attn_forward.2} parent=0
    #allocation2 [shape = 'u8[262144]{0}', space=vmem, size = 0x40000, scoped, tag = 'input window, operand 0']
    #allocation3 [shape = 's32[2]{0}', space=sflag, size = 0x8, scoped, tag = 'scoped memory for self_attn_forward.2']
    %12 = vsyncpa [#allocation3], 0
    %s13 = scalar_lea.sflag [#allocation3], 1
    %14 = vsyncpa %s13, 0
    loop: start=0, step=1, limit=4
    $region2: #{self_attn_forward.2} parent=1 // loop_pre_header
      _
    $region3: #{self_attn_forward.2} parent=1 // loop_header
      %s16 = sphi 0, %s20
      %p17 = scmp.ge.s32.totalorder %s16, 4
      %s23 = sphi 0, %s35
      %s24 = sphi 0, %s31
      %s25 = sphi 0, %s23
      %s26 = sphi 0, %s24
      %s27 = sphi 0, %s25
      %s28 = sphi 0, %s26
      %s40 = sphi 0, %s42
      %s43 = sphi 0, %s40
      %s44 = sphi 0, %s43
      %s60 = sphi 0, %s44
      %s64 = sphi 0, %s64
      %s66 = sphi 0, %s64
      %s67 = sphi 0, %s66
      %s81 = sphi 0, %s67
      %s85 = sphi 0, %s85
      %s87 = sphi 0, %s85
      %s88 = sphi 0, %s87
      %s102 = sphi 0, %s88
      %s106 = sphi 0, %s106
      %s108 = sphi 0, %s106
      %s109 = sphi 0, %s108
      %s123 = sphi 0, %s109
      %s127 = sphi 0, %s127
      %s129 = sphi 0, %s127
      %s130 = sphi 0, %s129
      %s144 = sphi 0, %s130
      %s152 = sphi 0, %s154
      %s155 = sphi 0, %s152
      %s156 = sphi 0, %s155
      %s172 = sphi 0, %s156
      %s180 = sphi 0, %s182
      %s183 = sphi 0, %s180
      %s184 = sphi 0, %s183
      %s200 = sphi 0, %s184
    $region4: #{self_attn_forward.2} parent=1 // loop_header_branch
      %19 = sbr.rel (%p17) target = $region8
    $region5: #{self_attn_forward.2} parent=1 // loop_body
      %s21 = ssub.s32 %s16, 1
      %s22 = ssub.s32 %s16, 2
      %s29 = sadd.s32 1, %s24
      %p30 = scmp.ge.s32.totalorder %s29, 1
      %s31 = scalar_select %p30, 0, %s29
      %s32 = sadd.s32 1, %s23
      %s33 = scalar_select %p30, %s32, %s23
      %p34 = scmp.ge.s32.totalorder %s33, 2
      %s35 = scalar_select %p34, 0, %s33
      %s36 = ssub.s32 %s23, %s35
      %s37 = ssub.s32 %s24, %s31
      %s38 = sor.u32 %s36, %s37
      %p39 = scmp.eq.s32.totalorder %s38, 0
      %s41 = sadd.s32 %s40, 1
      %s42 = scalar_select %p39, %s40, %s41
      %p45 = pneg %p39
      %p46 = scmp.eq.s32.totalorder %s16, 1
      %p47 = por %p45, %p46
      %p48 = scmp.ne.s32.totalorder %s40, %s43
      %p49 = scmp.eq.s32.totalorder %s16, 0
      %p50 = por %p48, %p49
      %p51 = scmp.ne.s32.totalorder %s40, %s43
      %p52 = scmp.eq.s32.totalorder %s21, 1
      %p53 = por %p51, %p52
      %p54 = scmp.ne.s32.totalorder %s43, %s44
      %p55 = scmp.eq.s32.totalorder %s21, 0
      %p56 = por %p54, %p55
      %p57 = scmp.ne.s32.totalorder %s43, %s44
      %p58 = scmp.eq.s32.totalorder %s22, 1
      %p59 = por %p57, %p58
      %p61 = scmp.ne.s32.totalorder %s44, %s60
      %p62 = scmp.eq.s32.totalorder %s22, 0
      %p63 = por %p61, %p62
      %s65 = sadd.s32 %s64, 1
      %p68 = scmp.eq.s32.totalorder %s16, 1
      %p69 = scmp.ne.s32.totalorder %s64, %s66
      %p70 = scmp.eq.s32.totalorder %s16, 0
      %p71 = por %p69, %p70
      %p72 = scmp.ne.s32.totalorder %s64, %s66
      %p73 = scmp.eq.s32.totalorder %s21, 1
      %p74 = por %p72, %p73
      %p75 = scmp.ne.s32.totalorder %s66, %s67
      %p76 = scmp.eq.s32.totalorder %s21, 0
      %p77 = por %p75, %p76
      %p78 = scmp.ne.s32.totalorder %s66, %s67
      %p79 = scmp.eq.s32.totalorder %s22, 1
      %p80 = por %p78, %p79
      %p82 = scmp.ne.s32.totalorder %s67, %s81
      %p83 = scmp.eq.s32.totalorder %s22, 0
      %p84 = por %p82, %p83
      %s86 = sadd.s32 %s85, 1
      %p89 = scmp.eq.s32.totalorder %s16, 1
      %p90 = scmp.ne.s32.totalorder %s85, %s87
      %p91 = scmp.eq.s32.totalorder %s16, 0
      %p92 = por %p90, %p91
      %p93 = scmp.ne.s32.totalorder %s85, %s87
      %p94 = scmp.eq.s32.totalorder %s21, 1
      %p95 = por %p93, %p94
      %p96 = scmp.ne.s32.totalorder %s87, %s88
      %p97 = scmp.eq.s32.totalorder %s21, 0
      %p98 = por %p96, %p97
      %p99 = scmp.ne.s32.totalorder %s87, %s88
      %p100 = scmp.eq.s32.totalorder %s22, 1
      %p101 = por %p99, %p100
      %p103 = scmp.ne.s32.totalorder %s88, %s102
      %p104 = scmp.eq.s32.totalorder %s22, 0
      %p105 = por %p103, %p104
      %s107 = sadd.s32 %s106, 1
      %p110 = scmp.eq.s32.totalorder %s16, 1
      %p111 = scmp.ne.s32.totalorder %s106, %s108
      %p112 = scmp.eq.s32.totalorder %s16, 0
      %p113 = por %p111, %p112
      %p114 = scmp.ne.s32.totalorder %s106, %s108
      %p115 = scmp.eq.s32.totalorder %s21, 1
      %p116 = por %p114, %p115
      %p117 = scmp.ne.s32.totalorder %s108, %s109
      %p118 = scmp.eq.s32.totalorder %s21, 0
      %p119 = por %p117, %p118
      %p120 = scmp.ne.s32.totalorder %s108, %s109
      %p121 = scmp.eq.s32.totalorder %s22, 1
      %p122 = por %p120, %p121
      %p124 = scmp.ne.s32.totalorder %s109, %s123
      %p125 = scmp.eq.s32.totalorder %s22, 0
      %p126 = por %p124, %p125
      %s128 = sadd.s32 %s127, 1
      %p131 = scmp.eq.s32.totalorder %s16, 1
      %p132 = scmp.ne.s32.totalorder %s127, %s129
      %p133 = scmp.eq.s32.totalorder %s16, 0
      %p134 = por %p132, %p133
      %p135 = scmp.ne.s32.totalorder %s127, %s129
      %p136 = scmp.eq.s32.totalorder %s21, 1
      %p137 = por %p135, %p136
      %p138 = scmp.ne.s32.totalorder %s129, %s130
      %p139 = scmp.eq.s32.totalorder %s21, 0
      %p140 = por %p138, %p139
      %p141 = scmp.ne.s32.totalorder %s129, %s130
      %p142 = scmp.eq.s32.totalorder %s22, 1
      %p143 = por %p141, %p142
      %p145 = scmp.ne.s32.totalorder %s130, %s144
      %p146 = scmp.eq.s32.totalorder %s22, 0
      %p147 = por %p145, %p146
      %s148 = ssub.s32 %s23, %s35
      %s149 = ssub.s32 %s24, %s31
      %s150 = sor.u32 %s148, %s149
      %p151 = scmp.eq.s32.totalorder %s150, 0
      %s153 = sadd.s32 %s152, 1
      %s154 = scalar_select %p151, %s152, %s153
      %p157 = pneg %p151
      %p158 = scmp.eq.s32.totalorder %s16, 1
      %p159 = por %p157, %p158
      %p160 = scmp.ne.s32.totalorder %s152, %s155
      %p161 = scmp.eq.s32.totalorder %s16, 0
      %p162 = por %p160, %p161
      %p163 = scmp.ne.s32.totalorder %s152, %s155
      %p164 = scmp.eq.s32.totalorder %s21, 1
      %p165 = por %p163, %p164
      %p166 = scmp.ne.s32.totalorder %s155, %s156
      %p167 = scmp.eq.s32.totalorder %s21, 0
      %p168 = por %p166, %p167
      %p169 = scmp.ne.s32.totalorder %s155, %s156
      %p170 = scmp.eq.s32.totalorder %s22, 1
      %p171 = por %p169, %p170
      %p173 = scmp.ne.s32.totalorder %s156, %s172
      %p174 = scmp.eq.s32.totalorder %s22, 0
      %p175 = por %p173, %p174
      %s176 = ssub.s32 %s23, %s35
      %s177 = ssub.s32 %s24, %s31
      %s178 = sor.u32 %s176, %s177
      %p179 = scmp.eq.s32.totalorder %s178, 0
      %s181 = sadd.s32 %s180, 1
      %s182 = scalar_select %p179, %s180, %s181
      %p185 = pneg %p179
      %p186 = scmp.eq.s32.totalorder %s16, 1
      %p187 = por %p185, %p186
      %p188 = scmp.ne.s32.totalorder %s180, %s183
      %p189 = scmp.eq.s32.totalorder %s16, 0
      %p190 = por %p188, %p189
      %p191 = scmp.ne.s32.totalorder %s180, %s183
      %p192 = scmp.eq.s32.totalorder %s21, 1
      %p193 = por %p191, %p192
      %p194 = scmp.ne.s32.totalorder %s183, %s184
      %p195 = scmp.eq.s32.totalorder %s21, 0
      %p196 = por %p194, %p195
      %p197 = scmp.ne.s32.totalorder %s183, %s184
      %p198 = scmp.eq.s32.totalorder %s22, 1
      %p199 = por %p197, %p198
      %p201 = scmp.ne.s32.totalorder %s184, %s200
      %p202 = scmp.eq.s32.totalorder %s22, 0
      %p203 = por %p201, %p202
      %p204 = scmp.le.s32.totalorder 1, %s16
      %p205 = scmp.lt.s32.totalorder %s16, 3
      %p206 = pnand %p204, %p205
      %p207 = pneg %p206
      // Predicated region
      $region9: #{self_attn_forward.2} parent=5 // pred_check
        _
      $region10: #{self_attn_forward.2} parent=5 // pred_check_branch
        %209 = sbr.rel (%p206) target = $region12
      $region11: #{self_attn_forward.2} parent=5 // pred_region
        %s210 = ssub.s32 %s16, 1
        // Predicated region
        $region13: #{self_attn_forward.2} parent=11 // pred_check
          %p211 = pneg %p77
        $region14: #{self_attn_forward.2} parent=11 // pred_check_branch
          %213 = sbr.rel (%p211) target = $region16
        $region15: #{self_attn_forward.2} parent=11 // pred_region
          _
        $region16: #{self_attn_forward.2} parent=11 // pred_fallthru
          _
        // Predicated region
        $region17: #{self_attn_forward.2} parent=11 // pred_check
          %p214 = pneg %p98
        $region18: #{self_attn_forward.2} parent=11 // pred_check_branch
          %216 = sbr.rel (%p214) target = $region20
        $region19: #{self_attn_forward.2} parent=11 // pred_region
          _
        $region20: #{self_attn_forward.2} parent=11 // pred_fallthru
          _
        // Predicated region
        $region21: #{self_attn_forward.2} parent=11 // pred_check
          %p217 = pneg %p119
        $region22: #{self_attn_forward.2} parent=11 // pred_check_branch
          %219 = sbr.rel (%p217) target = $region24
        $region23: #{self_attn_forward.2} parent=11 // pred_region
          _
        $region24: #{self_attn_forward.2} parent=11 // pred_fallthru
          _
        // Predicated region
        $region25: #{self_attn_forward.2} parent=11 // pred_check
          %p220 = pneg %p140
        $region26: #{self_attn_forward.2} parent=11 // pred_check_branch
          %222 = sbr.rel (%p220) target = $region28
        $region27: #{self_attn_forward.2} parent=11 // pred_region
          _
        $region28: #{self_attn_forward.2} parent=11 // pred_fallthru
          _
      $region12: #{self_attn_forward.2} parent=5 // pred_fallthru
        _
      %p223 = scmp.lt.s32.totalorder %s16, 2
      // Predicated region
      $region29: #{self_attn_forward.2} parent=5 // pred_check
        %p224 = pneg %p223
      $region30: #{self_attn_forward.2} parent=5 // pred_check_branch
        %226 = sbr.rel (%p224) target = $region32
      $region31: #{self_attn_forward.2} parent=5 // pred_region
        // Predicated region
        $region33: #{self_attn_forward.2} parent=31 // pred_check
          %p227 = pneg %p50
        $region34: #{self_attn_forward.2} parent=31 // pred_check_branch
          %229 = sbr.rel (%p227) target = $region36
        $region35: #{self_attn_forward.2} parent=31 // pred_region
          %s230 = sand.u32 %s40, 1
          %s231 = scalar_lea.sflag [#allocation3], %s230
          %s232 = sand.u32 %s40, 1
          %s233 = smul.addr %s232, 256
          %s234 = scalar_lea.vmem [#allocation2], %s233
          %s235 = smul.u32 32, %s24
          %s237 = ssub.s32 4096, 4096
          %238 = vsyncadd %s231, %s237
          %s239 = smul.addr %s23, 32
          %s240 = sadd.s32 %s235, %s239
          %s241 = smul.addr %s240, 128
          %s242 = scalar_lea.hbm %s0, %s241
          %s243 = sshll.u32 %s234, 4
          %s244 = int_to_ptr.vmem [resolvable:$true] %s243
          %249 = dma.hbm_to_vmem [thread:$0]  %s242, 4096, %s244, %s231, 128, 128, 8
        $region36: #{self_attn_forward.2} parent=31 // pred_fallthru
          _
      $region32: #{self_attn_forward.2} parent=5 // pred_fallthru
        _
      %p250 = scmp.le.s32.totalorder 1, %s16
      %p251 = scmp.lt.s32.totalorder %s16, 3
      %p252 = pnand %p250, %p251
      %p253 = pneg %p252
      // Predicated region
      $region37: #{self_attn_forward.2} parent=5 // pred_check
        _
      $region38: #{self_attn_forward.2} parent=5 // pred_check_branch
        %255 = sbr.rel (%p252) target = $region40
      $region39: #{self_attn_forward.2} parent=5 // pred_region
        %s256 = ssub.s32 %s16, 1
        %s257 = sand.u32 %s43, 1
        %s258 = scalar_lea.sflag [#allocation3], %s257
        %s259 = sand.u32 %s43, 1
        %s260 = smul.addr %s259, 256
        %s261 = scalar_lea.vmem [#allocation2], %s260
        // Predicated region
        $region41: #{self_attn_forward.2} parent=39 // pred_check
          %p262 = pneg %p56
        $region42: #{self_attn_forward.2} parent=39 // pred_check_branch
          %264 = sbr.rel (%p262) target = $region44
        $region43: #{self_attn_forward.2} parent=39 // pred_region
          %265 = dma.done %s258, 4096
        $region44: #{self_attn_forward.2} parent=39 // pred_fallthru
          _
        %s266 = sand.u32 %s43, 1
        %s267 = scalar_lea.sflag [#allocation3], %s266
        %s268 = sand.u32 %s43, 1
        %s269 = smul.addr %s268, 256
        %s270 = scalar_lea.vmem [#allocation2], %s269
        %p271 = pneg %p56
        %p272 = pneg %p53
        %p273 = pneg %p77
        %p274 = pneg %p74
        %p275 = pneg %p98
        %p276 = pneg %p95
        %p277 = pneg %p119
        %p278 = pneg %p116
        %p279 = pneg %p140
        %p280 = pneg %p137
        %p281 = pneg %p168
        %p282 = pneg %p165
        %s283 = smul.u32 2, %s26
        %p284 = scmp.lt.s32.totalorder %s25, 1
        %s285 = scalar_select %p284, %s25, 1
        %p286 = scmp.lt.s32.totalorder %s283, 1
        %s287 = scalar_select %p286, %s283, 1
        %s288 = smul.addr %s285, 2
        %s289 = sadd.s32 %s287, %s288
        %s290 = smul.addr %s289, 8
        %s291 = scalar_lea.vmem %s5, %s290
        %p292 = pneg %p196
        %p293 = pneg %p193
        %s294 = smul.u32 32, %s26
        %p295 = scmp.lt.s32.totalorder %s25, 1
        %s296 = scalar_select %p295, %s25, 1
        %p297 = scmp.lt.s32.totalorder %s294, 31
        %s298 = scalar_select %p297, %s294, 31
        %s299 = smul.addr %s296, 32
        %s300 = sadd.s32 %s298, %s299
        %s301 = smul.addr %s300, 8
        %s302 = scalar_lea.vmem %s6, %s301
        %s303 = smul.u32 32, %s26
        %s304 = smul.u32 2, %s26
        %p305 = scmp.lt.s32.totalorder %s25, 1
        %s306 = scalar_select %p305, %s25, 1
        %p307 = scmp.lt.s32.totalorder %s304, 1
        %s308 = scalar_select %p307, %s304, 1
        %s309 = smul.addr %s306, 2
        %s310 = sadd.s32 %s308, %s309
        %s311 = smul.addr %s310, 8
        %s312 = scalar_lea.vmem %s5, %s311
        %s313 = smul.u32 2, %s26
        %s314 = smul.u32 32, %s26
        %p315 = scmp.lt.s32.totalorder %s25, 1
        %s316 = scalar_select %p315, %s25, 1
        %p317 = scmp.lt.s32.totalorder %s314, 31
        %s318 = scalar_select %p317, %s314, 31
        %s319 = smul.addr %s316, 32
        %s320 = sadd.s32 %s318, %s319
        %s321 = smul.addr %s320, 8
        %s322 = scalar_lea.vmem %s6, %s321
        %s323 = smul.u32 32, %s26
        %v324 = vld [vmem:[%s261] sm:$0xff]
        %v325 = vld [vmem:[%s261 + $0x8] sm:$0xff]
        %v326 = vld [vmem:[%s261 + $0x10] sm:$0xff]
        %v327 = vld [vmem:[%s261 + $0x18] sm:$0xff]
        %v328 = vld [vmem:[%s261 + $0x20] sm:$0xff]
        %v329 = vld [vmem:[%s261 + $0x28] sm:$0xff]
        %v330 = vld [vmem:[%s261 + $0x30] sm:$0xff]
        %v331 = vld [vmem:[%s261 + $0x38] sm:$0xff]
        %v332 = vld [vmem:[%s261 + $0x40] sm:$0xff]
        %v333 = vld [vmem:[%s261 + $0x48] sm:$0xff]
        %v334 = vld [vmem:[%s261 + $0x50] sm:$0xff]
        %v335 = vld [vmem:[%s261 + $0x58] sm:$0xff]
        %v336 = vld [vmem:[%s261 + $0x60] sm:$0xff]
        %v337 = vld [vmem:[%s261 + $0x68] sm:$0xff]
        %v338 = vld [vmem:[%s261 + $0x70] sm:$0xff]
        %v339 = vld [vmem:[%s261 + $0x78] sm:$0xff]
        %v340 = vld [vmem:[%s261 + $0x80] sm:$0xff]
        %v341 = vld [vmem:[%s261 + $0x88] sm:$0xff]
        %v342 = vld [vmem:[%s261 + $0x90] sm:$0xff]
        %v343 = vld [vmem:[%s261 + $0x98] sm:$0xff]
        %v344 = vld [vmem:[%s261 + $0xa0] sm:$0xff]
        %v345 = vld [vmem:[%s261 + $0xa8] sm:$0xff]
        %v346 = vld [vmem:[%s261 + $0xb0] sm:$0xff]
        %v347 = vld [vmem:[%s261 + $0xb8] sm:$0xff]
        %v348 = vld [vmem:[%s261 + $0xc0] sm:$0xff]
        %v349 = vld [vmem:[%s261 + $0xc8] sm:$0xff]
        %v350 = vld [vmem:[%s261 + $0xd0] sm:$0xff]
        %v351 = vld [vmem:[%s261 + $0xd8] sm:$0xff]
        %v352 = vld [vmem:[%s261 + $0xe0] sm:$0xff]
        %v353 = vld [vmem:[%s261 + $0xe8] sm:$0xff]
        %v354 = vld [vmem:[%s261 + $0xf0] sm:$0xff]
        %v355 = vld [vmem:[%s261 + $0xf8] sm:$0xff]
        %v356 = vld [vmem:[%s1] sm:$0xff]
        %v357 = vld [vmem:[%s2] sm:$0xff]
        %359 = vset.pattern.permute.xlu0 0
        %360 = vperm.xlu0 %359, %v357
        %v361 = vpop.permute.xlu0 %360
        %vm363 = vcmask 523264
        %v365 = vsel %vm363, %v356, 0
        %v368 = vsel %vm363, %v324, 0
        %v371 = vsel %vm363, %v325, 0
        %v374 = vsel %vm363, %v326, 0
        %v377 = vsel %vm363, %v327, 0
        %v380 = vsel %vm363, %v328, 0
        %v383 = vsel %vm363, %v329, 0
        %v386 = vsel %vm363, %v330, 0
        %v389 = vsel %vm363, %v331, 0
        %v392 = vsel %vm363, %v332, 0
        %v395 = vsel %vm363, %v333, 0
        %v398 = vsel %vm363, %v334, 0
        %v401 = vsel %vm363, %v335, 0
        %v404 = vsel %vm363, %v336, 0
        %v407 = vsel %vm363, %v337, 0
        %v410 = vsel %vm363, %v338, 0
        %v413 = vsel %vm363, %v339, 0
        %v416 = vsel %vm363, %v340, 0
        %v419 = vsel %vm363, %v341, 0
        %v422 = vsel %vm363, %v342, 0
        %v425 = vsel %vm363, %v343, 0
        %v428 = vsel %vm363, %v344, 0
        %v431 = vsel %vm363, %v345, 0
        %v434 = vsel %vm363, %v346, 0
        %v437 = vsel %vm363, %v347, 0
        %v440 = vsel %vm363, %v348, 0
        %v443 = vsel %vm363, %v349, 0
        %v446 = vsel %vm363, %v350, 0
        %v449 = vsel %vm363, %v351, 0
        %v452 = vsel %vm363, %v352, 0
        %v455 = vsel %vm363, %v353, 0
        %v458 = vsel %vm363, %v354, 0
        %v461 = vsel %vm363, %v355, 0
        %463 = vmatprep.subr.mxu0 0.0
        %464 = vmatpush1.xpose.msra.mxu0 %v368
        %465 = vmatprep.subr.mxu0 0.0
        %466 = vmatpush1.xpose.msra.mxu0 %v371
        %467 = vmatprep.subr.mxu0 0.0
        %468 = vmatpush1.xpose.msra.mxu0 %v374
        %469 = vmatprep.subr.mxu0 0.0
        %470 = vmatpush1.xpose.msra.mxu0 %v377
        %471 = vmatprep.subr.mxu0 0.0
        %472 = vmatpush1.xpose.msra.mxu0 %v380
        %473 = vmatprep.subr.mxu0 0.0
        %474 = vmatpush1.xpose.msra.mxu0 %v383
        %475 = vmatprep.subr.mxu0 0.0
        %476 = vmatpush1.xpose.msra.mxu0 %v386
        %477 = vmatprep.subr.mxu0 0.0
        %478 = vmatpush1.xpose.msra.mxu0 %v389
        %479 = vmatprep.subr.mxu0 0.0
        %480 = vmatpush1.xpose.msra.mxu0 %v392
        %481 = vmatprep.subr.mxu0 0.0
        %482 = vmatpush1.xpose.msra.mxu0 %v395
        %483 = vmatprep.subr.mxu0 0.0
        %484 = vmatpush1.xpose.msra.mxu0 %v398
        %485 = vmatprep.subr.mxu0 0.0
        %486 = vmatpush1.xpose.msra.mxu0 %v401
        %487 = vmatprep.subr.mxu0 0.0
        %488 = vmatpush1.xpose.msra.mxu0 %v404
        %489 = vmatprep.subr.mxu0 0.0
        %490 = vmatpush1.xpose.msra.mxu0 %v407
        %491 = vmatprep.subr.mxu0 0.0
        %492 = vmatpush1.xpose.msra.mxu0 %v410
        %493 = vmatprep.subr.mxu0 0.0
        %494 = vmatpush1.xpose.msra.mxu0 %v413
        %495 = vmatprep.subr.mxu0 0.0
        %496 = vmatpush1.xpose.msra.mxu0 %v416
        %497 = vmatprep.subr.mxu0 0.0
        %498 = vmatpush1.xpose.msra.mxu0 %v419
        %499 = vmatprep.subr.mxu0 0.0
        %500 = vmatpush1.xpose.msra.mxu0 %v422
        %501 = vmatprep.subr.mxu0 0.0
        %502 = vmatpush1.xpose.msra.mxu0 %v425
        %503 = vmatprep.subr.mxu0 0.0
        %504 = vmatpush1.xpose.msra.mxu0 %v428
        %505 = vmatprep.subr.mxu0 0.0
        %506 = vmatpush1.xpose.msra.mxu0 %v431
        %507 = vmatprep.subr.mxu0 0.0
        %508 = vmatpush1.xpose.msra.mxu0 %v434
        %509 = vmatprep.subr.mxu0 0.0
        %510 = vmatpush1.xpose.msra.mxu0 %v437
        %511 = vmatprep.subr.mxu0 0.0
        %512 = vmatpush1.xpose.msra.mxu0 %v440
        %513 = vmatprep.subr.mxu0 0.0
        %514 = vmatpush1.xpose.msra.mxu0 %v443
        %515 = vmatprep.subr.mxu0 0.0
        %516 = vmatpush1.xpose.msra.mxu0 %v446
        %517 = vmatprep.subr.mxu0 0.0
        %518 = vmatpush1.xpose.msra.mxu0 %v449
        %519 = vmatprep.subr.mxu0 0.0
        %520 = vmatpush1.xpose.msra.mxu0 %v452
        %521 = vmatprep.subr.mxu0 0.0
        %522 = vmatpush1.xpose.msra.mxu0 %v455
        %523 = vmatprep.subr.mxu0 0.0
        %524 = vmatpush1.xpose.msra.mxu0 %v458
        %525 = vmatprep.subr.mxu0 0.0
        %526 = vmatpush1.xpose.msra.mxu0 %v461
        %527 = vmatprep.mubr.f32.mxu0 0.0
        %528 = vmatmul.mubr.f32.gmra.mrb[0].mxu0 %v365
        %v529 = vpop.f32.mrb[0].mxu0
        %v530 = vadd.f32 %v361, %v529
        %v531 = vpop.f32.mrb[0].mxu0
        %v532 = vadd.f32 %v361, %v531
        %533 = vdwg.mxu0
        %534 = vst [vmem:[%s312] sm:$0xff] %v530
        %535 = vst [vmem:[%s312 + $0x8] sm:$0xff] %v532
        %v536 = vld [vmem:[%s3] sm:$0xff]
        %v537 = vld [vmem:[%s3 + $0x8] sm:$0xff]
        %v538 = vld [vmem:[%s3 + $0x10] sm:$0xff]
        %v539 = vld [vmem:[%s3 + $0x18] sm:$0xff]
        %v540 = vld [vmem:[%s3 + $0x20] sm:$0xff]
        %v541 = vld [vmem:[%s3 + $0x28] sm:$0xff]
        %v542 = vld [vmem:[%s3 + $0x30] sm:$0xff]
        %v543 = vld [vmem:[%s3 + $0x38] sm:$0xff]
        %v544 = vld [vmem:[%s4] sm:$0x1]
        %v546 = vlaneseq
        %v547 = vshrl.u32 %v546, 7
        %v548 = vsub.s32 0, %v547
        %v549 = vrot.slane %v544, %v548
        %551 = vmatprep.subr.mxu0 0.0
        %552 = vmatpush1.msra.mxu0 %v536
        %553 = vmatprep.subr.mxu0 0.0
        %554 = vmatpush1.msra.mxu0 %v537
        %555 = vmatprep.subr.mxu0 0.0
        %556 = vmatpush1.msra.mxu0 %v538
        %557 = vmatprep.subr.mxu0 0.0
        %558 = vmatpush1.msra.mxu0 %v539
        %559 = vmatprep.subr.mxu0 0.0
        %560 = vmatpush1.msra.mxu0 %v540
        %561 = vmatprep.subr.mxu0 0.0
        %562 = vmatpush1.msra.mxu0 %v541
        %563 = vmatprep.subr.mxu0 0.0
        %564 = vmatpush1.msra.mxu0 %v542
        %565 = vmatprep.subr.mxu0 0.0
        %566 = vmatpush1.msra.mxu0 %v543
        %567 = vmatprep.subr.mxu0 0.0
        %568 = vmatpush1.msra.mxu0 0.0
        %569 = vmatprep.subr.mxu0 0.0
        %570 = vmatpush1.msra.mxu0 0.0
        %571 = vmatprep.subr.mxu0 0.0
        %572 = vmatpush1.msra.mxu0 0.0
        %573 = vmatprep.subr.mxu0 0.0
        %574 = vmatpush1.msra.mxu0 0.0
        %575 = vmatprep.subr.mxu0 0.0
        %576 = vmatpush1.msra.mxu0 0.0
        %577 = vmatprep.subr.mxu0 0.0
        %578 = vmatpush1.msra.mxu0 0.0
        %579 = vmatprep.subr.mxu0 0.0
        %580 = vmatpush1.msra.mxu0 0.0
        %581 = vmatprep.subr.mxu0 0.0
        %582 = vmatpush1.msra.mxu0 0.0
        %583 = vmatprep.subr.mxu0 0.0
        %584 = vmatpush1.msra.mxu0 0.0
        %585 = vmatprep.subr.mxu0 0.0
        %586 = vmatpush1.msra.mxu0 0.0
        %587 = vmatprep.subr.mxu0 0.0
        %588 = vmatpush1.msra.mxu0 0.0
        %589 = vmatprep.subr.mxu0 0.0
        %590 = vmatpush1.msra.mxu0 0.0
        %591 = vmatprep.subr.mxu0 0.0
        %592 = vmatpush1.msra.mxu0 0.0
        %593 = vmatprep.subr.mxu0 0.0
        %594 = vmatpush1.msra.mxu0 0.0
        %595 = vmatprep.subr.mxu0 0.0
        %596 = vmatpush1.msra.mxu0 0.0
        %597 = vmatprep.subr.mxu0 0.0
        %598 = vmatpush1.msra.mxu0 0.0
        %599 = vmatprep.subr.mxu0 0.0
        %600 = vmatpush1.msra.mxu0 0.0
        %601 = vmatprep.subr.mxu0 0.0
        %602 = vmatpush1.msra.mxu0 0.0
        %603 = vmatprep.subr.mxu0 0.0
        %604 = vmatpush1.msra.mxu0 0.0
        %605 = vmatprep.subr.mxu0 0.0
        %606 = vmatpush1.msra.mxu0 0.0
        %607 = vmatprep.subr.mxu0 0.0
        %608 = vmatpush1.msra.mxu0 0.0
        %609 = vmatprep.subr.mxu0 0.0
        %610 = vmatpush1.msra.mxu0 0.0
        %611 = vmatprep.subr.mxu0 0.0
        %612 = vmatpush1.msra.mxu0 0.0
        %613 = vmatprep.subr.mxu0 0.0
        %614 = vmatpush1.msra.mxu0 0.0
        %615 = vmatprep.mubr.f32.mxu0 0.0
        %616 = vmatmul.mubr.f32.gmra.mrb[0].mxu0 %v368
        %v617 = vpop.f32.mrb[0].mxu0
        %v618 = vadd.f32 %v549, %v617
        %v619 = vpop.f32.mrb[0].mxu0
        %620 = vmatprep.mubr.f32.mxu0 0.0
        %621 = vmatmul.mubr.f32.gmra.mrb[0].mxu0 %v371
        %v622 = vpop.f32.mrb[0].mxu0
        %v623 = vadd.f32 %v549, %v622
        %v624 = vpop.f32.mrb[0].mxu0
        %625 = vmatprep.mubr.f32.mxu0 0.0
        %626 = vmatmul.mubr.f32.gmra.mrb[0].mxu0 %v374
        %v627 = vpop.f32.mrb[0].mxu0
        %v628 = vadd.f32 %v549, %v627
        %v629 = vpop.f32.mrb[0].mxu0
        %630 = vmatprep.mubr.f32.mxu0 0.0
        %631 = vmatmul.mubr.f32.gmra.mrb[0].mxu0 %v377
        %v632 = vpop.f32.mrb[0].mxu0
        %v633 = vadd.f32 %v549, %v632
        %v634 = vpop.f32.mrb[0].mxu0
        %635 = vmatprep.mubr.f32.mxu0 0.0
        %636 = vmatmul.mubr.f32.gmra.mrb[0].mxu0 %v380
        %v637 = vpop.f32.mrb[0].mxu0
        %v638 = vadd.f32 %v549, %v637
        %v639 = vpop.f32.mrb[0].mxu0
        %640 = vmatprep.mubr.f32.mxu0 0.0
        %641 = vmatmul.mubr.f32.gmra.mrb[0].mxu0 %v383
        %v642 = vpop.f32.mrb[0].mxu0
        %v643 = vadd.f32 %v549, %v642
        %v644 = vpop.f32.mrb[0].mxu0
        %645 = vmatprep.mubr.f32.mxu0 0.0
        %646 = vmatmul.mubr.f32.gmra.mrb[0].mxu0 %v386
        %v647 = vpop.f32.mrb[0].mxu0
        %v648 = vadd.f32 %v549, %v647
        %v649 = vpop.f32.mrb[0].mxu0
        %650 = vmatprep.mubr.f32.mxu0 0.0
        %651 = vmatmul.mubr.f32.gmra.mrb[0].mxu0 %v389
        %v652 = vpop.f32.mrb[0].mxu0
        %v653 = vadd.f32 %v549, %v652
        %v654 = vpop.f32.mrb[0].mxu0
        %655 = vmatprep.mubr.f32.mxu0 0.0
        %656 = vmatmul.mubr.f32.gmra.mrb[0].mxu0 %v392
        %v657 = vpop.f32.mrb[0].mxu0
        %v658 = vadd.f32 %v549, %v657
        %v659 = vpop.f32.mrb[0].mxu0
        %660 = vmatprep.mubr.f32.mxu0 0.0
        %661 = vmatmul.mubr.f32.gmra.mrb[0].mxu0 %v395
        %v662 = vpop.f32.mrb[0].mxu0
        %v663 = vadd.f32 %v549, %v662
        %v664 = vpop.f32.mrb[0].mxu0
        %665 = vmatprep.mubr.f32.mxu0 0.0
        %666 = vmatmul.mubr.f32.gmra.mrb[0].mxu0 %v398
        %v667 = vpop.f32.mrb[0].mxu0
        %v668 = vadd.f32 %v549, %v667
        %v669 = vpop.f32.mrb[0].mxu0
        %670 = vmatprep.mubr.f32.mxu0 0.0
        %671 = vmatmul.mubr.f32.gmra.mrb[0].mxu0 %v401
        %v672 = vpop.f32.mrb[0].mxu0
        %v673 = vadd.f32 %v549, %v672
        %v674 = vpop.f32.mrb[0].mxu0
        %675 = vmatprep.mubr.f32.mxu0 0.0
        %676 = vmatmul.mubr.f32.gmra.mrb[0].mxu0 %v404
        %v677 = vpop.f32.mrb[0].mxu0
        %v678 = vadd.f32 %v549, %v677
        %v679 = vpop.f32.mrb[0].mxu0
        %680 = vmatprep.mubr.f32.mxu0 0.0
        %681 = vmatmul.mubr.f32.gmra.mrb[0].mxu0 %v407
        %v682 = vpop.f32.mrb[0].mxu0
        %v683 = vadd.f32 %v549, %v682
        %v684 = vpop.f32.mrb[0].mxu0
        %685 = vmatprep.mubr.f32.mxu0 0.0
        %686 = vmatmul.mubr.f32.gmra.mrb[0].mxu0 %v410
        %v687 = vpop.f32.mrb[0].mxu0
        %v688 = vadd.f32 %v549, %v687
        %v689 = vpop.f32.mrb[0].mxu0
        %690 = vmatprep.mubr.f32.mxu0 0.0
        %691 = vmatmul.mubr.f32.gmra.mrb[0].mxu0 %v413
        %v692 = vpop.f32.mrb[0].mxu0
        %v693 = vadd.f32 %v549, %v692
        %v694 = vpop.f32.mrb[0].mxu0
        %695 = vmatprep.mubr.f32.mxu0 0.0
        %696 = vmatmul.mubr.f32.gmra.mrb[0].mxu0 %v416
        %v697 = vpop.f32.mrb[0].mxu0
        %v698 = vadd.f32 %v549, %v697
        %v699 = vpop.f32.mrb[0].mxu0
        %700 = vmatprep.mubr.f32.mxu0 0.0
        %701 = vmatmul.mubr.f32.gmra.mrb[0].mxu0 %v419
        %v702 = vpop.f32.mrb[0].mxu0
        %v703 = vadd.f32 %v549, %v702
        %v704 = vpop.f32.mrb[0].mxu0
        %705 = vmatprep.mubr.f32.mxu0 0.0
        %706 = vmatmul.mubr.f32.gmra.mrb[0].mxu0 %v422
        %v707 = vpop.f32.mrb[0].mxu0
        %v708 = vadd.f32 %v549, %v707
        %v709 = vpop.f32.mrb[0].mxu0
        %710 = vmatprep.mubr.f32.mxu0 0.0
        %711 = vmatmul.mubr.f32.gmra.mrb[0].mxu0 %v425
        %v712 = vpop.f32.mrb[0].mxu0
        %v713 = vadd.f32 %v549, %v712
        %v714 = vpop.f32.mrb[0].mxu0
        %715 = vmatprep.mubr.f32.mxu0 0.0
        %716 = vmatmul.mubr.f32.gmra.mrb[0].mxu0 %v428
        %v717 = vpop.f32.mrb[0].mxu0
        %v718 = vadd.f32 %v549, %v717
        %v719 = vpop.f32.mrb[0].mxu0
        %720 = vmatprep.mubr.f32.mxu0 0.0
        %721 = vmatmul.mubr.f32.gmra.mrb[0].mxu0 %v431
        %v722 = vpop.f32.mrb[0].mxu0
        %v723 = vadd.f32 %v549, %v722
        %v724 = vpop.f32.mrb[0].mxu0
        %725 = vmatprep.mubr.f32.mxu0 0.0
        %726 = vmatmul.mubr.f32.gmra.mrb[0].mxu0 %v434
        %v727 = vpop.f32.mrb[0].mxu0
        %v728 = vadd.f32 %v549, %v727
        %v729 = vpop.f32.mrb[0].mxu0
        %730 = vmatprep.mubr.f32.mxu0 0.0
        %731 = vmatmul.mubr.f32.gmra.mrb[0].mxu0 %v437
        %v732 = vpop.f32.mrb[0].mxu0
        %v733 = vadd.f32 %v549, %v732
        %v734 = vpop.f32.mrb[0].mxu0
        %735 = vmatprep.mubr.f32.mxu0 0.0
        %736 = vmatmul.mubr.f32.gmra.mrb[0].mxu0 %v440
        %v737 = vpop.f32.mrb[0].mxu0
        %v738 = vadd.f32 %v549, %v737
        %v739 = vpop.f32.mrb[0].mxu0
        %740 = vmatprep.mubr.f32.mxu0 0.0
        %741 = vmatmul.mubr.f32.gmra.mrb[0].mxu0 %v443
        %v742 = vpop.f32.mrb[0].mxu0
        %v743 = vadd.f32 %v549, %v742
        %v744 = vpop.f32.mrb[0].mxu0
        %745 = vmatprep.mubr.f32.mxu0 0.0
        %746 = vmatmul.mubr.f32.gmra.mrb[0].mxu0 %v446
        %v747 = vpop.f32.mrb[0].mxu0
        %v748 = vadd.f32 %v549, %v747
        %v749 = vpop.f32.mrb[0].mxu0
        %750 = vmatprep.mubr.f32.mxu0 0.0
        %751 = vmatmul.mubr.f32.gmra.mrb[0].mxu0 %v449
        %v752 = vpop.f32.mrb[0].mxu0
        %v753 = vadd.f32 %v549, %v752
        %v754 = vpop.f32.mrb[0].mxu0
        %755 = vmatprep.mubr.f32.mxu0 0.0
        %756 = vmatmul.mubr.f32.gmra.mrb[0].mxu0 %v452
        %v757 = vpop.f32.mrb[0].mxu0
        %v758 = vadd.f32 %v549, %v757
        %v759 = vpop.f32.mrb[0].mxu0
        %760 = vmatprep.mubr.f32.mxu0 0.0
        %761 = vmatmul.mubr.f32.gmra.mrb[0].mxu0 %v455
        %v762 = vpop.f32.mrb[0].mxu0
        %v763 = vadd.f32 %v549, %v762
        %v764 = vpop.f32.mrb[0].mxu0
        %765 = vmatprep.mubr.f32.mxu0 0.0
        %766 = vmatmul.mubr.f32.gmra.mrb[0].mxu0 %v458
        %v767 = vpop.f32.mrb[0].mxu0
        %v768 = vadd.f32 %v549, %v767
        %v769 = vpop.f32.mrb[0].mxu0
        %770 = vmatprep.mubr.f32.mxu0 0.0
        %771 = vmatmul.mubr.f32.gmra.mrb[0].mxu0 %v461
        %v772 = vpop.f32.mrb[0].mxu0
        %v773 = vadd.f32 %v549, %v772
        %v774 = vpop.f32.mrb[0].mxu0
        %775 = vdwg.mxu0
        %776 = vst.msk [vmem:[%s322] sm:$0xff] %vm363, %v618
        %777 = vst.msk [vmem:[%s322 + $0x8] sm:$0xff] %vm363, %v623
        %778 = vst.msk [vmem:[%s322 + $0x10] sm:$0xff] %vm363, %v628
        %779 = vst.msk [vmem:[%s322 + $0x18] sm:$0xff] %vm363, %v633
        %780 = vst.msk [vmem:[%s322 + $0x20] sm:$0xff] %vm363, %v638
        %781 = vst.msk [vmem:[%s322 + $0x28] sm:$0xff] %vm363, %v643
        %782 = vst.msk [vmem:[%s322 + $0x30] sm:$0xff] %vm363, %v648
        %783 = vst.msk [vmem:[%s322 + $0x38] sm:$0xff] %vm363, %v653
        %784 = vst.msk [vmem:[%s322 + $0x40] sm:$0xff] %vm363, %v658
        %785 = vst.msk [vmem:[%s322 + $0x48] sm:$0xff] %vm363, %v663
        %786 = vst.msk [vmem:[%s322 + $0x50] sm:$0xff] %vm363, %v668
        %787 = vst.msk [vmem:[%s322 + $0x58] sm:$0xff] %vm363, %v673
        %788 = vst.msk [vmem:[%s322 + $0x60] sm:$0xff] %vm363, %v678
        %789 = vst.msk [vmem:[%s322 + $0x68] sm:$0xff] %vm363, %v683
        %790 = vst.msk [vmem:[%s322 + $0x70] sm:$0xff] %vm363, %v688
        %791 = vst.msk [vmem:[%s322 + $0x78] sm:$0xff] %vm363, %v693
        %792 = vst.msk [vmem:[%s322 + $0x80] sm:$0xff] %vm363, %v698
        %793 = vst.msk [vmem:[%s322 + $0x88] sm:$0xff] %vm363, %v703
        %794 = vst.msk [vmem:[%s322 + $0x90] sm:$0xff] %vm363, %v708
        %795 = vst.msk [vmem:[%s322 + $0x98] sm:$0xff] %vm363, %v713
        %796 = vst.msk [vmem:[%s322 + $0xa0] sm:$0xff] %vm363, %v718
        %797 = vst.msk [vmem:[%s322 + $0xa8] sm:$0xff] %vm363, %v723
        %798 = vst.msk [vmem:[%s322 + $0xb0] sm:$0xff] %vm363, %v728
        %799 = vst.msk [vmem:[%s322 + $0xb8] sm:$0xff] %vm363, %v733
        %800 = vst.msk [vmem:[%s322 + $0xc0] sm:$0xff] %vm363, %v738
        %801 = vst.msk [vmem:[%s322 + $0xc8] sm:$0xff] %vm363, %v743
        %802 = vst.msk [vmem:[%s322 + $0xd0] sm:$0xff] %vm363, %v748
        %803 = vst.msk [vmem:[%s322 + $0xd8] sm:$0xff] %vm363, %v753
        %804 = vst.msk [vmem:[%s322 + $0xe0] sm:$0xff] %vm363, %v758
        %805 = vst.msk [vmem:[%s322 + $0xe8] sm:$0xff] %vm363, %v763
        %806 = vst.msk [vmem:[%s322 + $0xf0] sm:$0xff] %vm363, %v768
        %807 = vst.msk [vmem:[%s322 + $0xf8] sm:$0xff] %vm363, %v773
        %s808 = smul.u32 2, %s26
        %p809 = scmp.lt.s32.totalorder %s25, 1
        %s810 = scalar_select %p809, %s25, 1
        %p811 = scmp.lt.s32.totalorder %s808, 1
        %s812 = scalar_select %p811, %s808, 1
        %s813 = smul.addr %s810, 2
        %s814 = sadd.s32 %s812, %s813
        %s815 = smul.addr %s814, 8
        %s816 = scalar_lea.vmem %s5, %s815
        %s817 = smul.u32 32, %s26
        %p818 = scmp.lt.s32.totalorder %s25, 1
        %s819 = scalar_select %p818, %s25, 1
        %p820 = scmp.lt.s32.totalorder %s817, 31
        %s821 = scalar_select %p820, %s817, 31
        %s822 = smul.addr %s819, 32
        %s823 = sadd.s32 %s821, %s822
        %s824 = smul.addr %s823, 8
        %s825 = scalar_lea.vmem %s6, %s824
        // Predicated region
        $region45: #{self_attn_forward.2} parent=39 // pred_check
          %p826 = pneg %p165
        $region46: #{self_attn_forward.2} parent=39 // pred_check_branch
          %828 = sbr.rel (%p826) target = $region48
        $region47: #{self_attn_forward.2} parent=39 // pred_region
          %s829 = smul.u32 2, %s26
        $region48: #{self_attn_forward.2} parent=39 // pred_fallthru
          _
        // Predicated region
        $region49: #{self_attn_forward.2} parent=39 // pred_check
          %p830 = pneg %p193
        $region50: #{self_attn_forward.2} parent=39 // pred_check_branch
          %832 = sbr.rel (%p830) target = $region52
        $region51: #{self_attn_forward.2} parent=39 // pred_region
          %s833 = smul.u32 32, %s26
        $region52: #{self_attn_forward.2} parent=39 // pred_fallthru
          _
      $region40: #{self_attn_forward.2} parent=5 // pred_fallthru
        _
      %p834 = scmp.le.s32.totalorder 2, %s16
      // Predicated region
      $region53: #{self_attn_forward.2} parent=5 // pred_check
        %p835 = pneg %p834
      $region54: #{self_attn_forward.2} parent=5 // pred_check_branch
        %837 = sbr.rel (%p835) target = $region56
      $region55: #{self_attn_forward.2} parent=5 // pred_region
        %s838 = ssub.s32 %s16, 2
        // Predicated region
        $region57: #{self_attn_forward.2} parent=55 // pred_check
          %p839 = pneg %p171
        $region58: #{self_attn_forward.2} parent=55 // pred_check_branch
          %841 = sbr.rel (%p839) target = $region60
        $region59: #{self_attn_forward.2} parent=55 // pred_region
          %s842 = smul.u32 2, %s28
          %p843 = scmp.lt.s32.totalorder %s27, 1
          %s844 = scalar_select %p843, %s27, 1
          %p845 = scmp.lt.s32.totalorder %s842, 1
          %s846 = scalar_select %p845, %s842, 1
          %s847 = smul.addr %s844, 2
          %s848 = sadd.s32 %s846, %s847
          %s849 = smul.addr %s848, 8
          %s850 = scalar_lea.vmem %s5, %s849
        $region60: #{self_attn_forward.2} parent=55 // pred_fallthru
          _
        // Predicated region
        $region61: #{self_attn_forward.2} parent=55 // pred_check
          %p851 = pneg %p199
        $region62: #{self_attn_forward.2} parent=55 // pred_check_branch
          %853 = sbr.rel (%p851) target = $region64
        $region63: #{self_attn_forward.2} parent=55 // pred_region
          %s854 = smul.u32 32, %s28
          %p855 = scmp.lt.s32.totalorder %s27, 1
          %s856 = scalar_select %p855, %s27, 1
          %p857 = scmp.lt.s32.totalorder %s854, 31
          %s858 = scalar_select %p857, %s854, 31
          %s859 = smul.addr %s856, 32
          %s860 = sadd.s32 %s858, %s859
          %s861 = smul.addr %s860, 8
          %s862 = scalar_lea.vmem %s6, %s861
        $region64: #{self_attn_forward.2} parent=55 // pred_fallthru
          _
      $region56: #{self_attn_forward.2} parent=5 // pred_fallthru
        _
    $region6: #{self_attn_forward.2} parent=1 // loop_footer
      %s20 = sadd.s32 1, %s16
    $region7: #{self_attn_forward.2} parent=1 // loop_footer_branch
      %15 = sbr.rel target = $region3
    $region8: #{self_attn_forward.2} parent=1 // loop_exit
      _
    %863 = vsyncpa [#allocation3], 1
    %s864 = scalar_lea.sflag [#allocation3], 1
    %865 = vsyncpa %s864, 1

// kernel: self_attn_forward.3
$region0: #{self_attn_forward.3}
  #allocation0 [shape = 'u32[]', space=smem, size = 0x4, offset = 0x4, fixed_abs, tag = 'smem constant byte address 0x4 - core index']
  #allocation1 [shape = 'u32[144,128]{1,0:T(1,128)}', space=vmem, size = 0x12000, scoped, tag = 'internal scratch']
  #allocation2 [shape = 'f32[1,1]{1,0:T(1,128)S(6)}', space=smem, size = 0x200, scoped, tag = 'scoped memory for self_attn_forward.3']
  %s0 = inlined_call_operand.vmem [shape: f32[2,256,64], index: 0, kind: input, shape index: {}]
  %s1 = inlined_call_operand.vmem [shape: f32[64,8], index: 1, kind: input, shape index: {}]
  %s2 = inlined_call_operand.vmem [shape: f32[1,8], index: 2, kind: input, shape index: {}]
  %s3 = inlined_call_operand.vmem [shape: f32[2,8,256], index: 3, kind: input, shape index: {}]
  %s4 = inlined_call_operand.vmem [shape: f32[2,256,64], index: 4, kind: input, shape index: {}]
  %s5 = inlined_call_operand.<no memory space> [shape: f32[1,1], index: 5, kind: input, shape index: {}]
  %s6 = inlined_call_operand.hbm [shape: f32[2,256,64], index: 6, kind: output, shape index: {0}]
  %s7 = inlined_call_operand.hbm [shape: f32[2,256,256], index: 7, kind: output, shape index: {1}]
  %8 = xla_tuple %s6, %s7
  %s9 = sld [smem:[#allocation0]]
  $region65: #{self_attn_forward.3} parent=0
    _
  %s11 = ssub.s32 1, %s9
  %s12 = scalar_select 0, %s11, %s9
  %13 = sst [smem:[#allocation2]] %s5
  $region1: #{self_attn_forward.3} parent=0
    #allocation3 [shape = 'u8[262144]{0}', space=vmem, size = 0x40000, scoped, tag = 'output window, operand 0']
    #allocation4 [shape = 's32[2]{0}', space=sflag, size = 0x8, scoped, tag = 'scoped memory for self_attn_forward.3']
    #allocation5 [shape = 'u8[524288]{0}', space=vmem, size = 0x80000, scoped, tag = 'output window, operand 1']
    #allocation6 [shape = 's32[2]{0}', space=sflag, size = 0x8, scoped, tag = 'scoped memory for self_attn_forward.3']
    %14 = vsyncpa [#allocation4], 0
    %s15 = scalar_lea.sflag [#allocation4], 1
    %16 = vsyncpa %s15, 0
    %17 = vsyncpa [#allocation6], 0
    %s18 = scalar_lea.sflag [#allocation6], 1
    %19 = vsyncpa %s18, 0
    loop: start=0, step=1, limit=4
    $region2: #{self_attn_forward.3} parent=1 // loop_pre_header
      _
    $region3: #{self_attn_forward.3} parent=1 // loop_header
      %s21 = sphi 0, %s25
      %p22 = scmp.ge.s32.totalorder %s21, 4
      %s28 = sphi 0, %s40
      %s29 = sphi 0, %s36
      %s30 = sphi 0, %s28
      %s31 = sphi 0, %s29
      %s32 = sphi 0, %s30
      %s33 = sphi 0, %s31
      %s45 = sphi 0, %s47
      %s48 = sphi 0, %s45
      %s49 = sphi 0, %s48
      %s65 = sphi 0, %s49
      %s69 = sphi 0, %s69
      %s71 = sphi 0, %s69
      %s72 = sphi 0, %s71
      %s86 = sphi 0, %s72
      %s90 = sphi 0, %s90
      %s92 = sphi 0, %s90
      %s93 = sphi 0, %s92
      %s107 = sphi 0, %s93
      %s113 = sphi 0, %s115
      %s116 = sphi 0, %s113
      %s117 = sphi 0, %s116
      %s133 = sphi 0, %s117
      %s139 = sphi 0, %s141
      %s142 = sphi 0, %s139
      %s143 = sphi 0, %s142
      %s159 = sphi 0, %s143
      %s163 = sphi 0, %s163
      %s165 = sphi 0, %s163
      %s166 = sphi 0, %s165
      %s180 = sphi 0, %s166
      %s188 = sphi 0, %s190
      %s191 = sphi 0, %s188
      %s192 = sphi 0, %s191
      %s208 = sphi 0, %s192
      %s216 = sphi 0, %s218
      %s219 = sphi 0, %s216
      %s220 = sphi 0, %s219
      %s236 = sphi 0, %s220
    $region4: #{self_attn_forward.3} parent=1 // loop_header_branch
      %24 = sbr.rel (%p22) target = $region8
    $region5: #{self_attn_forward.3} parent=1 // loop_body
      %s26 = ssub.s32 %s21, 1
      %s27 = ssub.s32 %s21, 2
      %s34 = sadd.s32 1, %s29
      %p35 = scmp.ge.s32.totalorder %s34, 1
      %s36 = scalar_select %p35, 0, %s34
      %s37 = sadd.s32 1, %s28
      %s38 = scalar_select %p35, %s37, %s28
      %p39 = scmp.ge.s32.totalorder %s38, 2
      %s40 = scalar_select %p39, 0, %s38
      %s41 = ssub.s32 %s28, %s40
      %s42 = ssub.s32 %s29, %s36
      %s43 = sor.u32 %s41, %s42
      %p44 = scmp.eq.s32.totalorder %s43, 0
      %s46 = sadd.s32 %s45, 1
      %s47 = scalar_select %p44, %s45, %s46
      %p50 = pneg %p44
      %p51 = scmp.eq.s32.totalorder %s21, 1
      %p52 = por %p50, %p51
      %p53 = scmp.ne.s32.totalorder %s45, %s48
      %p54 = scmp.eq.s32.totalorder %s21, 0
      %p55 = por %p53, %p54
      %p56 = scmp.ne.s32.totalorder %s45, %s48
      %p57 = scmp.eq.s32.totalorder %s26, 1
      %p58 = por %p56, %p57
      %p59 = scmp.ne.s32.totalorder %s48, %s49
      %p60 = scmp.eq.s32.totalorder %s26, 0
      %p61 = por %p59, %p60
      %p62 = scmp.ne.s32.totalorder %s48, %s49
      %p63 = scmp.eq.s32.totalorder %s27, 1
      %p64 = por %p62, %p63
      %p66 = scmp.ne.s32.totalorder %s49, %s65
      %p67 = scmp.eq.s32.totalorder %s27, 0
      %p68 = por %p66, %p67
      %s70 = sadd.s32 %s69, 1
      %p73 = scmp.eq.s32.totalorder %s21, 1
      %p74 = scmp.ne.s32.totalorder %s69, %s71
      %p75 = scmp.eq.s32.totalorder %s21, 0
      %p76 = por %p74, %p75
      %p77 = scmp.ne.s32.totalorder %s69, %s71
      %p78 = scmp.eq.s32.totalorder %s26, 1
      %p79 = por %p77, %p78
      %p80 = scmp.ne.s32.totalorder %s71, %s72
      %p81 = scmp.eq.s32.totalorder %s26, 0
      %p82 = por %p80, %p81
      %p83 = scmp.ne.s32.totalorder %s71, %s72
      %p84 = scmp.eq.s32.totalorder %s27, 1
      %p85 = por %p83, %p84
      %p87 = scmp.ne.s32.totalorder %s72, %s86
      %p88 = scmp.eq.s32.totalorder %s27, 0
      %p89 = por %p87, %p88
      %s91 = sadd.s32 %s90, 1
      %p94 = scmp.eq.s32.totalorder %s21, 1
      %p95 = scmp.ne.s32.totalorder %s90, %s92
      %p96 = scmp.eq.s32.totalorder %s21, 0
      %p97 = por %p95, %p96
      %p98 = scmp.ne.s32.totalorder %s90, %s92
      %p99 = scmp.eq.s32.totalorder %s26, 1
      %p100 = por %p98, %p99
      %p101 = scmp.ne.s32.totalorder %s92, %s93
      %p102 = scmp.eq.s32.totalorder %s26, 0
      %p103 = por %p101, %p102
      %p104 = scmp.ne.s32.totalorder %s92, %s93
      %p105 = scmp.eq.s32.totalorder %s27, 1
      %p106 = por %p104, %p105
      %p108 = scmp.ne.s32.totalorder %s93, %s107
      %p109 = scmp.eq.s32.totalorder %s27, 0
      %p110 = por %p108, %p109
      %s111 = ssub.s32 %s28, %s40
      %p112 = scmp.eq.s32.totalorder %s111, 0
      %s114 = sadd.s32 %s113, 1
      %s115 = scalar_select %p112, %s113, %s114
      %p118 = pneg %p112
      %p119 = scmp.eq.s32.totalorder %s21, 1
      %p120 = por %p118, %p119
      %p121 = scmp.ne.s32.totalorder %s113, %s116
      %p122 = scmp.eq.s32.totalorder %s21, 0
      %p123 = por %p121, %p122
      %p124 = scmp.ne.s32.totalorder %s113, %s116
      %p125 = scmp.eq.s32.totalorder %s26, 1
      %p126 = por %p124, %p125
      %p127 = scmp.ne.s32.totalorder %s116, %s117
      %p128 = scmp.eq.s32.totalorder %s26, 0
      %p129 = por %p127, %p128
      %p130 = scmp.ne.s32.totalorder %s116, %s117
      %p131 = scmp.eq.s32.totalorder %s27, 1
      %p132 = por %p130, %p131
      %p134 = scmp.ne.s32.totalorder %s117, %s133
      %p135 = scmp.eq.s32.totalorder %s27, 0
      %p136 = por %p134, %p135
      %s137 = ssub.s32 %s28, %s40
      %p138 = scmp.eq.s32.totalorder %s137, 0
      %s140 = sadd.s32 %s139, 1
      %s141 = scalar_select %p138, %s139, %s140
      %p144 = pneg %p138
      %p145 = scmp.eq.s32.totalorder %s21, 1
      %p146 = por %p144, %p145
      %p147 = scmp.ne.s32.totalorder %s139, %s142
      %p148 = scmp.eq.s32.totalorder %s21, 0
      %p149 = por %p147, %p148
      %p150 = scmp.ne.s32.totalorder %s139, %s142
      %p151 = scmp.eq.s32.totalorder %s26, 1
      %p152 = por %p150, %p151
      %p153 = scmp.ne.s32.totalorder %s142, %s143
      %p154 = scmp.eq.s32.totalorder %s26, 0
      %p155 = por %p153, %p154
      %p156 = scmp.ne.s32.totalorder %s142, %s143
      %p157 = scmp.eq.s32.totalorder %s27, 1
      %p158 = por %p156, %p157
      %p160 = scmp.ne.s32.totalorder %s143, %s159
      %p161 = scmp.eq.s32.totalorder %s27, 0
      %p162 = por %p160, %p161
      %s164 = sadd.s32 %s163, 1
      %p167 = scmp.eq.s32.totalorder %s21, 1
      %p168 = scmp.ne.s32.totalorder %s163, %s165
      %p169 = scmp.eq.s32.totalorder %s21, 0
      %p170 = por %p168, %p169
      %p171 = scmp.ne.s32.totalorder %s163, %s165
      %p172 = scmp.eq.s32.totalorder %s26, 1
      %p173 = por %p171, %p172
      %p174 = scmp.ne.s32.totalorder %s165, %s166
      %p175 = scmp.eq.s32.totalorder %s26, 0
      %p176 = por %p174, %p175
      %p177 = scmp.ne.s32.totalorder %s165, %s166
      %p178 = scmp.eq.s32.totalorder %s27, 1
      %p179 = por %p177, %p178
      %p181 = scmp.ne.s32.totalorder %s166, %s180
      %p182 = scmp.eq.s32.totalorder %s27, 0
      %p183 = por %p181, %p182
      %s184 = ssub.s32 %s28, %s40
      %s185 = ssub.s32 %s29, %s36
      %s186 = sor.u32 %s184, %s185
      %p187 = scmp.eq.s32.totalorder %s186, 0
      %s189 = sadd.s32 %s188, 1
      %s190 = scalar_select %p187, %s188, %s189
      %p193 = pneg %p187
      %p194 = scmp.eq.s32.totalorder %s21, 1
      %p195 = por %p193, %p194
      %p196 = scmp.ne.s32.totalorder %s188, %s191
      %p197 = scmp.eq.s32.totalorder %s21, 0
      %p198 = por %p196, %p197
      %p199 = scmp.ne.s32.totalorder %s188, %s191
      %p200 = scmp.eq.s32.totalorder %s26, 1
      %p201 = por %p199, %p200
      %p202 = scmp.ne.s32.totalorder %s191, %s192
      %p203 = scmp.eq.s32.totalorder %s26, 0
      %p204 = por %p202, %p203
      %p205 = scmp.ne.s32.totalorder %s191, %s192
      %p206 = scmp.eq.s32.totalorder %s27, 1
      %p207 = por %p205, %p206
      %p209 = scmp.ne.s32.totalorder %s192, %s208
      %p210 = scmp.eq.s32.totalorder %s27, 0
      %p211 = por %p209, %p210
      %s212 = ssub.s32 %s28, %s40
      %s213 = ssub.s32 %s29, %s36
      %s214 = sor.u32 %s212, %s213
      %p215 = scmp.eq.s32.totalorder %s214, 0
      %s217 = sadd.s32 %s216, 1
      %s218 = scalar_select %p215, %s216, %s217
      %p221 = pneg %p215
      %p222 = scmp.eq.s32.totalorder %s21, 1
      %p223 = por %p221, %p222
      %p224 = scmp.ne.s32.totalorder %s216, %s219
      %p225 = scmp.eq.s32.totalorder %s21, 0
      %p226 = por %p224, %p225
      %p227 = scmp.ne.s32.totalorder %s216, %s219
      %p228 = scmp.eq.s32.totalorder %s26, 1
      %p229 = por %p227, %p228
      %p230 = scmp.ne.s32.totalorder %s219, %s220
      %p231 = scmp.eq.s32.totalorder %s26, 0
      %p232 = por %p230, %p231
      %p233 = scmp.ne.s32.totalorder %s219, %s220
      %p234 = scmp.eq.s32.totalorder %s27, 1
      %p235 = por %p233, %p234
      %p237 = scmp.ne.s32.totalorder %s220, %s236
      %p238 = scmp.eq.s32.totalorder %s27, 0
      %p239 = por %p237, %p238
      %p240 = scmp.le.s32.totalorder 1, %s21
      %p241 = scmp.lt.s32.totalorder %s21, 3
      %p242 = pnand %p240, %p241
      %p243 = pneg %p242
      // Predicated region
      $region9: #{self_attn_forward.3} parent=5 // pred_check
        _
      $region10: #{self_attn_forward.3} parent=5 // pred_check_branch
        %245 = sbr.rel (%p242) target = $region12
      $region11: #{self_attn_forward.3} parent=5 // pred_region
        %s246 = ssub.s32 %s21, 1
        // Predicated region
        $region13: #{self_attn_forward.3} parent=11 // pred_check
          %p247 = pneg %p82
        $region14: #{self_attn_forward.3} parent=11 // pred_check_branch
          %249 = sbr.rel (%p247) target = $region16
        $region15: #{self_attn_forward.3} parent=11 // pred_region
          _
        $region16: #{self_attn_forward.3} parent=11 // pred_fallthru
          _
        // Predicated region
        $region17: #{self_attn_forward.3} parent=11 // pred_check
          %p250 = pneg %p103
        $region18: #{self_attn_forward.3} parent=11 // pred_check_branch
          %252 = sbr.rel (%p250) target = $region20
        $region19: #{self_attn_forward.3} parent=11 // pred_region
          _
        $region20: #{self_attn_forward.3} parent=11 // pred_fallthru
          _
        // Predicated region
        $region21: #{self_attn_forward.3} parent=11 // pred_check
          %p253 = pneg %p176
        $region22: #{self_attn_forward.3} parent=11 // pred_check_branch
          %255 = sbr.rel (%p253) target = $region24
        $region23: #{self_attn_forward.3} parent=11 // pred_region
          _
        $region24: #{self_attn_forward.3} parent=11 // pred_fallthru
          _
      $region12: #{self_attn_forward.3} parent=5 // pred_fallthru
        _
      %p256 = scmp.lt.s32.totalorder %s21, 2
      // Predicated region
      $region25: #{self_attn_forward.3} parent=5 // pred_check
        %p257 = pneg %p256
      $region26: #{self_attn_forward.3} parent=5 // pred_check_branch
        %259 = sbr.rel (%p257) target = $region28
      $region27: #{self_attn_forward.3} parent=5 // pred_region
        // Predicated region
        $region29: #{self_attn_forward.3} parent=27 // pred_check
          %p260 = pneg %p55
        $region30: #{self_attn_forward.3} parent=27 // pred_check_branch
          %262 = sbr.rel (%p260) target = $region32
        $region31: #{self_attn_forward.3} parent=27 // pred_region
          %s263 = smul.u32 32, %s29
          %p264 = scmp.lt.s32.totalorder %s28, 1
          %s265 = scalar_select %p264, %s28, 1
          %p266 = scmp.lt.s32.totalorder %s263, 31
          %s267 = scalar_select %p266, %s263, 31
          %s268 = smul.addr %s265, 32
          %s269 = sadd.s32 %s267, %s268
          %s270 = smul.addr %s269, 8
          %s271 = scalar_lea.vmem %s0, %s270
          %s272 = smul.u32 32, %s29
        $region32: #{self_attn_forward.3} parent=27 // pred_fallthru
          _
        // Predicated region
        $region33: #{self_attn_forward.3} parent=27 // pred_check
          %p273 = pneg %p123
        $region34: #{self_attn_forward.3} parent=27 // pred_check_branch
          %275 = sbr.rel (%p273) target = $region36
        $region35: #{self_attn_forward.3} parent=27 // pred_region
          %p276 = scmp.lt.s32.totalorder %s28, 1
          %s277 = scalar_select %p276, %s28, 1
          %s278 = smul.addr %s277, 2
          %s279 = smul.addr %s278, 8
          %s280 = scalar_lea.vmem %s3, %s279
        $region36: #{self_attn_forward.3} parent=27 // pred_fallthru
          _
        // Predicated region
        $region37: #{self_attn_forward.3} parent=27 // pred_check
          %p281 = pneg %p149
        $region38: #{self_attn_forward.3} parent=27 // pred_check_branch
          %283 = sbr.rel (%p281) target = $region40
        $region39: #{self_attn_forward.3} parent=27 // pred_region
          %p284 = scmp.lt.s32.totalorder %s28, 1
          %s285 = scalar_select %p284, %s28, 1
          %s286 = smul.addr %s285, 32
          %s287 = smul.addr %s286, 8
          %s288 = scalar_lea.vmem %s4, %s287
        $region40: #{self_attn_forward.3} parent=27 // pred_fallthru
          _
      $region28: #{self_attn_forward.3} parent=5 // pred_fallthru
        _
      %p289 = scmp.le.s32.totalorder 1, %s21
      %p290 = scmp.lt.s32.totalorder %s21, 3
      %p291 = pnand %p289, %p290
      %p292 = pneg %p291
      // Predicated region
      $region41: #{self_attn_forward.3} parent=5 // pred_check
        _
      $region42: #{self_attn_forward.3} parent=5 // pred_check_branch
        %294 = sbr.rel (%p291) target = $region44
      $region43: #{self_attn_forward.3} parent=5 // pred_region
        %s295 = ssub.s32 %s21, 1
        %s296 = smul.u32 32, %s31
        %p297 = scmp.lt.s32.totalorder %s30, 1
        %s298 = scalar_select %p297, %s30, 1
        %p299 = scmp.lt.s32.totalorder %s296, 31
        %s300 = scalar_select %p299, %s296, 31
        %s301 = smul.addr %s298, 32
        %s302 = sadd.s32 %s300, %s301
        %s303 = smul.addr %s302, 8
        %s304 = scalar_lea.vmem %s0, %s303
        %p305 = pneg %p61
        %p306 = pneg %p58
        %p307 = pneg %p82
        %p308 = pneg %p79
        %p309 = pneg %p103
        %p310 = pneg %p100
        %p311 = scmp.lt.s32.totalorder %s30, 1
        %s312 = scalar_select %p311, %s30, 1
        %s313 = smul.addr %s312, 2
        %s314 = smul.addr %s313, 8
        %s315 = scalar_lea.vmem %s3, %s314
        %p316 = pneg %p129
        %p317 = pneg %p126
        %p318 = scmp.lt.s32.totalorder %s30, 1
        %s319 = scalar_select %p318, %s30, 1
        %s320 = smul.addr %s319, 32
        %s321 = smul.addr %s320, 8
        %s322 = scalar_lea.vmem %s4, %s321
        %p323 = pneg %p155
        %p324 = pneg %p152
        %p325 = pneg %p176
        %p326 = pneg %p173
        %p327 = pneg %p204
        %p328 = pneg %p201
        %s329 = sand.u32 %s191, 1
        %s330 = scalar_lea.sflag [#allocation4], %s329
        %s331 = sand.u32 %s191, 1
        %s332 = smul.addr %s331, 256
        %s333 = scalar_lea.vmem [#allocation3], %s332
        %p334 = pneg %p232
        %p335 = pneg %p229
        %s336 = sand.u32 %s219, 1
        %s337 = scalar_lea.sflag [#allocation6], %s336
        %s338 = sand.u32 %s219, 1
        %s339 = smul.addr %s338, 512
        %s340 = scalar_lea.vmem [#allocation5], %s339
        %s341 = smul.u32 32, %s31
        %p342 = scmp.lt.s32.totalorder %s30, 1
        %s343 = scalar_select %p342, %s30, 1
        %p344 = scmp.lt.s32.totalorder %s341, 31
        %s345 = scalar_select %p344, %s341, 31
        %s346 = smul.addr %s343, 32
        %s347 = sadd.s32 %s345, %s346
        %s348 = smul.addr %s347, 8
        %s349 = scalar_lea.vmem %s0, %s348
        %s350 = smul.u32 32, %s31
        %p351 = scmp.lt.s32.totalorder %s30, 1
        %s352 = scalar_select %p351, %s30, 1
        %s353 = smul.addr %s352, 2
        %s354 = smul.addr %s353, 8
        %s355 = scalar_lea.vmem %s3, %s354
        %p356 = scmp.lt.s32.totalorder %s30, 1
        %s357 = scalar_select %p356, %s30, 1
        %s358 = smul.addr %s357, 32
        %s359 = smul.addr %s358, 8
        %s360 = scalar_lea.vmem %s4, %s359
        %s361 = smul.u32 32, %s31
        %s362 = smul.u32 32, %s31
        %v363 = vld [vmem:[%s349] sm:$0xff]
        %v364 = vld [vmem:[%s349 + $0x8] sm:$0xff]
        %v365 = vld [vmem:[%s349 + $0x10] sm:$0xff]
        %v366 = vld [vmem:[%s349 + $0x18] sm:$0xff]
        %v367 = vld [vmem:[%s349 + $0x20] sm:$0xff]
        %v368 = vld [vmem:[%s349 + $0x28] sm:$0xff]
        %v369 = vld [vmem:[%s349 + $0x30] sm:$0xff]
        %v370 = vld [vmem:[%s349 + $0x38] sm:$0xff]
        %v371 = vld [vmem:[%s349 + $0x40] sm:$0xff]
        %v372 = vld [vmem:[%s349 + $0x48] sm:$0xff]
        %v373 = vld [vmem:[%s349 + $0x50] sm:$0xff]
        %v374 = vld [vmem:[%s349 + $0x58] sm:$0xff]
        %v375 = vld [vmem:[%s349 + $0x60] sm:$0xff]
        %v376 = vld [vmem:[%s349 + $0x68] sm:$0xff]
        %v377 = vld [vmem:[%s349 + $0x70] sm:$0xff]
        %v378 = vld [vmem:[%s349 + $0x78] sm:$0xff]
        %v379 = vld [vmem:[%s349 + $0x80] sm:$0xff]
        %v380 = vld [vmem:[%s349 + $0x88] sm:$0xff]
        %v381 = vld [vmem:[%s349 + $0x90] sm:$0xff]
        %v382 = vld [vmem:[%s349 + $0x98] sm:$0xff]
        %v383 = vld [vmem:[%s349 + $0xa0] sm:$0xff]
        %v384 = vld [vmem:[%s349 + $0xa8] sm:$0xff]
        %v385 = vld [vmem:[%s349 + $0xb0] sm:$0xff]
        %v386 = vld [vmem:[%s349 + $0xb8] sm:$0xff]
        %v387 = vld [vmem:[%s349 + $0xc0] sm:$0xff]
        %v388 = vld [vmem:[%s349 + $0xc8] sm:$0xff]
        %v389 = vld [vmem:[%s349 + $0xd0] sm:$0xff]
        %v390 = vld [vmem:[%s349 + $0xd8] sm:$0xff]
        %v391 = vld [vmem:[%s349 + $0xe0] sm:$0xff]
        %v392 = vld [vmem:[%s349 + $0xe8] sm:$0xff]
        %v393 = vld [vmem:[%s349 + $0xf0] sm:$0xff]
        %v394 = vld [vmem:[%s349 + $0xf8] sm:$0xff]
        %v395 = vld [vmem:[%s1] sm:$0xff]
        %v396 = vld [vmem:[%s1 + $0x8] sm:$0xff]
        %v397 = vld [vmem:[%s1 + $0x10] sm:$0xff]
        %v398 = vld [vmem:[%s1 + $0x18] sm:$0xff]
        %v399 = vld [vmem:[%s1 + $0x20] sm:$0xff]
        %v400 = vld [vmem:[%s1 + $0x28] sm:$0xff]
        %v401 = vld [vmem:[%s1 + $0x30] sm:$0xff]
        %v402 = vld [vmem:[%s1 + $0x38] sm:$0xff]
        %v403 = vld [vmem:[%s2] sm:$0x1]
        %v405 = vlaneseq
        %v406 = vshrl.u32 %v405, 7
        %v407 = vsub.s32 0, %v406
        %v408 = vrot.slane %v403, %v407
        %vm410 = vcmask 523264
        %v412 = vsel %vm410, %v363, 0
        %v415 = vsel %vm410, %v364, 0
        %v418 = vsel %vm410, %v365, 0
        %v421 = vsel %vm410, %v366, 0
        %v424 = vsel %vm410, %v367, 0
        %v427 = vsel %vm410, %v368, 0
        %v430 = vsel %vm410, %v369, 0
        %v433 = vsel %vm410, %v370, 0
        %v436 = vsel %vm410, %v371, 0
        %v439 = vsel %vm410, %v372, 0
        %v442 = vsel %vm410, %v373, 0
        %v445 = vsel %vm410, %v374, 0
        %v448 = vsel %vm410, %v375, 0
        %v451 = vsel %vm410, %v376, 0
        %v454 = vsel %vm410, %v377, 0
        %v457 = vsel %vm410, %v378, 0
        %v460 = vsel %vm410, %v379, 0
        %v463 = vsel %vm410, %v380, 0
        %v466 = vsel %vm410, %v381, 0
        %v469 = vsel %vm410, %v382, 0
        %v472 = vsel %vm410, %v383, 0
        %v475 = vsel %vm410, %v384, 0
        %v478 = vsel %vm410, %v385, 0
        %v481 = vsel %vm410, %v386, 0
        %v484 = vsel %vm410, %v387, 0
        %v487 = vsel %vm410, %v388, 0
        %v490 = vsel %vm410, %v389, 0
        %v493 = vsel %vm410, %v390, 0
        %v496 = vsel %vm410, %v391, 0
        %v499 = vsel %vm410, %v392, 0
        %v502 = vsel %vm410, %v393, 0
        %v505 = vsel %vm410, %v394, 0
        %507 = vmatprep.subr.mxu0 0.0
        %508 = vmatpush1.msra.mxu0 %v395
        %509 = vmatprep.subr.mxu0 0.0
        %510 = vmatpush1.msra.mxu0 %v396
        %511 = vmatprep.subr.mxu0 0.0
        %512 = vmatpush1.msra.mxu0 %v397
        %513 = vmatprep.subr.mxu0 0.0
        %514 = vmatpush1.msra.mxu0 %v398
        %515 = vmatprep.subr.mxu0 0.0
        %516 = vmatpush1.msra.mxu0 %v399
        %517 = vmatprep.subr.mxu0 0.0
        %518 = vmatpush1.msra.mxu0 %v400
        %519 = vmatprep.subr.mxu0 0.0
        %520 = vmatpush1.msra.mxu0 %v401
        %521 = vmatprep.subr.mxu0 0.0
        %522 = vmatpush1.msra.mxu0 %v402
        %523 = vmatprep.subr.mxu0 0.0
        %524 = vmatpush1.msra.mxu0 0.0
        %525 = vmatprep.subr.mxu0 0.0
        %526 = vmatpush1.msra.mxu0 0.0
        %527 = vmatprep.subr.mxu0 0.0
        %528 = vmatpush1.msra.mxu0 0.0
        %529 = vmatprep.subr.mxu0 0.0
        %530 = vmatpush1.msra.mxu0 0.0
        %531 = vmatprep.subr.mxu0 0.0
        %532 = vmatpush1.msra.mxu0 0.0
        %533 = vmatprep.subr.mxu0 0.0
        %534 = vmatpush1.msra.mxu0 0.0
        %535 = vmatprep.subr.mxu0 0.0
        %536 = vmatpush1.msra.mxu0 0.0
        %537 = vmatprep.subr.mxu0 0.0
        %538 = vmatpush1.msra.mxu0 0.0
        %539 = vmatprep.subr.mxu0 0.0
        %540 = vmatpush1.msra.mxu0 0.0
        %541 = vmatprep.subr.mxu0 0.0
        %542 = vmatpush1.msra.mxu0 0.0
        %543 = vmatprep.subr.mxu0 0.0
        %544 = vmatpush1.msra.mxu0 0.0
        %545 = vmatprep.subr.mxu0 0.0
        %546 = vmatpush1.msra.mxu0 0.0
        %547 = vmatprep.subr.mxu0 0.0
        %548 = vmatpush1.msra.mxu0 0.0
        %549 = vmatprep.subr.mxu0 0.0
        %550 = vmatpush1.msra.mxu0 0.0
        %551 = vmatprep.subr.mxu0 0.0
        %552 = vmatpush1.msra.mxu0 0.0
        %553 = vmatprep.subr.mxu0 0.0
        %554 = vmatpush1.msra.mxu0 0.0
        %555 = vmatprep.subr.mxu0 0.0
        %556 = vmatpush1.msra.mxu0 0.0
        %557 = vmatprep.subr.mxu0 0.0
        %558 = vmatpush1.msra.mxu0 0.0
        %559 = vmatprep.subr.mxu0 0.0
        %560 = vmatpush1.msra.mxu0 0.0
        %561 = vmatprep.subr.mxu0 0.0
        %562 = vmatpush1.msra.mxu0 0.0
        %563 = vmatprep.subr.mxu0 0.0
        %564 = vmatpush1.msra.mxu0 0.0
        %565 = vmatprep.subr.mxu0 0.0
        %566 = vmatpush1.msra.mxu0 0.0
        %567 = vmatprep.subr.mxu0 0.0
        %568 = vmatpush1.msra.mxu0 0.0
        %569 = vmatprep.subr.mxu0 0.0
        %570 = vmatpush1.msra.mxu0 0.0
        %571 = vmatprep.mubr.f32.mxu0 0.0
        %572 = vmatmul.mubr.f32.gmra.mrb[0].mxu0 %v412
        %v573 = vpop.f32.mrb[0].mxu0
        %v574 = vadd.f32 %v408, %v573
        %v575 = vpop.f32.mrb[0].mxu0
        %576 = vmatprep.mubr.f32.mxu0 0.0
        %577 = vmatmul.mubr.f32.gmra.mrb[0].mxu0 %v415
        %v578 = vpop.f32.mrb[0].mxu0
        %v579 = vadd.f32 %v408, %v578
        %v580 = vpop.f32.mrb[0].mxu0
        %581 = vmatprep.mubr.f32.mxu0 0.0
        %582 = vmatmul.mubr.f32.gmra.mrb[0].mxu0 %v418
        %v583 = vpop.f32.mrb[0].mxu0
        %v584 = vadd.f32 %v408, %v583
        %v585 = vpop.f32.mrb[0].mxu0
        %586 = vmatprep.mubr.f32.mxu0 0.0
        %587 = vmatmul.mubr.f32.gmra.mrb[0].mxu0 %v421
        %v588 = vpop.f32.mrb[0].mxu0
        %v589 = vadd.f32 %v408, %v588
        %v590 = vpop.f32.mrb[0].mxu0
        %591 = vmatprep.mubr.f32.mxu0 0.0
        %592 = vmatmul.mubr.f32.gmra.mrb[0].mxu0 %v424
        %v593 = vpop.f32.mrb[0].mxu0
        %v594 = vadd.f32 %v408, %v593
        %v595 = vpop.f32.mrb[0].mxu0
        %596 = vmatprep.mubr.f32.mxu0 0.0
        %597 = vmatmul.mubr.f32.gmra.mrb[0].mxu0 %v427
        %v598 = vpop.f32.mrb[0].mxu0
        %v599 = vadd.f32 %v408, %v598
        %v600 = vpop.f32.mrb[0].mxu0
        %601 = vmatprep.mubr.f32.mxu0 0.0
        %602 = vmatmul.mubr.f32.gmra.mrb[0].mxu0 %v430
        %v603 = vpop.f32.mrb[0].mxu0
        %v604 = vadd.f32 %v408, %v603
        %v605 = vpop.f32.mrb[0].mxu0
        %606 = vmatprep.mubr.f32.mxu0 0.0
        %607 = vmatmul.mubr.f32.gmra.mrb[0].mxu0 %v433
        %v608 = vpop.f32.mrb[0].mxu0
        %v609 = vadd.f32 %v408, %v608
        %v610 = vpop.f32.mrb[0].mxu0
        %611 = vmatprep.mubr.f32.mxu0 0.0
        %612 = vmatmul.mubr.f32.gmra.mrb[0].mxu0 %v436
        %v613 = vpop.f32.mrb[0].mxu0
        %v614 = vadd.f32 %v408, %v613
        %v615 = vpop.f32.mrb[0].mxu0
        %616 = vmatprep.mubr.f32.mxu0 0.0
        %617 = vmatmul.mubr.f32.gmra.mrb[0].mxu0 %v439
        %v618 = vpop.f32.mrb[0].mxu0
        %v619 = vadd.f32 %v408, %v618
        %v620 = vpop.f32.mrb[0].mxu0
        %621 = vmatprep.mubr.f32.mxu0 0.0
        %622 = vmatmul.mubr.f32.gmra.mrb[0].mxu0 %v442
        %v623 = vpop.f32.mrb[0].mxu0
        %v624 = vadd.f32 %v408, %v623
        %v625 = vpop.f32.mrb[0].mxu0
        %626 = vmatprep.mubr.f32.mxu0 0.0
        %627 = vmatmul.mubr.f32.gmra.mrb[0].mxu0 %v445
        %v628 = vpop.f32.mrb[0].mxu0
        %v629 = vadd.f32 %v408, %v628
        %v630 = vpop.f32.mrb[0].mxu0
        %631 = vmatprep.mubr.f32.mxu0 0.0
        %632 = vmatmul.mubr.f32.gmra.mrb[0].mxu0 %v448
        %v633 = vpop.f32.mrb[0].mxu0
        %v634 = vadd.f32 %v408, %v633
        %v635 = vpop.f32.mrb[0].mxu0
        %636 = vmatprep.mubr.f32.mxu0 0.0
        %637 = vmatmul.mubr.f32.gmra.mrb[0].mxu0 %v451
        %v638 = vpop.f32.mrb[0].mxu0
        %v639 = vadd.f32 %v408, %v638
        %v640 = vpop.f32.mrb[0].mxu0
        %641 = vmatprep.mubr.f32.mxu0 0.0
        %642 = vmatmul.mubr.f32.gmra.mrb[0].mxu0 %v454
        %v643 = vpop.f32.mrb[0].mxu0
        %v644 = vadd.f32 %v408, %v643
        %v645 = vpop.f32.mrb[0].mxu0
        %646 = vmatprep.mubr.f32.mxu0 0.0
        %647 = vmatmul.mubr.f32.gmra.mrb[0].mxu0 %v457
        %v648 = vpop.f32.mrb[0].mxu0
        %v649 = vadd.f32 %v408, %v648
        %v650 = vpop.f32.mrb[0].mxu0
        %651 = vmatprep.mubr.f32.mxu0 0.0
        %652 = vmatmul.mubr.f32.gmra.mrb[0].mxu0 %v460
        %v653 = vpop.f32.mrb[0].mxu0
        %v654 = vadd.f32 %v408, %v653
        %v655 = vpop.f32.mrb[0].mxu0
        %656 = vmatprep.mubr.f32.mxu0 0.0
        %657 = vmatmul.mubr.f32.gmra.mrb[0].mxu0 %v463
        %v658 = vpop.f32.mrb[0].mxu0
        %v659 = vadd.f32 %v408, %v658
        %v660 = vpop.f32.mrb[0].mxu0
        %661 = vmatprep.mubr.f32.mxu0 0.0
        %662 = vmatmul.mubr.f32.gmra.mrb[0].mxu0 %v466
        %v663 = vpop.f32.mrb[0].mxu0
        %v664 = vadd.f32 %v408, %v663
        %v665 = vpop.f32.mrb[0].mxu0
        %666 = vmatprep.mubr.f32.mxu0 0.0
        %667 = vmatmul.mubr.f32.gmra.mrb[0].mxu0 %v469
        %v668 = vpop.f32.mrb[0].mxu0
        %v669 = vadd.f32 %v408, %v668
        %v670 = vpop.f32.mrb[0].mxu0
        %671 = vmatprep.mubr.f32.mxu0 0.0
        %672 = vmatmul.mubr.f32.gmra.mrb[0].mxu0 %v472
        %v673 = vpop.f32.mrb[0].mxu0
        %v674 = vadd.f32 %v408, %v673
        %v675 = vpop.f32.mrb[0].mxu0
        %676 = vmatprep.mubr.f32.mxu0 0.0
        %677 = vmatmul.mubr.f32.gmra.mrb[0].mxu0 %v475
        %v678 = vpop.f32.mrb[0].mxu0
        %v679 = vadd.f32 %v408, %v678
        %v680 = vpop.f32.mrb[0].mxu0
        %681 = vmatprep.mubr.f32.mxu0 0.0
        %682 = vmatmul.mubr.f32.gmra.mrb[0].mxu0 %v478
        %v683 = vpop.f32.mrb[0].mxu0
        %v684 = vadd.f32 %v408, %v683
        %v685 = vpop.f32.mrb[0].mxu0
        %686 = vmatprep.mubr.f32.mxu0 0.0
        %687 = vmatmul.mubr.f32.gmra.mrb[0].mxu0 %v481
        %v688 = vpop.f32.mrb[0].mxu0
        %v689 = vadd.f32 %v408, %v688
        %v690 = vpop.f32.mrb[0].mxu0
        %691 = vmatprep.mubr.f32.mxu0 0.0
        %692 = vmatmul.mubr.f32.gmra.mrb[0].mxu0 %v484
        %v693 = vpop.f32.mrb[0].mxu0
        %v694 = vadd.f32 %v408, %v693
        %v695 = vpop.f32.mrb[0].mxu0
        %696 = vmatprep.mubr.f32.mxu0 0.0
        %697 = vmatmul.mubr.f32.gmra.mrb[0].mxu0 %v487
        %v698 = vpop.f32.mrb[0].mxu0
        %v699 = vadd.f32 %v408, %v698
        %v700 = vpop.f32.mrb[0].mxu0
        %701 = vmatprep.mubr.f32.mxu0 0.0
        %702 = vmatmul.mubr.f32.gmra.mrb[0].mxu0 %v490
        %v703 = vpop.f32.mrb[0].mxu0
        %v704 = vadd.f32 %v408, %v703
        %v705 = vpop.f32.mrb[0].mxu0
        %706 = vmatprep.mubr.f32.mxu0 0.0
        %707 = vmatmul.mubr.f32.gmra.mrb[0].mxu0 %v493
        %v708 = vpop.f32.mrb[0].mxu0
        %v709 = vadd.f32 %v408, %v708
        %v710 = vpop.f32.mrb[0].mxu0
        %711 = vmatprep.mubr.f32.mxu0 0.0
        %712 = vmatmul.mubr.f32.gmra.mrb[0].mxu0 %v496
        %v713 = vpop.f32.mrb[0].mxu0
        %v714 = vadd.f32 %v408, %v713
        %v715 = vpop.f32.mrb[0].mxu0
        %716 = vmatprep.mubr.f32.mxu0 0.0
        %717 = vmatmul.mubr.f32.gmra.mrb[0].mxu0 %v499
        %v718 = vpop.f32.mrb[0].mxu0
        %v719 = vadd.f32 %v408, %v718
        %v720 = vpop.f32.mrb[0].mxu0
        %721 = vmatprep.mubr.f32.mxu0 0.0
        %722 = vmatmul.mubr.f32.gmra.mrb[0].mxu0 %v502
        %v723 = vpop.f32.mrb[0].mxu0
        %v724 = vadd.f32 %v408, %v723
        %v725 = vpop.f32.mrb[0].mxu0
        %726 = vmatprep.mubr.f32.mxu0 0.0
        %727 = vmatmul.mubr.f32.gmra.mrb[0].mxu0 %v505
        %v728 = vpop.f32.mrb[0].mxu0
        %v729 = vadd.f32 %v408, %v728
        %v730 = vpop.f32.mrb[0].mxu0
        %731 = vdwg.mxu0
        %v732 = vld [vmem:[%s355] sm:$0xff]
        %v733 = vld [vmem:[%s355 + $0x8] sm:$0xff]
        %vm734 = vcmask 64512
        %v736 = vsel %vm734, %v574, 0
        %v739 = vsel %vm734, %v579, 0
        %v742 = vsel %vm734, %v584, 0
        %v745 = vsel %vm734, %v589, 0
        %v748 = vsel %vm734, %v594, 0
        %v751 = vsel %vm734, %v599, 0
        %v754 = vsel %vm734, %v604, 0
        %v757 = vsel %vm734, %v609, 0
        %v760 = vsel %vm734, %v614, 0
        %v763 = vsel %vm734, %v619, 0
        %v766 = vsel %vm734, %v624, 0
        %v769 = vsel %vm734, %v629, 0
        %v772 = vsel %vm734, %v634, 0
        %v775 = vsel %vm734, %v639, 0
        %v778 = vsel %vm734, %v644, 0
        %v781 = vsel %vm734, %v649, 0
        %v784 = vsel %vm734, %v654, 0
        %v787 = vsel %vm734, %v659, 0
        %v790 = vsel %vm734, %v664, 0
        %v793 = vsel %vm734, %v669, 0
        %v796 = vsel %vm734, %v674, 0
        %v799 = vsel %vm734, %v679, 0
        %v802 = vsel %vm734, %v684, 0
        %v805 = vsel %vm734, %v689, 0
        %v808 = vsel %vm734, %v694, 0
        %v811 = vsel %vm734, %v699, 0
        %v814 = vsel %vm734, %v704, 0
        %v817 = vsel %vm734, %v709, 0
        %v820 = vsel %vm734, %v714, 0
        %v823 = vsel %vm734, %v719, 0
        %v826 = vsel %vm734, %v724, 0
        %v829 = vsel %vm734, %v729, 0
        %831 = vmatprep.subr.mxu0 %v733
        %832 = vmatpush1.msra.mxu0 %v732
        %833 = vmatprep.subr.mxu0 0.0
        %834 = vmatpush1.msra.mxu0 0.0
        %835 = vmatprep.subr.mxu0 0.0
        %836 = vmatpush1.msra.mxu0 0.0
        %837 = vmatprep.subr.mxu0 0.0
        %838 = vmatpush1.msra.mxu0 0.0
        %839 = vmatprep.subr.mxu0 0.0
        %840 = vmatpush1.msra.mxu0 0.0
        %841 = vmatprep.subr.mxu0 0.0
        %842 = vmatpush1.msra.mxu0 0.0
        %843 = vmatprep.subr.mxu0 0.0
        %844 = vmatpush1.msra.mxu0 0.0
        %845 = vmatprep.subr.mxu0 0.0
        %846 = vmatpush1.msra.mxu0 0.0
        %847 = vmatprep.subr.mxu0 0.0
        %848 = vmatpush1.msra.mxu0 0.0
        %849 = vmatprep.subr.mxu0 0.0
        %850 = vmatpush1.msra.mxu0 0.0
        %851 = vmatprep.subr.mxu0 0.0
        %852 = vmatpush1.msra.mxu0 0.0
        %853 = vmatprep.subr.mxu0 0.0
        %854 = vmatpush1.msra.mxu0 0.0
        %855 = vmatprep.subr.mxu0 0.0
        %856 = vmatpush1.msra.mxu0 0.0
        %857 = vmatprep.subr.mxu0 0.0
        %858 = vmatpush1.msra.mxu0 0.0
        %859 = vmatprep.subr.mxu0 0.0
        %860 = vmatpush1.msra.mxu0 0.0
        %861 = vmatprep.subr.mxu0 0.0
        %862 = vmatpush1.msra.mxu0 0.0
        %863 = vmatprep.subr.mxu0 0.0
        %864 = vmatpush1.msra.mxu0 0.0
        %865 = vmatprep.subr.mxu0 0.0
        %866 = vmatpush1.msra.mxu0 0.0
        %867 = vmatprep.subr.mxu0 0.0
        %868 = vmatpush1.msra.mxu0 0.0
        %869 = vmatprep.subr.mxu0 0.0
        %870 = vmatpush1.msra.mxu0 0.0
        %871 = vmatprep.subr.mxu0 0.0
        %872 = vmatpush1.msra.mxu0 0.0
        %873 = vmatprep.subr.mxu0 0.0
        %874 = vmatpush1.msra.mxu0 0.0
        %875 = vmatprep.subr.mxu0 0.0
        %876 = vmatpush1.msra.mxu0 0.0
        %877 = vmatprep.subr.mxu0 0.0
        %878 = vmatpush1.msra.mxu0 0.0
        %879 = vmatprep.subr.mxu0 0.0
        %880 = vmatpush1.msra.mxu0 0.0
        %881 = vmatprep.subr.mxu0 0.0
        %882 = vmatpush1.msra.mxu0 0.0
        %883 = vmatprep.subr.mxu0 0.0
        %884 = vmatpush1.msra.mxu0 0.0
        %885 = vmatprep.subr.mxu0 0.0
        %886 = vmatpush1.msra.mxu0 0.0
        %887 = vmatprep.subr.mxu0 0.0
        %888 = vmatpush1.msra.mxu0 0.0
        %889 = vmatprep.subr.mxu0 0.0
        %890 = vmatpush1.msra.mxu0 0.0
        %891 = vmatprep.subr.mxu0 0.0
        %892 = vmatpush1.msra.mxu0 0.0
        %893 = vmatprep.subr.mxu0 0.0
        %894 = vmatpush1.msra.mxu0 0.0
        %895 = vmatprep.mubr.f32.mxu0 0.0
        %896 = vmatmul.mubr.f32.gmra.mrb[0].mxu0 %v736
        %v897 = vpop.f32.mrb[0].mxu0
        %v898 = vadd.f32 0.0, %v897
        %v899 = vpop.f32.mrb[0].mxu0
        %v900 = vadd.f32 0.0, %v899
        %901 = vmatprep.mubr.f32.mxu0 0.0
        %902 = vmatmul.mubr.f32.gmra.mrb[0].mxu0 %v739
        %v903 = vpop.f32.mrb[0].mxu0
        %v904 = vadd.f32 0.0, %v903
        %v905 = vpop.f32.mrb[0].mxu0
        %v906 = vadd.f32 0.0, %v905
        %907 = vmatprep.mubr.f32.mxu0 0.0
        %908 = vmatmul.mubr.f32.gmra.mrb[0].mxu0 %v742
        %v909 = vpop.f32.mrb[0].mxu0
        %v910 = vadd.f32 0.0, %v909
        %v911 = vpop.f32.mrb[0].mxu0
        %v912 = vadd.f32 0.0, %v911
        %913 = vmatprep.mubr.f32.mxu0 0.0
        %914 = vmatmul.mubr.f32.gmra.mrb[0].mxu0 %v745
        %v915 = vpop.f32.mrb[0].mxu0
        %v916 = vadd.f32 0.0, %v915
        %v917 = vpop.f32.mrb[0].mxu0
        %v918 = vadd.f32 0.0, %v917
        %919 = vmatprep.mubr.f32.mxu0 0.0
        %920 = vmatmul.mubr.f32.gmra.mrb[0].mxu0 %v748
        %v921 = vpop.f32.mrb[0].mxu0
        %v922 = vadd.f32 0.0, %v921
        %v923 = vpop.f32.mrb[0].mxu0
        %v924 = vadd.f32 0.0, %v923
        %925 = vmatprep.mubr.f32.mxu0 0.0
        %926 = vmatmul.mubr.f32.gmra.mrb[0].mxu0 %v751
        %v927 = vpop.f32.mrb[0].mxu0
        %v928 = vadd.f32 0.0, %v927
        %v929 = vpop.f32.mrb[0].mxu0
        %v930 = vadd.f32 0.0, %v929
        %931 = vmatprep.mubr.f32.mxu0 0.0
        %932 = vmatmul.mubr.f32.gmra.mrb[0].mxu0 %v754
        %v933 = vpop.f32.mrb[0].mxu0
        %v934 = vadd.f32 0.0, %v933
        %v935 = vpop.f32.mrb[0].mxu0
        %v936 = vadd.f32 0.0, %v935
        %937 = vmatprep.mubr.f32.mxu0 0.0
        %938 = vmatmul.mubr.f32.gmra.mrb[0].mxu0 %v757
        %v939 = vpop.f32.mrb[0].mxu0
        %v940 = vadd.f32 0.0, %v939
        %v941 = vpop.f32.mrb[0].mxu0
        %v942 = vadd.f32 0.0, %v941
        %943 = vmatprep.mubr.f32.mxu0 0.0
        %944 = vmatmul.mubr.f32.gmra.mrb[0].mxu0 %v760
        %v945 = vpop.f32.mrb[0].mxu0
        %v946 = vadd.f32 0.0, %v945
        %v947 = vpop.f32.mrb[0].mxu0
        %v948 = vadd.f32 0.0, %v947
        %949 = vmatprep.mubr.f32.mxu0 0.0
        %950 = vmatmul.mubr.f32.gmra.mrb[0].mxu0 %v763
        %v951 = vpop.f32.mrb[0].mxu0
        %v952 = vadd.f32 0.0, %v951
        %v953 = vpop.f32.mrb[0].mxu0
        %v954 = vadd.f32 0.0, %v953
        %955 = vmatprep.mubr.f32.mxu0 0.0
        %956 = vmatmul.mubr.f32.gmra.mrb[0].mxu0 %v766
        %v957 = vpop.f32.mrb[0].mxu0
        %v958 = vadd.f32 0.0, %v957
        %v959 = vpop.f32.mrb[0].mxu0
        %v960 = vadd.f32 0.0, %v959
        %961 = vmatprep.mubr.f32.mxu0 0.0
        %962 = vmatmul.mubr.f32.gmra.mrb[0].mxu0 %v769
        %v963 = vpop.f32.mrb[0].mxu0
        %v964 = vadd.f32 0.0, %v963
        %v965 = vpop.f32.mrb[0].mxu0
        %v966 = vadd.f32 0.0, %v965
        %967 = vmatprep.mubr.f32.mxu0 0.0
        %968 = vmatmul.mubr.f32.gmra.mrb[0].mxu0 %v772
        %v969 = vpop.f32.mrb[0].mxu0
        %v970 = vadd.f32 0.0, %v969
        %v971 = vpop.f32.mrb[0].mxu0
        %v972 = vadd.f32 0.0, %v971
        %973 = vmatprep.mubr.f32.mxu0 0.0
        %974 = vmatmul.mubr.f32.gmra.mrb[0].mxu0 %v775
        %v975 = vpop.f32.mrb[0].mxu0
        %v976 = vadd.f32 0.0, %v975
        %v977 = vpop.f32.mrb[0].mxu0
        %v978 = vadd.f32 0.0, %v977
        %979 = vmatprep.mubr.f32.mxu0 0.0
        %980 = vmatmul.mubr.f32.gmra.mrb[0].mxu0 %v778
        %v981 = vpop.f32.mrb[0].mxu0
        %v982 = vadd.f32 0.0, %v981
        %v983 = vpop.f32.mrb[0].mxu0
        %v984 = vadd.f32 0.0, %v983
        %985 = vmatprep.mubr.f32.mxu0 0.0
        %986 = vmatmul.mubr.f32.gmra.mrb[0].mxu0 %v781
        %v987 = vpop.f32.mrb[0].mxu0
        %v988 = vadd.f32 0.0, %v987
        %v989 = vpop.f32.mrb[0].mxu0
        %v990 = vadd.f32 0.0, %v989
        %991 = vmatprep.mubr.f32.mxu0 0.0
        %992 = vmatmul.mubr.f32.gmra.mrb[0].mxu0 %v784
        %v993 = vpop.f32.mrb[0].mxu0
        %v994 = vadd.f32 0.0, %v993
        %v995 = vpop.f32.mrb[0].mxu0
        %v996 = vadd.f32 0.0, %v995
        %997 = vmatprep.mubr.f32.mxu0 0.0
        %998 = vmatmul.mubr.f32.gmra.mrb[0].mxu0 %v787
        %v999 = vpop.f32.mrb[0].mxu0
        %v1000 = vadd.f32 0.0, %v999
        %v1001 = vpop.f32.mrb[0].mxu0
        %v1002 = vadd.f32 0.0, %v1001
        %1003 = vmatprep.mubr.f32.mxu0 0.0
        %1004 = vmatmul.mubr.f32.gmra.mrb[0].mxu0 %v790
        %v1005 = vpop.f32.mrb[0].mxu0
        %v1006 = vadd.f32 0.0, %v1005
        %v1007 = vpop.f32.mrb[0].mxu0
        %v1008 = vadd.f32 0.0, %v1007
        %1009 = vmatprep.mubr.f32.mxu0 0.0
        %1010 = vmatmul.mubr.f32.gmra.mrb[0].mxu0 %v793
        %v1011 = vpop.f32.mrb[0].mxu0
        %v1012 = vadd.f32 0.0, %v1011
        %v1013 = vpop.f32.mrb[0].mxu0
        %v1014 = vadd.f32 0.0, %v1013
        %1015 = vmatprep.mubr.f32.mxu0 0.0
        %1016 = vmatmul.mubr.f32.gmra.mrb[0].mxu0 %v796
        %v1017 = vpop.f32.mrb[0].mxu0
        %v1018 = vadd.f32 0.0, %v1017
        %v1019 = vpop.f32.mrb[0].mxu0
        %v1020 = vadd.f32 0.0, %v1019
        %1021 = vmatprep.mubr.f32.mxu0 0.0
        %1022 = vmatmul.mubr.f32.gmra.mrb[0].mxu0 %v799
        %v1023 = vpop.f32.mrb[0].mxu0
        %v1024 = vadd.f32 0.0, %v1023
        %v1025 = vpop.f32.mrb[0].mxu0
        %v1026 = vadd.f32 0.0, %v1025
        %1027 = vmatprep.mubr.f32.mxu0 0.0
        %1028 = vmatmul.mubr.f32.gmra.mrb[0].mxu0 %v802
        %v1029 = vpop.f32.mrb[0].mxu0
        %v1030 = vadd.f32 0.0, %v1029
        %v1031 = vpop.f32.mrb[0].mxu0
        %v1032 = vadd.f32 0.0, %v1031
        %1033 = vmatprep.mubr.f32.mxu0 0.0
        %1034 = vmatmul.mubr.f32.gmra.mrb[0].mxu0 %v805
        %v1035 = vpop.f32.mrb[0].mxu0
        %v1036 = vadd.f32 0.0, %v1035
        %v1037 = vpop.f32.mrb[0].mxu0
        %v1038 = vadd.f32 0.0, %v1037
        %1039 = vmatprep.mubr.f32.mxu0 0.0
        %1040 = vmatmul.mubr.f32.gmra.mrb[0].mxu0 %v808
        %v1041 = vpop.f32.mrb[0].mxu0
        %v1042 = vadd.f32 0.0, %v1041
        %v1043 = vpop.f32.mrb[0].mxu0
        %v1044 = vadd.f32 0.0, %v1043
        %1045 = vmatprep.mubr.f32.mxu0 0.0
        %1046 = vmatmul.mubr.f32.gmra.mrb[0].mxu0 %v811
        %v1047 = vpop.f32.mrb[0].mxu0
        %v1048 = vadd.f32 0.0, %v1047
        %v1049 = vpop.f32.mrb[0].mxu0
        %v1050 = vadd.f32 0.0, %v1049
        %1051 = vmatprep.mubr.f32.mxu0 0.0
        %1052 = vmatmul.mubr.f32.gmra.mrb[0].mxu0 %v814
        %v1053 = vpop.f32.mrb[0].mxu0
        %v1054 = vadd.f32 0.0, %v1053
        %v1055 = vpop.f32.mrb[0].mxu0
        %v1056 = vadd.f32 0.0, %v1055
        %1057 = vmatprep.mubr.f32.mxu0 0.0
        %1058 = vmatmul.mubr.f32.gmra.mrb[0].mxu0 %v817
        %v1059 = vpop.f32.mrb[0].mxu0
        %v1060 = vadd.f32 0.0, %v1059
        %v1061 = vpop.f32.mrb[0].mxu0
        %v1062 = vadd.f32 0.0, %v1061
        %1063 = vmatprep.mubr.f32.mxu0 0.0
        %1064 = vmatmul.mubr.f32.gmra.mrb[0].mxu0 %v820
        %v1065 = vpop.f32.mrb[0].mxu0
        %v1066 = vadd.f32 0.0, %v1065
        %v1067 = vpop.f32.mrb[0].mxu0
        %v1068 = vadd.f32 0.0, %v1067
        %1069 = vmatprep.mubr.f32.mxu0 0.0
        %1070 = vmatmul.mubr.f32.gmra.mrb[0].mxu0 %v823
        %v1071 = vpop.f32.mrb[0].mxu0
        %v1072 = vadd.f32 0.0, %v1071
        %v1073 = vpop.f32.mrb[0].mxu0
        %v1074 = vadd.f32 0.0, %v1073
        %1075 = vmatprep.mubr.f32.mxu0 0.0
        %1076 = vmatmul.mubr.f32.gmra.mrb[0].mxu0 %v826
        %v1077 = vpop.f32.mrb[0].mxu0
        %v1078 = vadd.f32 0.0, %v1077
        %v1079 = vpop.f32.mrb[0].mxu0
        %v1080 = vadd.f32 0.0, %v1079
        %1081 = vmatprep.mubr.f32.mxu0 0.0
        %1082 = vmatmul.mubr.f32.gmra.mrb[0].mxu0 %v829
        %v1083 = vpop.f32.mrb[0].mxu0
        %v1084 = vadd.f32 0.0, %v1083
        %v1085 = vpop.f32.mrb[0].mxu0
        %v1086 = vadd.f32 0.0, %v1085
        %1087 = vdwg.mxu0
        %v1088 = vmax.f32 %v898, %v900
        %1089 = vmax.xlane.f32.xlu0 %v1088
        %v1090 = vpop.xlane.xlu0 %1089
        %v1091 = vmax.f32 %v904, %v906
        %1092 = vmax.xlane.f32.xlu0 %v1091
        %v1093 = vpop.xlane.xlu0 %1092
        %v1094 = vmax.f32 %v910, %v912
        %1095 = vmax.xlane.f32.xlu0 %v1094
        %v1096 = vpop.xlane.xlu0 %1095
        %v1097 = vmax.f32 %v916, %v918
        %1098 = vmax.xlane.f32.xlu0 %v1097
        %v1099 = vpop.xlane.xlu0 %1098
        %v1100 = vmax.f32 %v922, %v924
        %1101 = vmax.xlane.f32.xlu0 %v1100
        %v1102 = vpop.xlane.xlu0 %1101
        %v1103 = vmax.f32 %v928, %v930
        %1104 = vmax.xlane.f32.xlu0 %v1103
        %v1105 = vpop.xlane.xlu0 %1104
        %v1106 = vmax.f32 %v934, %v936
        %1107 = vmax.xlane.f32.xlu0 %v1106
        %v1108 = vpop.xlane.xlu0 %1107
        %v1109 = vmax.f32 %v940, %v942
        %1110 = vmax.xlane.f32.xlu0 %v1109
        %v1111 = vpop.xlane.xlu0 %1110
        %v1112 = vmax.f32 %v946, %v948
        %1113 = vmax.xlane.f32.xlu0 %v1112
        %v1114 = vpop.xlane.xlu0 %1113
        %v1115 = vmax.f32 %v952, %v954
        %1116 = vmax.xlane.f32.xlu0 %v1115
        %v1117 = vpop.xlane.xlu0 %1116
        %v1118 = vmax.f32 %v958, %v960
        %1119 = vmax.xlane.f32.xlu0 %v1118
        %v1120 = vpop.xlane.xlu0 %1119
        %v1121 = vmax.f32 %v964, %v966
        %1122 = vmax.xlane.f32.xlu0 %v1121
        %v1123 = vpop.xlane.xlu0 %1122
        %v1124 = vmax.f32 %v970, %v972
        %1125 = vmax.xlane.f32.xlu0 %v1124
        %v1126 = vpop.xlane.xlu0 %1125
        %v1127 = vmax.f32 %v976, %v978
        %1128 = vmax.xlane.f32.xlu0 %v1127
        %v1129 = vpop.xlane.xlu0 %1128
        %v1130 = vmax.f32 %v982, %v984
        %1131 = vmax.xlane.f32.xlu0 %v1130
        %v1132 = vpop.xlane.xlu0 %1131
        %v1133 = vmax.f32 %v988, %v990
        %1134 = vmax.xlane.f32.xlu0 %v1133
        %v1135 = vpop.xlane.xlu0 %1134
        %v1136 = vmax.f32 %v994, %v996
        %1137 = vmax.xlane.f32.xlu0 %v1136
        %v1138 = vpop.xlane.xlu0 %1137
        %v1139 = vmax.f32 %v1000, %v1002
        %1140 = vmax.xlane.f32.xlu0 %v1139
        %v1141 = vpop.xlane.xlu0 %1140
        %v1142 = vmax.f32 %v1006, %v1008
        %1143 = vmax.xlane.f32.xlu0 %v1142
        %v1144 = vpop.xlane.xlu0 %1143
        %v1145 = vmax.f32 %v1012, %v1014
        %1146 = vmax.xlane.f32.xlu0 %v1145
        %v1147 = vpop.xlane.xlu0 %1146
        %v1148 = vmax.f32 %v1018, %v1020
        %1149 = vmax.xlane.f32.xlu0 %v1148
        %v1150 = vpop.xlane.xlu0 %1149
        %v1151 = vmax.f32 %v1024, %v1026
        %1152 = vmax.xlane.f32.xlu0 %v1151
        %v1153 = vpop.xlane.xlu0 %1152
        %v1154 = vmax.f32 %v1030, %v1032
        %1155 = vmax.xlane.f32.xlu0 %v1154
        %v1156 = vpop.xlane.xlu0 %1155
        %v1157 = vmax.f32 %v1036, %v1038
        %1158 = vmax.xlane.f32.xlu0 %v1157
        %v1159 = vpop.xlane.xlu0 %1158
        %v1160 = vmax.f32 %v1042, %v1044
        %1161 = vmax.xlane.f32.xlu0 %v1160
        %v1162 = vpop.xlane.xlu0 %1161
        %v1163 = vmax.f32 %v1048, %v1050
        %1164 = vmax.xlane.f32.xlu0 %v1163
        %v1165 = vpop.xlane.xlu0 %1164
        %v1166 = vmax.f32 %v1054, %v1056
        %1167 = vmax.xlane.f32.xlu0 %v1166
        %v1168 = vpop.xlane.xlu0 %1167
        %v1169 = vmax.f32 %v1060, %v1062
        %1170 = vmax.xlane.f32.xlu0 %v1169
        %v1171 = vpop.xlane.xlu0 %1170
        %v1172 = vmax.f32 %v1066, %v1068
        %1173 = vmax.xlane.f32.xlu0 %v1172
        %v1174 = vpop.xlane.xlu0 %1173
        %v1175 = vmax.f32 %v1072, %v1074
        %1176 = vmax.xlane.f32.xlu0 %v1175
        %v1177 = vpop.xlane.xlu0 %1176
        %v1178 = vmax.f32 %v1078, %v1080
        %1179 = vmax.xlane.f32.xlu0 %v1178
        %v1180 = vpop.xlane.xlu0 %1179
        %v1181 = vmax.f32 %v1084, %v1086
        %1182 = vmax.xlane.f32.xlu0 %v1181
        %v1183 = vpop.xlane.xlu0 %1182
        %v1184 = vsub.f32 %v898, %v1090
        %v1185 = vsub.f32 %v900, %v1090
        %v1186 = vsub.f32 %v904, %v1093
        %v1187 = vsub.f32 %v906, %v1093
        %v1188 = vsub.f32 %v910, %v1096
        %v1189 = vsub.f32 %v912, %v1096
        %v1190 = vsub.f32 %v916, %v1099
        %v1191 = vsub.f32 %v918, %v1099
        %v1192 = vsub.f32 %v922, %v1102
        %v1193 = vsub.f32 %v924, %v1102
        %v1194 = vsub.f32 %v928, %v1105
        %v1195 = vsub.f32 %v930, %v1105
        %v1196 = vsub.f32 %v934, %v1108
        %v1197 = vsub.f32 %v936, %v1108
        %v1198 = vsub.f32 %v940, %v1111
        %v1199 = vsub.f32 %v942, %v1111
        %v1200 = vsub.f32 %v946, %v1114
        %v1201 = vsub.f32 %v948, %v1114
        %v1202 = vsub.f32 %v952, %v1117
        %v1203 = vsub.f32 %v954, %v1117
        %v1204 = vsub.f32 %v958, %v1120
        %v1205 = vsub.f32 %v960, %v1120
        %v1206 = vsub.f32 %v964, %v1123
        %v1207 = vsub.f32 %v966, %v1123
        %v1208 = vsub.f32 %v970, %v1126
        %v1209 = vsub.f32 %v972, %v1126
        %v1210 = vsub.f32 %v976, %v1129
        %v1211 = vsub.f32 %v978, %v1129
        %v1212 = vsub.f32 %v982, %v1132
        %v1213 = vsub.f32 %v984, %v1132
        %v1214 = vsub.f32 %v988, %v1135
        %v1215 = vsub.f32 %v990, %v1135
        %v1216 = vsub.f32 %v994, %v1138
        %v1217 = vsub.f32 %v996, %v1138
        %v1218 = vsub.f32 %v1000, %v1141
        %v1219 = vsub.f32 %v1002, %v1141
        %v1220 = vsub.f32 %v1006, %v1144
        %v1221 = vsub.f32 %v1008, %v1144
        %v1222 = vsub.f32 %v1012, %v1147
        %v1223 = vsub.f32 %v1014, %v1147
        %v1224 = vsub.f32 %v1018, %v1150
        %v1225 = vsub.f32 %v1020, %v1150
        %v1226 = vsub.f32 %v1024, %v1153
        %v1227 = vsub.f32 %v1026, %v1153
        %v1228 = vsub.f32 %v1030, %v1156
        %v1229 = vsub.f32 %v1032, %v1156
        %v1230 = vsub.f32 %v1036, %v1159
        %v1231 = vsub.f32 %v1038, %v1159
        %v1232 = vsub.f32 %v1042, %v1162
        %v1233 = vsub.f32 %v1044, %v1162
        %v1234 = vsub.f32 %v1048, %v1165
        %v1235 = vsub.f32 %v1050, %v1165
        %v1236 = vsub.f32 %v1054, %v1168
        %v1237 = vsub.f32 %v1056, %v1168
        %v1238 = vsub.f32 %v1060, %v1171
        %v1239 = vsub.f32 %v1062, %v1171
        %v1240 = vsub.f32 %v1066, %v1174
        %v1241 = vsub.f32 %v1068, %v1174
        %v1242 = vsub.f32 %v1072, %v1177
        %v1243 = vsub.f32 %v1074, %v1177
        %v1244 = vsub.f32 %v1078, %v1180
        %v1245 = vsub.f32 %v1080, %v1180
        %v1246 = vsub.f32 %v1084, %v1183
        %v1247 = vsub.f32 %v1086, %v1183
        %v1248 = vmul.f32 %v1184, 1.442695
        %v1249 = vpow.pop %v1248
        %v1250 = vmul.f32 %v1185, 1.442695
        %v1251 = vpow.pop %v1250
        %v1252 = vmul.f32 %v1186, 1.442695
        %v1253 = vpow.pop %v1252
        %v1254 = vmul.f32 %v1187, 1.442695
        %v1255 = vpow.pop %v1254
        %v1256 = vmul.f32 %v1188, 1.442695
        %v1257 = vpow.pop %v1256
        %v1258 = vmul.f32 %v1189, 1.442695
        %v1259 = vpow.pop %v1258
        %v1260 = vmul.f32 %v1190, 1.442695
        %v1261 = vpow.pop %v1260
        %v1262 = vmul.f32 %v1191, 1.442695
        %v1263 = vpow.pop %v1262
        %v1264 = vmul.f32 %v1192, 1.442695
        %v1265 = vpow.pop %v1264
        %v1266 = vmul.f32 %v1193, 1.442695
        %v1267 = vpow.pop %v1266
        %v1268 = vmul.f32 %v1194, 1.442695
        %v1269 = vpow.pop %v1268
        %v1270 = vmul.f32 %v1195, 1.442695
        %v1271 = vpow.pop %v1270
        %v1272 = vmul.f32 %v1196, 1.442695
        %v1273 = vpow.pop %v1272
        %v1274 = vmul.f32 %v1197, 1.442695
        %v1275 = vpow.pop %v1274
        %v1276 = vmul.f32 %v1198, 1.442695
        %v1277 = vpow.pop %v1276
        %v1278 = vmul.f32 %v1199, 1.442695
        %v1279 = vpow.pop %v1278
        %v1280 = vmul.f32 %v1200, 1.442695
        %v1281 = vpow.pop %v1280
        %v1282 = vmul.f32 %v1201, 1.442695
        %v1283 = vpow.pop %v1282
        %v1284 = vmul.f32 %v1202, 1.442695
        %v1285 = vpow.pop %v1284
        %v1286 = vmul.f32 %v1203, 1.442695
        %v1287 = vpow.pop %v1286
        %v1288 = vmul.f32 %v1204, 1.442695
        %v1289 = vpow.pop %v1288
        %v1290 = vmul.f32 %v1205, 1.442695
        %v1291 = vpow.pop %v1290
        %v1292 = vmul.f32 %v1206, 1.442695
        %v1293 = vpow.pop %v1292
        %v1294 = vmul.f32 %v1207, 1.442695
        %v1295 = vpow.pop %v1294
        %v1296 = vmul.f32 %v1208, 1.442695
        %v1297 = vpow.pop %v1296
        %v1298 = vmul.f32 %v1209, 1.442695
        %v1299 = vpow.pop %v1298
        %v1300 = vmul.f32 %v1210, 1.442695
        %v1301 = vpow.pop %v1300
        %v1302 = vmul.f32 %v1211, 1.442695
        %v1303 = vpow.pop %v1302
        %v1304 = vmul.f32 %v1212, 1.442695
        %v1305 = vpow.pop %v1304
        %v1306 = vmul.f32 %v1213, 1.442695
        %v1307 = vpow.pop %v1306
        %v1308 = vmul.f32 %v1214, 1.442695
        %v1309 = vpow.pop %v1308
        %v1310 = vmul.f32 %v1215, 1.442695
        %v1311 = vpow.pop %v1310
        %v1312 = vmul.f32 %v1216, 1.442695
        %v1313 = vpow.pop %v1312
        %v1314 = vmul.f32 %v1217, 1.442695
        %v1315 = vpow.pop %v1314
        %v1316 = vmul.f32 %v1218, 1.442695
        %v1317 = vpow.pop %v1316
        %v1318 = vmul.f32 %v1219, 1.442695
        %v1319 = vpow.pop %v1318
        %v1320 = vmul.f32 %v1220, 1.442695
        %v1321 = vpow.pop %v1320
        %v1322 = vmul.f32 %v1221, 1.442695
        %v1323 = vpow.pop %v1322
        %v1324 = vmul.f32 %v1222, 1.442695
        %v1325 = vpow.pop %v1324
        %v1326 = vmul.f32 %v1223, 1.442695
        %v1327 = vpow.pop %v1326
        %v1328 = vmul.f32 %v1224, 1.442695
        %v1329 = vpow.pop %v1328
        %v1330 = vmul.f32 %v1225, 1.442695
        %v1331 = vpow.pop %v1330
        %v1332 = vmul.f32 %v1226, 1.442695
        %v1333 = vpow.pop %v1332
        %v1334 = vmul.f32 %v1227, 1.442695
        %v1335 = vpow.pop %v1334
        %v1336 = vmul.f32 %v1228, 1.442695
        %v1337 = vpow.pop %v1336
        %v1338 = vmul.f32 %v1229, 1.442695
        %v1339 = vpow.pop %v1338
        %v1340 = vmul.f32 %v1230, 1.442695
        %v1341 = vpow.pop %v1340
        %v1342 = vmul.f32 %v1231, 1.442695
        %v1343 = vpow.pop %v1342
        %v1344 = vmul.f32 %v1232, 1.442695
        %v1345 = vpow.pop %v1344
        %v1346 = vmul.f32 %v1233, 1.442695
        %v1347 = vpow.pop %v1346
        %v1348 = vmul.f32 %v1234, 1.442695
        %v1349 = vpow.pop %v1348
        %v1350 = vmul.f32 %v1235, 1.442695
        %v1351 = vpow.pop %v1350
        %v1352 = vmul.f32 %v1236, 1.442695
        %v1353 = vpow.pop %v1352
        %v1354 = vmul.f32 %v1237, 1.442695
        %v1355 = vpow.pop %v1354
        %v1356 = vmul.f32 %v1238, 1.442695
        %v1357 = vpow.pop %v1356
        %v1358 = vmul.f32 %v1239, 1.442695
        %v1359 = vpow.pop %v1358
        %v1360 = vmul.f32 %v1240, 1.442695
        %v1361 = vpow.pop %v1360
        %v1362 = vmul.f32 %v1241, 1.442695
        %v1363 = vpow.pop %v1362
        %v1364 = vmul.f32 %v1242, 1.442695
        %v1365 = vpow.pop %v1364
        %v1366 = vmul.f32 %v1243, 1.442695
        %v1367 = vpow.pop %v1366
        %v1368 = vmul.f32 %v1244, 1.442695
        %v1369 = vpow.pop %v1368
        %v1370 = vmul.f32 %v1245, 1.442695
        %v1371 = vpow.pop %v1370
        %v1372 = vmul.f32 %v1246, 1.442695
        %v1373 = vpow.pop %v1372
        %v1374 = vmul.f32 %v1247, 1.442695
        %v1375 = vpow.pop %v1374
        %v1376 = vadd.f32 %v1249, %v1251
        %1377 = vadd.xlane.f32.xlu0 %v1376
        %v1378 = vpop.xlane.xlu0 %1377
        %v1379 = vadd.f32 %v1253, %v1255
        %1380 = vadd.xlane.f32.xlu0 %v1379
        %v1381 = vpop.xlane.xlu0 %1380
        %v1382 = vadd.f32 %v1257, %v1259
        %1383 = vadd.xlane.f32.xlu0 %v1382
        %v1384 = vpop.xlane.xlu0 %1383
        %v1385 = vadd.f32 %v1261, %v1263
        %1386 = vadd.xlane.f32.xlu0 %v1385
        %v1387 = vpop.xlane.xlu0 %1386
        %v1388 = vadd.f32 %v1265, %v1267
        %1389 = vadd.xlane.f32.xlu0 %v1388
        %v1390 = vpop.xlane.xlu0 %1389
        %v1391 = vadd.f32 %v1269, %v1271
        %1392 = vadd.xlane.f32.xlu0 %v1391
        %v1393 = vpop.xlane.xlu0 %1392
        %v1394 = vadd.f32 %v1273, %v1275
        %1395 = vadd.xlane.f32.xlu0 %v1394
        %v1396 = vpop.xlane.xlu0 %1395
        %v1397 = vadd.f32 %v1277, %v1279
        %1398 = vadd.xlane.f32.xlu0 %v1397
        %v1399 = vpop.xlane.xlu0 %1398
        %v1400 = vadd.f32 %v1281, %v1283
        %1401 = vadd.xlane.f32.xlu0 %v1400
        %v1402 = vpop.xlane.xlu0 %1401
        %v1403 = vadd.f32 %v1285, %v1287
        %1404 = vadd.xlane.f32.xlu0 %v1403
        %v1405 = vpop.xlane.xlu0 %1404
        %v1406 = vadd.f32 %v1289, %v1291
        %1407 = vadd.xlane.f32.xlu0 %v1406
        %v1408 = vpop.xlane.xlu0 %1407
        %v1409 = vadd.f32 %v1293, %v1295
        %1410 = vadd.xlane.f32.xlu0 %v1409
        %v1411 = vpop.xlane.xlu0 %1410
        %v1412 = vadd.f32 %v1297, %v1299
        %1413 = vadd.xlane.f32.xlu0 %v1412
        %v1414 = vpop.xlane.xlu0 %1413
        %v1415 = vadd.f32 %v1301, %v1303
        %1416 = vadd.xlane.f32.xlu0 %v1415
        %v1417 = vpop.xlane.xlu0 %1416
        %v1418 = vadd.f32 %v1305, %v1307
        %1419 = vadd.xlane.f32.xlu0 %v1418
        %v1420 = vpop.xlane.xlu0 %1419
        %v1421 = vadd.f32 %v1309, %v1311
        %1422 = vadd.xlane.f32.xlu0 %v1421
        %v1423 = vpop.xlane.xlu0 %1422
        %v1424 = vadd.f32 %v1313, %v1315
        %1425 = vadd.xlane.f32.xlu0 %v1424
        %v1426 = vpop.xlane.xlu0 %1425
        %v1427 = vadd.f32 %v1317, %v1319
        %1428 = vadd.xlane.f32.xlu0 %v1427
        %v1429 = vpop.xlane.xlu0 %1428
        %v1430 = vadd.f32 %v1321, %v1323
        %1431 = vadd.xlane.f32.xlu0 %v1430
        %v1432 = vpop.xlane.xlu0 %1431
        %v1433 = vadd.f32 %v1325, %v1327
        %1434 = vadd.xlane.f32.xlu0 %v1433
        %v1435 = vpop.xlane.xlu0 %1434
        %v1436 = vadd.f32 %v1329, %v1331
        %1437 = vadd.xlane.f32.xlu0 %v1436
        %v1438 = vpop.xlane.xlu0 %1437
        %v1439 = vadd.f32 %v1333, %v1335
        %1440 = vadd.xlane.f32.xlu0 %v1439
        %v1441 = vpop.xlane.xlu0 %1440
        %v1442 = vadd.f32 %v1337, %v1339
        %1443 = vadd.xlane.f32.xlu0 %v1442
        %v1444 = vpop.xlane.xlu0 %1443
        %v1445 = vadd.f32 %v1341, %v1343
        %1446 = vadd.xlane.f32.xlu0 %v1445
        %v1447 = vpop.xlane.xlu0 %1446
        %v1448 = vadd.f32 %v1345, %v1347
        %1449 = vadd.xlane.f32.xlu0 %v1448
        %v1450 = vpop.xlane.xlu0 %1449
        %v1451 = vadd.f32 %v1349, %v1351
        %1452 = vadd.xlane.f32.xlu0 %v1451
        %v1453 = vpop.xlane.xlu0 %1452
        %v1454 = vadd.f32 %v1353, %v1355
        %1455 = vadd.xlane.f32.xlu0 %v1454
        %v1456 = vpop.xlane.xlu0 %1455
        %v1457 = vadd.f32 %v1357, %v1359
        %1458 = vadd.xlane.f32.xlu0 %v1457
        %v1459 = vpop.xlane.xlu0 %1458
        %v1460 = vadd.f32 %v1361, %v1363
        %1461 = vadd.xlane.f32.xlu0 %v1460
        %v1462 = vpop.xlane.xlu0 %1461
        %v1463 = vadd.f32 %v1365, %v1367
        %1464 = vadd.xlane.f32.xlu0 %v1463
        %v1465 = vpop.xlane.xlu0 %1464
        %v1466 = vadd.f32 %v1369, %v1371
        %1467 = vadd.xlane.f32.xlu0 %v1466
        %v1468 = vpop.xlane.xlu0 %1467
        %v1469 = vadd.f32 %v1373, %v1375
        %1470 = vadd.xlane.f32.xlu0 %v1469
        %v1471 = vpop.xlane.xlu0 %1470
        %v1472 = vrcp.pop %v1378
        %v1473 = vrcp.pop %v1381
        %v1474 = vrcp.pop %v1384
        %v1475 = vrcp.pop %v1387
        %v1476 = vrcp.pop %v1390
        %v1477 = vrcp.pop %v1393
        %v1478 = vrcp.pop %v1396
        %v1479 = vrcp.pop %v1399
        %v1480 = vrcp.pop %v1402
        %v1481 = vrcp.pop %v1405
        %v1482 = vrcp.pop %v1408
        %v1483 = vrcp.pop %v1411
        %v1484 = vrcp.pop %v1414
        %v1485 = vrcp.pop %v1417
        %v1486 = vrcp.pop %v1420
        %v1487 = vrcp.pop %v1423
        %v1488 = vrcp.pop %v1426
        %v1489 = vrcp.pop %v1429
        %v1490 = vrcp.pop %v1432
        %v1491 = vrcp.pop %v1435
        %v1492 = vrcp.pop %v1438
        %v1493 = vrcp.pop %v1441
        %v1494 = vrcp.pop %v1444
        %v1495 = vrcp.pop %v1447
        %v1496 = vrcp.pop %v1450
        %v1497 = vrcp.pop %v1453
        %v1498 = vrcp.pop %v1456
        %v1499 = vrcp.pop %v1459
        %v1500 = vrcp.pop %v1462
        %v1501 = vrcp.pop %v1465
        %v1502 = vrcp.pop %v1468
        %v1503 = vrcp.pop %v1471
        %v1504 = vmul.f32 %v1378, %v1472
        %v1505 = vmul.f32 %v1381, %v1473
        %v1506 = vmul.f32 %v1384, %v1474
        %v1507 = vmul.f32 %v1387, %v1475
        %v1508 = vmul.f32 %v1390, %v1476
        %v1509 = vmul.f32 %v1393, %v1477
        %v1510 = vmul.f32 %v1396, %v1478
        %v1511 = vmul.f32 %v1399, %v1479
        %v1512 = vmul.f32 %v1402, %v1480
        %v1513 = vmul.f32 %v1405, %v1481
        %v1514 = vmul.f32 %v1408, %v1482
        %v1515 = vmul.f32 %v1411, %v1483
        %v1516 = vmul.f32 %v1414, %v1484
        %v1517 = vmul.f32 %v1417, %v1485
        %v1518 = vmul.f32 %v1420, %v1486
        %v1519 = vmul.f32 %v1423, %v1487
        %v1520 = vmul.f32 %v1426, %v1488
        %v1521 = vmul.f32 %v1429, %v1489
        %v1522 = vmul.f32 %v1432, %v1490
        %v1523 = vmul.f32 %v1435, %v1491
        %v1524 = vmul.f32 %v1438, %v1492
        %v1525 = vmul.f32 %v1441, %v1493
        %v1526 = vmul.f32 %v1444, %v1494
        %v1527 = vmul.f32 %v1447, %v1495
        %v1528 = vmul.f32 %v1450, %v1496
        %v1529 = vmul.f32 %v1453, %v1497
        %v1530 = vmul.f32 %v1456, %v1498
        %v1531 = vmul.f32 %v1459, %v1499
        %v1532 = vmul.f32 %v1462, %v1500
        %v1533 = vmul.f32 %v1465, %v1501
        %v1534 = vmul.f32 %v1468, %v1502
        %v1535 = vmul.f32 %v1471, %v1503
        %v1536 = vsub.f32 2.0, %v1504
        %v1537 = vsub.f32 2.0, %v1505
        %v1538 = vsub.f32 2.0, %v1506
        %v1539 = vsub.f32 2.0, %v1507
        %v1540 = vsub.f32 2.0, %v1508
        %v1541 = vsub.f32 2.0, %v1509
        %v1542 = vsub.f32 2.0, %v1510
        %v1543 = vsub.f32 2.0, %v1511
        %v1544 = vsub.f32 2.0, %v1512
        %v1545 = vsub.f32 2.0, %v1513
        %v1546 = vsub.f32 2.0, %v1514
        %v1547 = vsub.f32 2.0, %v1515
        %v1548 = vsub.f32 2.0, %v1516
        %v1549 = vsub.f32 2.0, %v1517
        %v1550 = vsub.f32 2.0, %v1518
        %v1551 = vsub.f32 2.0, %v1519
        %v1552 = vsub.f32 2.0, %v1520
        %v1553 = vsub.f32 2.0, %v1521
        %v1554 = vsub.f32 2.0, %v1522
        %v1555 = vsub.f32 2.0, %v1523
        %v1556 = vsub.f32 2.0, %v1524
        %v1557 = vsub.f32 2.0, %v1525
        %v1558 = vsub.f32 2.0, %v1526
        %v1559 = vsub.f32 2.0, %v1527
        %v1560 = vsub.f32 2.0, %v1528
        %v1561 = vsub.f32 2.0, %v1529
        %v1562 = vsub.f32 2.0, %v1530
        %v1563 = vsub.f32 2.0, %v1531
        %v1564 = vsub.f32 2.0, %v1532
        %v1565 = vsub.f32 2.0, %v1533
        %v1566 = vsub.f32 2.0, %v1534
        %v1567 = vsub.f32 2.0, %v1535
        %v1568 = vmul.f32 %v1472, %v1536
        %v1569 = vmul.f32 %v1473, %v1537
        %v1570 = vmul.f32 %v1474, %v1538
        %v1571 = vmul.f32 %v1475, %v1539
        %v1572 = vmul.f32 %v1476, %v1540
        %v1573 = vmul.f32 %v1477, %v1541
        %v1574 = vmul.f32 %v1478, %v1542
        %v1575 = vmul.f32 %v1479, %v1543
        %v1576 = vmul.f32 %v1480, %v1544
        %v1577 = vmul.f32 %v1481, %v1545
        %v1578 = vmul.f32 %v1482, %v1546
        %v1579 = vmul.f32 %v1483, %v1547
        %v1580 = vmul.f32 %v1484, %v1548
        %v1581 = vmul.f32 %v1485, %v1549
        %v1582 = vmul.f32 %v1486, %v1550
        %v1583 = vmul.f32 %v1487, %v1551
        %v1584 = vmul.f32 %v1488, %v1552
        %v1585 = vmul.f32 %v1489, %v1553
        %v1586 = vmul.f32 %v1490, %v1554
        %v1587 = vmul.f32 %v1491, %v1555
        %v1588 = vmul.f32 %v1492, %v1556
        %v1589 = vmul.f32 %v1493, %v1557
        %v1590 = vmul.f32 %v1494, %v1558
        %v1591 = vmul.f32 %v1495, %v1559
        %v1592 = vmul.f32 %v1496, %v1560
        %v1593 = vmul.f32 %v1497, %v1561
        %v1594 = vmul.f32 %v1498, %v1562
        %v1595 = vmul.f32 %v1499, %v1563
        %v1596 = vmul.f32 %v1500, %v1564
        %v1597 = vmul.f32 %v1501, %v1565
        %v1598 = vmul.f32 %v1502, %v1566
        %v1599 = vmul.f32 %v1503, %v1567
        %v1600 = vmul.f32 %v1249, %v1568
        %v1601 = vmul.f32 %v1251, %v1568
        %v1602 = vmul.f32 %v1253, %v1569
        %v1603 = vmul.f32 %v1255, %v1569
        %v1604 = vmul.f32 %v1257, %v1570
        %v1605 = vmul.f32 %v1259, %v1570
        %v1606 = vmul.f32 %v1261, %v1571
        %v1607 = vmul.f32 %v1263, %v1571
        %v1608 = vmul.f32 %v1265, %v1572
        %v1609 = vmul.f32 %v1267, %v1572
        %v1610 = vmul.f32 %v1269, %v1573
        %v1611 = vmul.f32 %v1271, %v1573
        %v1612 = vmul.f32 %v1273, %v1574
        %v1613 = vmul.f32 %v1275, %v1574
        %v1614 = vmul.f32 %v1277, %v1575
        %v1615 = vmul.f32 %v1279, %v1575
        %v1616 = vmul.f32 %v1281, %v1576
        %v1617 = vmul.f32 %v1283, %v1576
        %v1618 = vmul.f32 %v1285, %v1577
        %v1619 = vmul.f32 %v1287, %v1577
        %v1620 = vmul.f32 %v1289, %v1578
        %v1621 = vmul.f32 %v1291, %v1578
        %v1622 = vmul.f32 %v1293, %v1579
        %v1623 = vmul.f32 %v1295, %v1579
        %v1624 = vmul.f32 %v1297, %v1580
        %v1625 = vmul.f32 %v1299, %v1580
        %v1626 = vmul.f32 %v1301, %v1581
        %v1627 = vmul.f32 %v1303, %v1581
        %v1628 = vmul.f32 %v1305, %v1582
        %v1629 = vmul.f32 %v1307, %v1582
        %v1630 = vmul.f32 %v1309, %v1583
        %v1631 = vmul.f32 %v1311, %v1583
        %v1632 = vmul.f32 %v1313, %v1584
        %v1633 = vmul.f32 %v1315, %v1584
        %v1634 = vmul.f32 %v1317, %v1585
        %v1635 = vmul.f32 %v1319, %v1585
        %v1636 = vmul.f32 %v1321, %v1586
        %v1637 = vmul.f32 %v1323, %v1586
        %v1638 = vmul.f32 %v1325, %v1587
        %v1639 = vmul.f32 %v1327, %v1587
        %v1640 = vmul.f32 %v1329, %v1588
        %v1641 = vmul.f32 %v1331, %v1588
        %v1642 = vmul.f32 %v1333, %v1589
        %v1643 = vmul.f32 %v1335, %v1589
        %v1644 = vmul.f32 %v1337, %v1590
        %v1645 = vmul.f32 %v1339, %v1590
        %v1646 = vmul.f32 %v1341, %v1591
        %v1647 = vmul.f32 %v1343, %v1591
        %v1648 = vmul.f32 %v1345, %v1592
        %v1649 = vmul.f32 %v1347, %v1592
        %v1650 = vmul.f32 %v1349, %v1593
        %v1651 = vmul.f32 %v1351, %v1593
        %v1652 = vmul.f32 %v1353, %v1594
        %v1653 = vmul.f32 %v1355, %v1594
        %v1654 = vmul.f32 %v1357, %v1595
        %v1655 = vmul.f32 %v1359, %v1595
        %v1656 = vmul.f32 %v1361, %v1596
        %v1657 = vmul.f32 %v1363, %v1596
        %v1658 = vmul.f32 %v1365, %v1597
        %v1659 = vmul.f32 %v1367, %v1597
        %v1660 = vmul.f32 %v1369, %v1598
        %v1661 = vmul.f32 %v1371, %v1598
        %v1662 = vmul.f32 %v1373, %v1599
        %v1663 = vmul.f32 %v1375, %v1599
        %1664 = vst [vmem:[%s340] sm:$0xff] %v1600
        %1665 = vst [vmem:[%s340 + $0x8] sm:$0xff] %v1601
        %1666 = vst [vmem:[%s340 + $0x10] sm:$0xff] %v1602
        %1667 = vst [vmem:[%s340 + $0x18] sm:$0xff] %v1603
        %1668 = vst [vmem:[%s340 + $0x20] sm:$0xff] %v1604
        %1669 = vst [vmem:[%s340 + $0x28] sm:$0xff] %v1605
        %1670 = vst [vmem:[%s340 + $0x30] sm:$0xff] %v1606
        %1671 = vst [vmem:[%s340 + $0x38] sm:$0xff] %v1607
        %1672 = vst [vmem:[%s340 + $0x40] sm:$0xff] %v1608
        %1673 = vst [vmem:[%s340 + $0x48] sm:$0xff] %v1609
        %1674 = vst [vmem:[%s340 + $0x50] sm:$0xff] %v1610
        %1675 = vst [vmem:[%s340 + $0x58] sm:$0xff] %v1611
        %1676 = vst [vmem:[%s340 + $0x60] sm:$0xff] %v1612
        %1677 = vst [vmem:[%s340 + $0x68] sm:$0xff] %v1613
        %1678 = vst [vmem:[%s340 + $0x70] sm:$0xff] %v1614
        %1679 = vst [vmem:[%s340 + $0x78] sm:$0xff] %v1615
        %1680 = vst [vmem:[%s340 + $0x80] sm:$0xff] %v1616
        %1681 = vst [vmem:[%s340 + $0x88] sm:$0xff] %v1617
        %1682 = vst [vmem:[%s340 + $0x90] sm:$0xff] %v1618
        %1683 = vst [vmem:[%s340 + $0x98] sm:$0xff] %v1619
        %1684 = vst [vmem:[%s340 + $0xa0] sm:$0xff] %v1620
        %1685 = vst [vmem:[%s340 + $0xa8] sm:$0xff] %v1621
        %1686 = vst [vmem:[%s340 + $0xb0] sm:$0xff] %v1622
        %1687 = vst [vmem:[%s340 + $0xb8] sm:$0xff] %v1623
        %1688 = vst [vmem:[%s340 + $0xc0] sm:$0xff] %v1624
        %1689 = vst [vmem:[%s340 + $0xc8] sm:$0xff] %v1625
        %1690 = vst [vmem:[%s340 + $0xd0] sm:$0xff] %v1626
        %1691 = vst [vmem:[%s340 + $0xd8] sm:$0xff] %v1627
        %1692 = vst [vmem:[%s340 + $0xe0] sm:$0xff] %v1628
        %1693 = vst [vmem:[%s340 + $0xe8] sm:$0xff] %v1629
        %1694 = vst [vmem:[%s340 + $0xf0] sm:$0xff] %v1630
        %1695 = vst [vmem:[%s340 + $0xf8] sm:$0xff] %v1631
        %1696 = vst [vmem:[%s340 + $0x100] sm:$0xff] %v1632
        %1697 = vst [vmem:[%s340 + $0x108] sm:$0xff] %v1633
        %1698 = vst [vmem:[%s340 + $0x110] sm:$0xff] %v1634
        %1699 = vst [vmem:[%s340 + $0x118] sm:$0xff] %v1635
        %1700 = vst [vmem:[%s340 + $0x120] sm:$0xff] %v1636
        %1701 = vst [vmem:[%s340 + $0x128] sm:$0xff] %v1637
        %1702 = vst [vmem:[%s340 + $0x130] sm:$0xff] %v1638
        %1703 = vst [vmem:[%s340 + $0x138] sm:$0xff] %v1639
        %1704 = vst [vmem:[%s340 + $0x140] sm:$0xff] %v1640
        %1705 = vst [vmem:[%s340 + $0x148] sm:$0xff] %v1641
        %1706 = vst [vmem:[%s340 + $0x150] sm:$0xff] %v1642
        %1707 = vst [vmem:[%s340 + $0x158] sm:$0xff] %v1643
        %1708 = vst [vmem:[%s340 + $0x160] sm:$0xff] %v1644
        %1709 = vst [vmem:[%s340 + $0x168] sm:$0xff] %v1645
        %1710 = vst [vmem:[%s340 + $0x170] sm:$0xff] %v1646
        %1711 = vst [vmem:[%s340 + $0x178] sm:$0xff] %v1647
        %1712 = vst [vmem:[%s340 + $0x180] sm:$0xff] %v1648
        %1713 = vst [vmem:[%s340 + $0x188] sm:$0xff] %v1649
        %1714 = vst [vmem:[%s340 + $0x190] sm:$0xff] %v1650
        %1715 = vst [vmem:[%s340 + $0x198] sm:$0xff] %v1651
        %1716 = vst [vmem:[%s340 + $0x1a0] sm:$0xff] %v1652
        %1717 = vst [vmem:[%s340 + $0x1a8] sm:$0xff] %v1653
        %1718 = vst [vmem:[%s340 + $0x1b0] sm:$0xff] %v1654
        %1719 = vst [vmem:[%s340 + $0x1b8] sm:$0xff] %v1655
        %1720 = vst [vmem:[%s340 + $0x1c0] sm:$0xff] %v1656
        %1721 = vst [vmem:[%s340 + $0x1c8] sm:$0xff] %v1657
        %1722 = vst [vmem:[%s340 + $0x1d0] sm:$0xff] %v1658
        %1723 = vst [vmem:[%s340 + $0x1d8] sm:$0xff] %v1659
        %1724 = vst [vmem:[%s340 + $0x1e0] sm:$0xff] %v1660
        %1725 = vst [vmem:[%s340 + $0x1e8] sm:$0xff] %v1661
        %1726 = vst [vmem:[%s340 + $0x1f0] sm:$0xff] %v1662
        %1727 = vst [vmem:[%s340 + $0x1f8] sm:$0xff] %v1663
        %v1728 = vld [vmem:[%s360] sm:$0xff]
        %v1729 = vld [vmem:[%s360 + $0x8] sm:$0xff]
        %v1730 = vld [vmem:[%s360 + $0x10] sm:$0xff]
        %v1731 = vld [vmem:[%s360 + $0x18] sm:$0xff]
        %v1732 = vld [vmem:[%s360 + $0x20] sm:$0xff]
        %v1733 = vld [vmem:[%s360 + $0x28] sm:$0xff]
        %v1734 = vld [vmem:[%s360 + $0x30] sm:$0xff]
        %v1735 = vld [vmem:[%s360 + $0x38] sm:$0xff]
        %v1736 = vld [vmem:[%s360 + $0x40] sm:$0xff]
        %v1737 = vld [vmem:[%s360 + $0x48] sm:$0xff]
        %v1738 = vld [vmem:[%s360 + $0x50] sm:$0xff]
        %v1739 = vld [vmem:[%s360 + $0x58] sm:$0xff]
        %v1740 = vld [vmem:[%s360 + $0x60] sm:$0xff]
        %v1741 = vld [vmem:[%s360 + $0x68] sm:$0xff]
        %v1742 = vld [vmem:[%s360 + $0x70] sm:$0xff]
        %v1743 = vld [vmem:[%s360 + $0x78] sm:$0xff]
        %v1744 = vld [vmem:[%s360 + $0x80] sm:$0xff]
        %v1745 = vld [vmem:[%s360 + $0x88] sm:$0xff]
        %v1746 = vld [vmem:[%s360 + $0x90] sm:$0xff]
        %v1747 = vld [vmem:[%s360 + $0x98] sm:$0xff]
        %v1748 = vld [vmem:[%s360 + $0xa0] sm:$0xff]
        %v1749 = vld [vmem:[%s360 + $0xa8] sm:$0xff]
        %v1750 = vld [vmem:[%s360 + $0xb0] sm:$0xff]
        %v1751 = vld [vmem:[%s360 + $0xb8] sm:$0xff]
        %v1752 = vld [vmem:[%s360 + $0xc0] sm:$0xff]
        %v1753 = vld [vmem:[%s360 + $0xc8] sm:$0xff]
        %v1754 = vld [vmem:[%s360 + $0xd0] sm:$0xff]
        %v1755 = vld [vmem:[%s360 + $0xd8] sm:$0xff]
        %v1756 = vld [vmem:[%s360 + $0xe0] sm:$0xff]
        %v1757 = vld [vmem:[%s360 + $0xe8] sm:$0xff]
        %v1758 = vld [vmem:[%s360 + $0xf0] sm:$0xff]
        %v1759 = vld [vmem:[%s360 + $0xf8] sm:$0xff]
        %1760 = vmatprep.subr.mxu0 0.0
        %1761 = vmatpush1.msra.mxu0 %v1728
        %1762 = vmatprep.subr.mxu0 0.0
        %1763 = vmatpush1.msra.mxu0 %v1729
        %1764 = vmatprep.subr.mxu0 0.0
        %1765 = vmatpush1.msra.mxu0 %v1730
        %1766 = vmatprep.subr.mxu0 0.0
        %1767 = vmatpush1.msra.mxu0 %v1731
        %1768 = vmatprep.subr.mxu0 0.0
        %1769 = vmatpush1.msra.mxu0 %v1732
        %1770 = vmatprep.subr.mxu0 0.0
        %1771 = vmatpush1.msra.mxu0 %v1733
        %1772 = vmatprep.subr.mxu0 0.0
        %1773 = vmatpush1.msra.mxu0 %v1734
        %1774 = vmatprep.subr.mxu0 0.0
        %1775 = vmatpush1.msra.mxu0 %v1735
        %1776 = vmatprep.subr.mxu0 0.0
        %1777 = vmatpush1.msra.mxu0 %v1736
        %1778 = vmatprep.subr.mxu0 0.0
        %1779 = vmatpush1.msra.mxu0 %v1737
        %1780 = vmatprep.subr.mxu0 0.0
        %1781 = vmatpush1.msra.mxu0 %v1738
        %1782 = vmatprep.subr.mxu0 0.0
        %1783 = vmatpush1.msra.mxu0 %v1739
        %1784 = vmatprep.subr.mxu0 0.0
        %1785 = vmatpush1.msra.mxu0 %v1740
        %1786 = vmatprep.subr.mxu0 0.0
        %1787 = vmatpush1.msra.mxu0 %v1741
        %1788 = vmatprep.subr.mxu0 0.0
        %1789 = vmatpush1.msra.mxu0 %v1742
        %1790 = vmatprep.subr.mxu0 0.0
        %1791 = vmatpush1.msra.mxu0 %v1743
        %1792 = vmatprep.subr.mxu0 0.0
        %1793 = vmatpush1.msra.mxu0 %v1744
        %1794 = vmatprep.subr.mxu0 0.0
        %1795 = vmatpush1.msra.mxu0 %v1745
        %1796 = vmatprep.subr.mxu0 0.0
        %1797 = vmatpush1.msra.mxu0 %v1746
        %1798 = vmatprep.subr.mxu0 0.0
        %1799 = vmatpush1.msra.mxu0 %v1747
        %1800 = vmatprep.subr.mxu0 0.0
        %1801 = vmatpush1.msra.mxu0 %v1748
        %1802 = vmatprep.subr.mxu0 0.0
        %1803 = vmatpush1.msra.mxu0 %v1749
        %1804 = vmatprep.subr.mxu0 0.0
        %1805 = vmatpush1.msra.mxu0 %v1750
        %1806 = vmatprep.subr.mxu0 0.0
        %1807 = vmatpush1.msra.mxu0 %v1751
        %1808 = vmatprep.subr.mxu0 0.0
        %1809 = vmatpush1.msra.mxu0 %v1752
        %1810 = vmatprep.subr.mxu0 0.0
        %1811 = vmatpush1.msra.mxu0 %v1753
        %1812 = vmatprep.subr.mxu0 0.0
        %1813 = vmatpush1.msra.mxu0 %v1754
        %1814 = vmatprep.subr.mxu0 0.0
        %1815 = vmatpush1.msra.mxu0 %v1755
        %1816 = vmatprep.subr.mxu0 0.0
        %1817 = vmatpush1.msra.mxu0 %v1756
        %1818 = vmatprep.subr.mxu0 0.0
        %1819 = vmatpush1.msra.mxu0 %v1757
        %1820 = vmatprep.subr.mxu0 0.0
        %1821 = vmatpush1.msra.mxu0 %v1758
        %1822 = vmatprep.subr.mxu0 0.0
        %1823 = vmatpush1.msra.mxu0 %v1759
        %1824 = vmatprep.mubr.f32.mxu0 %v1601
        %1825 = vmatmul.mubr.f32.gmra.mrb[0].mxu0 %v1600
        %v1826 = vpop.f32.mrb[0].mxu0
        %v1827 = vadd.f32 0.0, %v1826
        %v1828 = vpop.f32.mrb[0].mxu0
        %1829 = vmatprep.mubr.f32.mxu0 %v1603
        %1830 = vmatmul.mubr.f32.gmra.mrb[0].mxu0 %v1602
        %v1831 = vpop.f32.mrb[0].mxu0
        %v1832 = vadd.f32 0.0, %v1831
        %v1833 = vpop.f32.mrb[0].mxu0
        %1834 = vmatprep.mubr.f32.mxu0 %v1605
        %1835 = vmatmul.mubr.f32.gmra.mrb[0].mxu0 %v1604
        %v1836 = vpop.f32.mrb[0].mxu0
        %v1837 = vadd.f32 0.0, %v1836
        %v1838 = vpop.f32.mrb[0].mxu0
        %1839 = vmatprep.mubr.f32.mxu0 %v1607
        %1840 = vmatmul.mubr.f32.gmra.mrb[0].mxu0 %v1606
        %v1841 = vpop.f32.mrb[0].mxu0
        %v1842 = vadd.f32 0.0, %v1841
        %v1843 = vpop.f32.mrb[0].mxu0
        %1844 = vmatprep.mubr.f32.mxu0 %v1609
        %1845 = vmatmul.mubr.f32.gmra.mrb[0].mxu0 %v1608
        %v1846 = vpop.f32.mrb[0].mxu0
        %v1847 = vadd.f32 0.0, %v1846
        %v1848 = vpop.f32.mrb[0].mxu0
        %1849 = vmatprep.mubr.f32.mxu0 %v1611
        %1850 = vmatmul.mubr.f32.gmra.mrb[0].mxu0 %v1610
        %v1851 = vpop.f32.mrb[0].mxu0
        %v1852 = vadd.f32 0.0, %v1851
        %v1853 = vpop.f32.mrb[0].mxu0
        %1854 = vmatprep.mubr.f32.mxu0 %v1613
        %1855 = vmatmul.mubr.f32.gmra.mrb[0].mxu0 %v1612
        %v1856 = vpop.f32.mrb[0].mxu0
        %v1857 = vadd.f32 0.0, %v1856
        %v1858 = vpop.f32.mrb[0].mxu0
        %1859 = vmatprep.mubr.f32.mxu0 %v1615
        %1860 = vmatmul.mubr.f32.gmra.mrb[0].mxu0 %v1614
        %v1861 = vpop.f32.mrb[0].mxu0
        %v1862 = vadd.f32 0.0, %v1861
        %v1863 = vpop.f32.mrb[0].mxu0
        %1864 = vmatprep.mubr.f32.mxu0 %v1617
        %1865 = vmatmul.mubr.f32.gmra.mrb[0].mxu0 %v1616
        %v1866 = vpop.f32.mrb[0].mxu0
        %v1867 = vadd.f32 0.0, %v1866
        %v1868 = vpop.f32.mrb[0].mxu0
        %1869 = vmatprep.mubr.f32.mxu0 %v1619
        %1870 = vmatmul.mubr.f32.gmra.mrb[0].mxu0 %v1618
        %v1871 = vpop.f32.mrb[0].mxu0
        %v1872 = vadd.f32 0.0, %v1871
        %v1873 = vpop.f32.mrb[0].mxu0
        %1874 = vmatprep.mubr.f32.mxu0 %v1621
        %1875 = vmatmul.mubr.f32.gmra.mrb[0].mxu0 %v1620
        %v1876 = vpop.f32.mrb[0].mxu0
        %v1877 = vadd.f32 0.0, %v1876
        %v1878 = vpop.f32.mrb[0].mxu0
        %1879 = vmatprep.mubr.f32.mxu0 %v1623
        %1880 = vmatmul.mubr.f32.gmra.mrb[0].mxu0 %v1622
        %v1881 = vpop.f32.mrb[0].mxu0
        %v1882 = vadd.f32 0.0, %v1881
        %v1883 = vpop.f32.mrb[0].mxu0
        %1884 = vmatprep.mubr.f32.mxu0 %v1625
        %1885 = vmatmul.mubr.f32.gmra.mrb[0].mxu0 %v1624
        %v1886 = vpop.f32.mrb[0].mxu0
        %v1887 = vadd.f32 0.0, %v1886
        %v1888 = vpop.f32.mrb[0].mxu0
        %1889 = vmatprep.mubr.f32.mxu0 %v1627
        %1890 = vmatmul.mubr.f32.gmra.mrb[0].mxu0 %v1626
        %v1891 = vpop.f32.mrb[0].mxu0
        %v1892 = vadd.f32 0.0, %v1891
        %v1893 = vpop.f32.mrb[0].mxu0
        %1894 = vmatprep.mubr.f32.mxu0 %v1629
        %1895 = vmatmul.mubr.f32.gmra.mrb[0].mxu0 %v1628
        %v1896 = vpop.f32.mrb[0].mxu0
        %v1897 = vadd.f32 0.0, %v1896
        %v1898 = vpop.f32.mrb[0].mxu0
        %1899 = vmatprep.mubr.f32.mxu0 %v1631
        %1900 = vmatmul.mubr.f32.gmra.mrb[0].mxu0 %v1630
        %v1901 = vpop.f32.mrb[0].mxu0
        %v1902 = vadd.f32 0.0, %v1901
        %v1903 = vpop.f32.mrb[0].mxu0
        %1904 = vmatprep.mubr.f32.mxu0 %v1633
        %1905 = vmatmul.mubr.f32.gmra.mrb[0].mxu0 %v1632
        %v1906 = vpop.f32.mrb[0].mxu0
        %v1907 = vadd.f32 0.0, %v1906
        %v1908 = vpop.f32.mrb[0].mxu0
        %1909 = vmatprep.mubr.f32.mxu0 %v1635
        %1910 = vmatmul.mubr.f32.gmra.mrb[0].mxu0 %v1634
        %v1911 = vpop.f32.mrb[0].mxu0
        %v1912 = vadd.f32 0.0, %v1911
        %v1913 = vpop.f32.mrb[0].mxu0
        %1914 = vmatprep.mubr.f32.mxu0 %v1637
        %1915 = vmatmul.mubr.f32.gmra.mrb[0].mxu0 %v1636
        %v1916 = vpop.f32.mrb[0].mxu0
        %v1917 = vadd.f32 0.0, %v1916
        %v1918 = vpop.f32.mrb[0].mxu0
        %1919 = vmatprep.mubr.f32.mxu0 %v1639
        %1920 = vmatmul.mubr.f32.gmra.mrb[0].mxu0 %v1638
        %v1921 = vpop.f32.mrb[0].mxu0
        %v1922 = vadd.f32 0.0, %v1921
        %v1923 = vpop.f32.mrb[0].mxu0
        %1924 = vmatprep.mubr.f32.mxu0 %v1641
        %1925 = vmatmul.mubr.f32.gmra.mrb[0].mxu0 %v1640
        %v1926 = vpop.f32.mrb[0].mxu0
        %v1927 = vadd.f32 0.0, %v1926
        %v1928 = vpop.f32.mrb[0].mxu0
        %1929 = vmatprep.mubr.f32.mxu0 %v1643
        %1930 = vmatmul.mubr.f32.gmra.mrb[0].mxu0 %v1642
        %v1931 = vpop.f32.mrb[0].mxu0
        %v1932 = vadd.f32 0.0, %v1931
        %v1933 = vpop.f32.mrb[0].mxu0
        %1934 = vmatprep.mubr.f32.mxu0 %v1645
        %1935 = vmatmul.mubr.f32.gmra.mrb[0].mxu0 %v1644
        %v1936 = vpop.f32.mrb[0].mxu0
        %v1937 = vadd.f32 0.0, %v1936
        %v1938 = vpop.f32.mrb[0].mxu0
        %1939 = vmatprep.mubr.f32.mxu0 %v1647
        %1940 = vmatmul.mubr.f32.gmra.mrb[0].mxu0 %v1646
        %v1941 = vpop.f32.mrb[0].mxu0
        %v1942 = vadd.f32 0.0, %v1941
        %v1943 = vpop.f32.mrb[0].mxu0
        %1944 = vmatprep.mubr.f32.mxu0 %v1649
        %1945 = vmatmul.mubr.f32.gmra.mrb[0].mxu0 %v1648
        %v1946 = vpop.f32.mrb[0].mxu0
        %v1947 = vadd.f32 0.0, %v1946
        %v1948 = vpop.f32.mrb[0].mxu0
        %1949 = vmatprep.mubr.f32.mxu0 %v1651
        %1950 = vmatmul.mubr.f32.gmra.mrb[0].mxu0 %v1650
        %v1951 = vpop.f32.mrb[0].mxu0
        %v1952 = vadd.f32 0.0, %v1951
        %v1953 = vpop.f32.mrb[0].mxu0
        %1954 = vmatprep.mubr.f32.mxu0 %v1653
        %1955 = vmatmul.mubr.f32.gmra.mrb[0].mxu0 %v1652
        %v1956 = vpop.f32.mrb[0].mxu0
        %v1957 = vadd.f32 0.0, %v1956
        %v1958 = vpop.f32.mrb[0].mxu0
        %1959 = vmatprep.mubr.f32.mxu0 %v1655
        %1960 = vmatmul.mubr.f32.gmra.mrb[0].mxu0 %v1654
        %v1961 = vpop.f32.mrb[0].mxu0
        %v1962 = vadd.f32 0.0, %v1961
        %v1963 = vpop.f32.mrb[0].mxu0
        %1964 = vmatprep.mubr.f32.mxu0 %v1657
        %1965 = vmatmul.mubr.f32.gmra.mrb[0].mxu0 %v1656
        %v1966 = vpop.f32.mrb[0].mxu0
        %v1967 = vadd.f32 0.0, %v1966
        %v1968 = vpop.f32.mrb[0].mxu0
        %1969 = vmatprep.mubr.f32.mxu0 %v1659
        %1970 = vmatmul.mubr.f32.gmra.mrb[0].mxu0 %v1658
        %v1971 = vpop.f32.mrb[0].mxu0
        %v1972 = vadd.f32 0.0, %v1971
        %v1973 = vpop.f32.mrb[0].mxu0
        %1974 = vmatprep.mubr.f32.mxu0 %v1661
        %1975 = vmatmul.mubr.f32.gmra.mrb[0].mxu0 %v1660
        %v1976 = vpop.f32.mrb[0].mxu0
        %v1977 = vadd.f32 0.0, %v1976
        %v1978 = vpop.f32.mrb[0].mxu0
        %1979 = vmatprep.mubr.f32.mxu0 %v1663
        %1980 = vmatmul.mubr.f32.gmra.mrb[0].mxu0 %v1662
        %v1981 = vpop.f32.mrb[0].mxu0
        %v1982 = vadd.f32 0.0, %v1981
        %v1983 = vpop.f32.mrb[0].mxu0
        %1984 = vdwg.mxu0
        %s1985 = sld [smem:[#allocation2]]
        %v1986 = vstv %s1985
        %v1987 = vmul.f32 %v1986, %v1827
        %v1988 = vmul.f32 %v1986, %v1832
        %v1989 = vmul.f32 %v1986, %v1837
        %v1990 = vmul.f32 %v1986, %v1842
        %v1991 = vmul.f32 %v1986, %v1847
        %v1992 = vmul.f32 %v1986, %v1852
        %v1993 = vmul.f32 %v1986, %v1857
        %v1994 = vmul.f32 %v1986, %v1862
        %v1995 = vmul.f32 %v1986, %v1867
        %v1996 = vmul.f32 %v1986, %v1872
        %v1997 = vmul.f32 %v1986, %v1877
        %v1998 = vmul.f32 %v1986, %v1882
        %v1999 = vmul.f32 %v1986, %v1887
        %v2000 = vmul.f32 %v1986, %v1892
        %v2001 = vmul.f32 %v1986, %v1897
        %v2002 = vmul.f32 %v1986, %v1902
        %v2003 = vmul.f32 %v1986, %v1907
        %v2004 = vmul.f32 %v1986, %v1912
        %v2005 = vmul.f32 %v1986, %v1917
        %v2006 = vmul.f32 %v1986, %v1922
        %v2007 = vmul.f32 %v1986, %v1927
        %v2008 = vmul.f32 %v1986, %v1932
        %v2009 = vmul.f32 %v1986, %v1937
        %v2010 = vmul.f32 %v1986, %v1942
        %v2011 = vmul.f32 %v1986, %v1947
        %v2012 = vmul.f32 %v1986, %v1952
        %v2013 = vmul.f32 %v1986, %v1957
        %v2014 = vmul.f32 %v1986, %v1962
        %v2015 = vmul.f32 %v1986, %v1967
        %v2016 = vmul.f32 %v1986, %v1972
        %v2017 = vmul.f32 %v1986, %v1977
        %v2018 = vmul.f32 %v1986, %v1982
        %v2019 = vadd.f32 %v1987, %v363
        %v2020 = vadd.f32 %v1988, %v364
        %v2021 = vadd.f32 %v1989, %v365
        %v2022 = vadd.f32 %v1990, %v366
        %v2023 = vadd.f32 %v1991, %v367
        %v2024 = vadd.f32 %v1992, %v368
        %v2025 = vadd.f32 %v1993, %v369
        %v2026 = vadd.f32 %v1994, %v370
        %v2027 = vadd.f32 %v1995, %v371
        %v2028 = vadd.f32 %v1996, %v372
        %v2029 = vadd.f32 %v1997, %v373
        %v2030 = vadd.f32 %v1998, %v374
        %v2031 = vadd.f32 %v1999, %v375
        %v2032 = vadd.f32 %v2000, %v376
        %v2033 = vadd.f32 %v2001, %v377
        %v2034 = vadd.f32 %v2002, %v378
        %v2035 = vadd.f32 %v2003, %v379
        %v2036 = vadd.f32 %v2004, %v380
        %v2037 = vadd.f32 %v2005, %v381
        %v2038 = vadd.f32 %v2006, %v382
        %v2039 = vadd.f32 %v2007, %v383
        %v2040 = vadd.f32 %v2008, %v384
        %v2041 = vadd.f32 %v2009, %v385
        %v2042 = vadd.f32 %v2010, %v386
        %v2043 = vadd.f32 %v2011, %v387
        %v2044 = vadd.f32 %v2012, %v388
        %v2045 = vadd.f32 %v2013, %v389
        %v2046 = vadd.f32 %v2014, %v390
        %v2047 = vadd.f32 %v2015, %v391
        %v2048 = vadd.f32 %v2016, %v392
        %v2049 = vadd.f32 %v2017, %v393
        %v2050 = vadd.f32 %v2018, %v394
        %2051 = vst.msk [vmem:[%s333] sm:$0xff] %vm410, %v2019
        %2052 = vst.msk [vmem:[%s333 + $0x8] sm:$0xff] %vm410, %v2020
        %2053 = vst.msk [vmem:[%s333 + $0x10] sm:$0xff] %vm410, %v2021
        %2054 = vst.msk [vmem:[%s333 + $0x18] sm:$0xff] %vm410, %v2022
        %2055 = vst.msk [vmem:[%s333 + $0x20] sm:$0xff] %vm410, %v2023
        %2056 = vst.msk [vmem:[%s333 + $0x28] sm:$0xff] %vm410, %v2024
        %2057 = vst.msk [vmem:[%s333 + $0x30] sm:$0xff] %vm410, %v2025
        %2058 = vst.msk [vmem:[%s333 + $0x38] sm:$0xff] %vm410, %v2026
        %2059 = vst.msk [vmem:[%s333 + $0x40] sm:$0xff] %vm410, %v2027
        %2060 = vst.msk [vmem:[%s333 + $0x48] sm:$0xff] %vm410, %v2028
        %2061 = vst.msk [vmem:[%s333 + $0x50] sm:$0xff] %vm410, %v2029
        %2062 = vst.msk [vmem:[%s333 + $0x58] sm:$0xff] %vm410, %v2030
        %2063 = vst.msk [vmem:[%s333 + $0x60] sm:$0xff] %vm410, %v2031
        %2064 = vst.msk [vmem:[%s333 + $0x68] sm:$0xff] %vm410, %v2032
        %2065 = vst.msk [vmem:[%s333 + $0x70] sm:$0xff] %vm410, %v2033
        %2066 = vst.msk [vmem:[%s333 + $0x78] sm:$0xff] %vm410, %v2034
        %2067 = vst.msk [vmem:[%s333 + $0x80] sm:$0xff] %vm410, %v2035
        %2068 = vst.msk [vmem:[%s333 + $0x88] sm:$0xff] %vm410, %v2036
        %2069 = vst.msk [vmem:[%s333 + $0x90] sm:$0xff] %vm410, %v2037
        %2070 = vst.msk [vmem:[%s333 + $0x98] sm:$0xff] %vm410, %v2038
        %2071 = vst.msk [vmem:[%s333 + $0xa0] sm:$0xff] %vm410, %v2039
        %2072 = vst.msk [vmem:[%s333 + $0xa8] sm:$0xff] %vm410, %v2040
        %2073 = vst.msk [vmem:[%s333 + $0xb0] sm:$0xff] %vm410, %v2041
        %2074 = vst.msk [vmem:[%s333 + $0xb8] sm:$0xff] %vm410, %v2042
        %2075 = vst.msk [vmem:[%s333 + $0xc0] sm:$0xff] %vm410, %v2043
        %2076 = vst.msk [vmem:[%s333 + $0xc8] sm:$0xff] %vm410, %v2044
        %2077 = vst.msk [vmem:[%s333 + $0xd0] sm:$0xff] %vm410, %v2045
        %2078 = vst.msk [vmem:[%s333 + $0xd8] sm:$0xff] %vm410, %v2046
        %2079 = vst.msk [vmem:[%s333 + $0xe0] sm:$0xff] %vm410, %v2047
        %2080 = vst.msk [vmem:[%s333 + $0xe8] sm:$0xff] %vm410, %v2048
        %2081 = vst.msk [vmem:[%s333 + $0xf0] sm:$0xff] %vm410, %v2049
        %2082 = vst.msk [vmem:[%s333 + $0xf8] sm:$0xff] %vm410, %v2050
        %s2083 = sand.u32 %s191, 1
        %s2084 = scalar_lea.sflag [#allocation4], %s2083
        %s2085 = sand.u32 %s191, 1
        %s2086 = smul.addr %s2085, 256
        %s2087 = scalar_lea.vmem [#allocation3], %s2086
        %s2088 = sand.u32 %s219, 1
        %s2089 = scalar_lea.sflag [#allocation6], %s2088
        %s2090 = sand.u32 %s219, 1
        %s2091 = smul.addr %s2090, 512
        %s2092 = scalar_lea.vmem [#allocation5], %s2091
        // Predicated region
        $region45: #{self_attn_forward.3} parent=43 // pred_check
          %p2093 = pneg %p201
        $region46: #{self_attn_forward.3} parent=43 // pred_check_branch
          %2095 = sbr.rel (%p2093) target = $region48
        $region47: #{self_attn_forward.3} parent=43 // pred_region
          %s2096 = smul.u32 32, %s31
          %s2098 = ssub.s32 4096, 4096
          %2099 = vsyncadd %s2084, %s2098
          %s2100 = smul.addr %s30, 32
          %s2101 = sadd.s32 %s2096, %s2100
          %s2102 = smul.addr %s2101, 128
          %s2103 = scalar_lea.hbm %s6, %s2102
          %s2104 = sshll.u32 %s2087, 4
          %s2105 = int_to_ptr.vmem [resolvable:$true] %s2104
          %2110 = dma.vmem_to_hbm [thread:$0]  %s2105, 4096, %s2103, %s2084, 128, 128, 8
        $region48: #{self_attn_forward.3} parent=43 // pred_fallthru
          _
        // Predicated region
        $region49: #{self_attn_forward.3} parent=43 // pred_check
          %p2111 = pneg %p229
        $region50: #{self_attn_forward.3} parent=43 // pred_check_branch
          %2113 = sbr.rel (%p2111) target = $region52
        $region51: #{self_attn_forward.3} parent=43 // pred_region
          %s2114 = smul.u32 32, %s31
          %s2116 = ssub.s32 8192, 8192
          %2117 = vsyncadd %s2089, %s2116
          %s2118 = smul.addr %s2114, 2
          %s2119 = smul.addr %s30, 64
          %s2120 = sadd.s32 %s2118, %s2119
          %s2121 = smul.addr %s2120, 128
          %s2122 = scalar_lea.hbm %s7, %s2121
          %s2123 = sshll.u32 %s2092, 4
          %s2124 = int_to_ptr.vmem [resolvable:$true] %s2123
          %2129 = dma.vmem_to_hbm [thread:$0]  %s2124, 8192, %s2122, %s2089, 256, 256, 16
        $region52: #{self_attn_forward.3} parent=43 // pred_fallthru
          _
      $region44: #{self_attn_forward.3} parent=5 // pred_fallthru
        _
      %p2130 = scmp.le.s32.totalorder 2, %s21
      // Predicated region
      $region53: #{self_attn_forward.3} parent=5 // pred_check
        %p2131 = pneg %p2130
      $region54: #{self_attn_forward.3} parent=5 // pred_check_branch
        %2133 = sbr.rel (%p2131) target = $region56
      $region55: #{self_attn_forward.3} parent=5 // pred_region
        %s2134 = ssub.s32 %s21, 2
        // Predicated region
        $region57: #{self_attn_forward.3} parent=55 // pred_check
          %p2135 = pneg %p207
        $region58: #{self_attn_forward.3} parent=55 // pred_check_branch
          %2137 = sbr.rel (%p2135) target = $region60
        $region59: #{self_attn_forward.3} parent=55 // pred_region
          %s2138 = sand.u32 %s192, 1
          %s2139 = scalar_lea.sflag [#allocation4], %s2138
          %s2140 = sand.u32 %s192, 1
          %s2141 = smul.addr %s2140, 256
          %s2142 = scalar_lea.vmem [#allocation3], %s2141
          %2143 = dma.done %s2139, 4096
        $region60: #{self_attn_forward.3} parent=55 // pred_fallthru
          _
        // Predicated region
        $region61: #{self_attn_forward.3} parent=55 // pred_check
          %p2144 = pneg %p235
        $region62: #{self_attn_forward.3} parent=55 // pred_check_branch
          %2146 = sbr.rel (%p2144) target = $region64
        $region63: #{self_attn_forward.3} parent=55 // pred_region
          %s2147 = sand.u32 %s220, 1
          %s2148 = scalar_lea.sflag [#allocation6], %s2147
          %s2149 = sand.u32 %s220, 1
          %s2150 = smul.addr %s2149, 512
          %s2151 = scalar_lea.vmem [#allocation5], %s2150
          %2152 = dma.done %s2148, 8192
        $region64: #{self_attn_forward.3} parent=55 // pred_fallthru
          _
      $region56: #{self_attn_forward.3} parent=5 // pred_fallthru
        _
    $region6: #{self_attn_forward.3} parent=1 // loop_footer
      %s25 = sadd.s32 1, %s21
    $region7: #{self_attn_forward.3} parent=1 // loop_footer_branch
      %20 = sbr.rel target = $region3
    $region8: #{self_attn_forward.3} parent=1 // loop_exit
      _
    %2153 = vsyncpa [#allocation4], 1
    %s2154 = scalar_lea.sflag [#allocation4], 1
    %2155 = vsyncpa %s2154, 1
    %2156 = vsyncpa [#allocation6], 1
    %s2157 = scalar_lea.sflag [#allocation6], 1
    %2158 = vsyncpa %s2157, 1

</llo_original>
